<compile_context>
chip_gen: v7x
topology: tpu7x:2x2x1
jax: 0.10.0
libtpu: 0.0.40
codegen_flags: <defaults>
</compile_context>

<pallas_src>
import jax
import jax.numpy as jnp
from jax import lax
from jax.experimental import pallas as pl
from jax.experimental.pallas import tpu as pltpu

BN_EPS = 1e-5
C_BLK = 128  # lane-width channel block (Cmid is padded up to a multiple of this)


def make_fused_kernel(N, H, W, Wp, KH, KW, count):
    """Fused 1x1 conv (MXU) -> BN (batch stats) -> ReLU -> depthwise KHxKW."""
    PH, PW = (KH - 1) // 2, (KW - 1) // 2
    P = N * H * Wp
    inv_count = 1.0 / count

    def kernel(x_ref, w1_ref, g_ref, b_ref, wdw_ref, o_ref, z_ref):
        cb = w1_ref.shape[1]  # channels in this block (128)

        # ---- 1x1 conv: (Cin, P)^T @ (Cin, Cb) on the MXU ---------------------
        y = lax.dot_general(
            x_ref[...], w1_ref[...],
            dimension_numbers=(((0,), (0,)), ((), ())),
            preferred_element_type=jnp.float32)                   # (P, Cb)

        # Pixels with w >= W are pure padding (x was zero-padded -> y == 0 there).
        col = lax.broadcasted_iota(jnp.int32, (P, 1), 0) % Wp
        real = col < W                                            # (P, 1) bool

        # ---- BatchNorm batch stats (per channel, mean-shifted two-pass) ------
        mean = jnp.sum(y, axis=0, keepdims=True) * inv_count      # pad rows add 0
        yc = y - mean
        ycm = jnp.where(real, yc, 0.0)
        var = jnp.sum(ycm * ycm, axis=0, keepdims=True) * inv_count
        scale = g_ref[...] * lax.rsqrt(var + BN_EPS)              # (1, Cb)

        # BN affine + ReLU; force pad columns to exactly 0 so they act as the
        # left/right W halo for the depthwise conv (via circular rolls below).
        z = jnp.where(real, jnp.maximum(yc * scale + b_ref[...], 0.0), 0.0)
        z_ref[...] = z          # single aligned dense (P, Cb) store, no halo fill

        wts = wdw_ref[...]                                        # (KH*KW, Cb)

        # ---- depthwise KHxKW: one output row at a time ------------------------
        # Statically unrolled; per-row live set is ~20 vregs so no spills.
        for n in range(N):
            for h in range(H):
                rows = []
                for u in range(KH):
                    hr = h + u - PH
                    if 0 <= hr < H:
                        base = (n * H + hr) * Wp                  # multiple of Wp
                        rows.append(z_ref[base:base + Wp, :])     # (Wp, Cb) aligned
                    else:
                        rows.append(None)                         # H halo: skip tap
                acc = None
                for v in range(KW):
                    colsum = None
                    for u in range(KH):
                        if rows[u] is None:
                            continue
                        k = u * KW + v
                        t = rows[u] * wts[k:k + 1, :]             # (Wp, Cb)
                        colsum = t if colsum is None else colsum + t
                    # result[w] = colsum[w + v - PW]; zero columns [W, Wp) make
                    # the circular roll supply the correct zero W-halo.
                    sh = (PW - v) % Wp
                    if sh:
                        colsum = pltpu.roll(colsum, sh, axis=0)
                    acc = colsum if acc is None else acc + colsum
                o_ref[n * H + h, :, :] = acc[:W, :]

    return kernel


@jax.jit
def forward_pallas(x_nchw, w1_oihw, gamma, beta, wdw_oihw):
    N, Cin, H, W = x_nchw.shape
    Cmid = w1_oihw.shape[0]
    KH, KW = wdw_oihw.shape[2], wdw_oihw.shape[3]
    PW = (KW - 1) // 2

    Wp = ((W + PW + 7) // 8) * 8                 # aligned row width, >= W + PW
    Cpad = ((Cmid + C_BLK - 1) // C_BLK) * C_BLK # 480 -> 512

    # ---- layout prep (channel-major x: no data movement when N == 1) --------
    x_cm = jnp.transpose(x_nchw, (1, 0, 2, 3))                     # (Cin, N, H, W)
    x_cm = jnp.pad(x_cm, ((0, 0), (0, 0), (0, 0), (0, Wp - W)))    # zero W halo
    x2d = x_cm.reshape(Cin, N * H * Wp)

    w1_2d = jnp.pad(jnp.transpose(w1_oihw.reshape(Cmid, Cin), (1, 0)),
                    ((0, 0), (0, Cpad - Cmid)))                    # (Cin, Cpad)
    gamma2 = jnp.pad(gamma, (0, Cpad - Cmid)).reshape(1, Cpad)
    beta2 = jnp.pad(beta, (0, Cpad - Cmid)).reshape(1, Cpad)
    wdw_2d = jnp.pad(jnp.transpose(wdw_oihw.reshape(Cmid, KH * KW), (1, 0)),
                     ((0, 0), (0, Cpad - Cmid)))                   # (KH*KW, Cpad)

    out3 = pl.pallas_call(
        make_fused_kernel(N, H, W, Wp, KH, KW, float(N * H * W)),
        out_shape=jax.ShapeDtypeStruct((N * H, W, Cpad), jnp.float32),
        grid=(Cpad // C_BLK,),
        in_specs=[
            pl.BlockSpec((Cin, N * H * Wp), lambda j: (0, 0)),     # x (shared)
            pl.BlockSpec((Cin, C_BLK), lambda j: (0, j)),          # w1 block
            pl.BlockSpec((1, C_BLK), lambda j: (0, j)),            # gamma block
            pl.BlockSpec((1, C_BLK), lambda j: (0, j)),            # beta block
            pl.BlockSpec((KH * KW, C_BLK), lambda j: (0, j)),      # dw weights
        ],
        out_specs=pl.BlockSpec((N * H, W, C_BLK), lambda j: (0, 0, j)),
        scratch_shapes=[pltpu.VMEM((N * H * Wp, C_BLK), jnp.float32)],
        compiler_params=pltpu.CompilerParams(
            dimension_semantics=("parallel",)),
    )(x2d, w1_2d, gamma2, beta2, wdw_2d)

    out = out3[:, :, :Cmid].reshape(N, H, W, Cmid)
    return jnp.transpose(out, (0, 3, 1, 2))      # module output contract is NCHW


# Pure-JAX reference (NCHW, matching PyTorch train-mode semantics).
def forward_reference(x, w1, gamma, beta, wdw):
    y = lax.conv_general_dilated(
        x, w1, (1, 1), "VALID", dimension_numbers=("NCHW", "OIHW", "NCHW"))
    mean = jnp.mean(y, axis=(0, 2, 3), keepdims=True)
    var = jnp.mean(jnp.square(y - mean), axis=(0, 2, 3), keepdims=True)
    z = (y - mean) / jnp.sqrt(var + BN_EPS)
    z = z * gamma.reshape(1, -1, 1, 1) + beta.reshape(1, -1, 1, 1)
    z = jnp.maximum(z, 0.0)
    out = lax.conv_general_dilated(
        z, wdw, (1, 1), ((2, 2), (2, 2)),
        dimension_numbers=("NCHW", "OIHW", "NCHW"),
        feature_group_count=wdw.shape[0])
    return out


if __name__ == "__main__":
    key = jax.random.PRNGKey(0)
    k_x, k_w1, k_g, k_b, k_w2 = jax.random.split(key, 5)

    N, Cin, H, W = 1, 80, 14, 14
    Cmid = 480

    x = jax.random.normal(k_x, (N, Cin, H, W), jnp.float32)
    w1 = jax.random.normal(k_w1, (Cmid, Cin, 1, 1), jnp.float32) * 0.1
    gamma = 1.0 + 0.1 * jax.random.normal(k_g, (Cmid,), jnp.float32)
    beta = 0.1 * jax.random.normal(k_b, (Cmid,), jnp.float32)
    wdw = jax.random.normal(k_w2, (Cmid, 1, 5, 5), jnp.float32) * 0.1

    out = jax.block_until_ready(forward_pallas(x, w1, gamma, beta, wdw))
    ref = jax.block_until_ready(forward_reference(x, w1, gamma, beta, wdw))

    assert out.shape == (N, Cmid, H, W), out.shape
    max_err = float(jnp.max(jnp.abs(out - ref)))
    assert max_err < 2e-3, f"max abs error too large: {max_err}"

    print("KERNEL_OK")
</pallas_src>

<mosaic_0001>
module attributes {stable_mosaic.version = 11 : i64} {
  func.func @kernel(%arg0: i32, %arg1: memref<80x224xf32, #tpu.memory_space<vmem>>, %arg2: memref<80x128xf32, #tpu.memory_space<vmem>>, %arg3: memref<1x128xf32, #tpu.memory_space<vmem>>, %arg4: memref<1x128xf32, #tpu.memory_space<vmem>>, %arg5: memref<25x128xf32, #tpu.memory_space<vmem>>, %arg6: memref<14x14x128xf32, #tpu.memory_space<vmem>>, %arg7: memref<224x128xf32, #tpu.memory_space<vmem>>) attributes {dimension_semantics = [#tpu.dimension_semantics<parallel>], iteration_bounds = array<i64: 4>, scalar_prefetch = 0 : i64, scratch_operands = 1 : i64, tpu.core_type = #tpu.core_type<tc>, window_params = [{pipeline_mode = #tpu.pipeline_mode<synchronous>, transform_indices = @transform_0, window_bounds = array<i64: 80, 224>}, {transform_indices = @transform_1, window_bounds = array<i64: 80, 128>}, {transform_indices = @transform_2, window_bounds = array<i64: 1, 128>}, {transform_indices = @transform_3, window_bounds = array<i64: 1, 128>}, {transform_indices = @transform_4, window_bounds = array<i64: 25, 128>}, {transform_indices = @transform_5, window_bounds = array<i64: 14, 14, 128>}]} {
    %c0 = arith.constant 0 : index
    %c0_0 = arith.constant 0 : index
    %0 = vector.load %arg1[%c0, %c0_0] : memref<80x224xf32, #tpu.memory_space<vmem>>, vector<80x224xf32>
    %c0_1 = arith.constant 0 : index
    %c0_2 = arith.constant 0 : index
    %1 = vector.load %arg2[%c0_1, %c0_2] : memref<80x128xf32, #tpu.memory_space<vmem>>, vector<80x128xf32>
    %cst = arith.constant dense<0.000000e+00> : vector<224x128xf32>
    %2 = tpu.matmul %0, %1, %cst {dimension_numbers = #tpu.dot_dimension_numbers<[0], [0], [1], [1], [0, 1, 1, 1], [], []>} : vector<80x224xf32>, vector<80x128xf32>, vector<224x128xf32> -> vector<224x128xf32>
    %3 = tpu.iota {dimensions = array<i32: 0>} : vector<224x1xi32>
    %c16_i32 = arith.constant 16 : i32
    %c0_i32 = arith.constant 0 : i32
    %4 = arith.cmpi eq, %c16_i32, %c0_i32 : i32
    %c1_i32 = arith.constant 1 : i32
    %5 = arith.select %4, %c1_i32, %c16_i32 : i32
    %6 = vector.broadcast %5 : i32 to vector<224x1xi32>
    %7 = arith.remsi %3, %6 : vector<224x1xi32>
    %c0_i32_3 = arith.constant 0 : i32
    %8 = vector.broadcast %c0_i32_3 : i32 to vector<224x1xi32>
    %9 = arith.cmpi ne, %7, %8 : vector<224x1xi32>
    %c0_i32_4 = arith.constant 0 : i32
    %10 = vector.broadcast %c0_i32_4 : i32 to vector<224x1xi32>
    %11 = arith.cmpi slt, %7, %10 : vector<224x1xi32>
    %c0_i32_5 = arith.constant 0 : i32
    %12 = arith.cmpi slt, %5, %c0_i32_5 : i32
    %13 = vector.broadcast %12 : i1 to vector<224x1xi1>
    %14 = vector.broadcast %13 : vector<224x1xi1> to vector<224x1xi1>
    %15 = arith.xori %11, %14 : vector<224x1xi1>
    %16 = arith.andi %15, %9 : vector<224x1xi1>
    %17 = vector.broadcast %5 : i32 to vector<224x1xi32>
    %18 = arith.addi %7, %17 : vector<224x1xi32>
    %19 = arith.select %16, %18, %7 : vector<224x1xi1>, vector<224x1xi32>
    %c14_i32 = arith.constant 14 : i32
    %20 = vector.broadcast %c14_i32 : i32 to vector<224x1xi32>
    %21 = arith.cmpi slt, %19, %20 : vector<224x1xi32>
    %cst_6 = arith.constant dense<0.000000e+00> : vector<128xf32>
    %22 = vector.multi_reduction <add>, %2, %cst_6 [0] : vector<224x128xf32> to vector<128xf32>
    %23 = vector.shape_cast %22 : vector<128xf32> to vector<1x128xf32>
    %cst_7 = arith.constant 0.00510204071 : f32
    %24 = vector.broadcast %cst_7 : f32 to vector<1x128xf32>
    %25 = arith.mulf %23, %24 : vector<1x128xf32>
    %26 = vector.broadcast %25 : vector<1x128xf32> to vector<224x128xf32>
    %27 = arith.subf %2, %26 : vector<224x128xf32>
    %cst_8 = arith.constant 0.000000e+00 : f32
    %28 = vector.shape_cast %21 : vector<224x1xi1> to vector<224x1xi1>
    %29 = vector.broadcast %28 : vector<224x1xi1> to vector<224x128xi1>
    %30 = vector.broadcast %cst_8 : f32 to vector<224x128xf32>
    %31 = arith.select %29, %27, %30 : vector<224x128xi1>, vector<224x128xf32>
    %32 = arith.mulf %31, %31 : vector<224x128xf32>
    %cst_9 = arith.constant dense<0.000000e+00> : vector<128xf32>
    %33 = vector.multi_reduction <add>, %32, %cst_9 [0] : vector<224x128xf32> to vector<128xf32>
    %34 = vector.shape_cast %33 : vector<128xf32> to vector<1x128xf32>
    %cst_10 = arith.constant 0.00510204071 : f32
    %35 = vector.broadcast %cst_10 : f32 to vector<1x128xf32>
    %36 = arith.mulf %34, %35 : vector<1x128xf32>
    %c0_11 = arith.constant 0 : index
    %c0_12 = arith.constant 0 : index
    %37 = vector.load %arg3[%c0_11, %c0_12] : memref<1x128xf32, #tpu.memory_space<vmem>>, vector<1x128xf32>
    %cst_13 = arith.constant 9.99999974E-6 : f32
    %38 = vector.broadcast %cst_13 : f32 to vector<1x128xf32>
    %39 = arith.addf %36, %38 : vector<1x128xf32>
    %40 = math.rsqrt %39 : vector<1x128xf32>
    %41 = arith.mulf %37, %40 : vector<1x128xf32>
    %42 = vector.broadcast %41 : vector<1x128xf32> to vector<224x128xf32>
    %43 = arith.mulf %27, %42 : vector<224x128xf32>
    %c0_14 = arith.constant 0 : index
    %c0_15 = arith.constant 0 : index
    %44 = vector.load %arg4[%c0_14, %c0_15] : memref<1x128xf32, #tpu.memory_space<vmem>>, vector<1x128xf32>
    %45 = vector.broadcast %44 : vector<1x128xf32> to vector<224x128xf32>
    %46 = arith.addf %43, %45 : vector<224x128xf32>
    %cst_16 = arith.constant 0.000000e+00 : f32
    %47 = vector.broadcast %cst_16 : f32 to vector<224x128xf32>
    %48 = arith.maximumf %46, %47 : vector<224x128xf32>
    %cst_17 = arith.constant 0.000000e+00 : f32
    %49 = vector.shape_cast %21 : vector<224x1xi1> to vector<224x1xi1>
    %50 = vector.broadcast %49 : vector<224x1xi1> to vector<224x128xi1>
    %51 = vector.broadcast %cst_17 : f32 to vector<224x128xf32>
    %52 = arith.select %50, %48, %51 : vector<224x128xi1>, vector<224x128xf32>
    %c0_18 = arith.constant 0 : index
    %c0_19 = arith.constant 0 : index
    %53 = vector.load %arg7[%c0_18, %c0_19] : memref<224x128xf32, #tpu.memory_space<vmem>>, vector<224x128xf32>
    tpu.vector_store %arg7[%c0_18, %c0_19], %52 {strides = array<i32>} : memref<224x128xf32, #tpu.memory_space<vmem>>, vector<224x128xf32>,
    %c0_20 = arith.constant 0 : index
    %c0_21 = arith.constant 0 : index
    %54 = vector.load %arg5[%c0_20, %c0_21] : memref<25x128xf32, #tpu.memory_space<vmem>>, vector<25x128xf32>
    %c0_22 = arith.constant 0 : index
    %c0_23 = arith.constant 0 : index
    %55 = vector.load %arg7[%c0_22, %c0_23] : memref<224x128xf32, #tpu.memory_space<vmem>>, vector<16x128xf32>
    %c16 = arith.constant 16 : index
    %c0_24 = arith.constant 0 : index
    %56 = vector.load %arg7[%c16, %c0_24] : memref<224x128xf32, #tpu.memory_space<vmem>>, vector<16x128xf32>
    %c32 = arith.constant 32 : index
    %c0_25 = arith.constant 0 : index
    %57 = vector.load %arg7[%c32, %c0_25] : memref<224x128xf32, #tpu.memory_space<vmem>>, vector<16x128xf32>
    %58 = vector.extract_strided_slice %54 {offsets = [10, 0], sizes = [1, 128], strides = [1, 1]} : vector<25x128xf32> to vector<1x128xf32>
    %59 = vector.broadcast %58 : vector<1x128xf32> to vector<16x128xf32>
    %60 = arith.mulf %55, %59 : vector<16x128xf32>
    %61 = vector.extract_strided_slice %54 {offsets = [15, 0], sizes = [1, 128], strides = [1, 1]} : vector<25x128xf32> to vector<1x128xf32>
    %62 = vector.broadcast %61 : vector<1x128xf32> to vector<16x128xf32>
    %63 = arith.mulf %56, %62 : vector<16x128xf32>
    %64 = arith.addf %60, %63 : vector<16x128xf32>
    %65 = vector.extract_strided_slice %54 {offsets = [20, 0], sizes = [1, 128], strides = [1, 1]} : vector<25x128xf32> to vector<1x128xf32>
    %66 = vector.broadcast %65 : vector<1x128xf32> to vector<16x128xf32>
    %67 = arith.mulf %57, %66 : vector<16x128xf32>
    %68 = arith.addf %64, %67 : vector<16x128xf32>
    %c2_i32 = arith.constant 2 : i32
    %69 = tpu.dynamic_rotate %68 by %c2_i32 dim 0 : vector<16x128xf32>, i32 -> vector<16x128xf32>
    %70 = vector.extract_strided_slice %54 {offsets = [11, 0], sizes = [1, 128], strides = [1, 1]} : vector<25x128xf32> to vector<1x128xf32>
    %71 = vector.broadcast %70 : vector<1x128xf32> to vector<16x128xf32>
    %72 = arith.mulf %55, %71 : vector<16x128xf32>
    %73 = vector.extract_strided_slice %54 {offsets = [16, 0], sizes = [1, 128], strides = [1, 1]} : vector<25x128xf32> to vector<1x128xf32>
    %74 = vector.broadcast %73 : vector<1x128xf32> to vector<16x128xf32>
    %75 = arith.mulf %56, %74 : vector<16x128xf32>
    %76 = arith.addf %72, %75 : vector<16x128xf32>
    %77 = vector.extract_strided_slice %54 {offsets = [21, 0], sizes = [1, 128], strides = [1, 1]} : vector<25x128xf32> to vector<1x128xf32>
    %78 = vector.broadcast %77 : vector<1x128xf32> to vector<16x128xf32>
    %79 = arith.mulf %57, %78 : vector<16x128xf32>
    %80 = arith.addf %76, %79 : vector<16x128xf32>
    %c1_i32_26 = arith.constant 1 : i32
    %81 = tpu.dynamic_rotate %80 by %c1_i32_26 dim 0 : vector<16x128xf32>, i32 -> vector<16x128xf32>
    %82 = arith.addf %69, %81 : vector<16x128xf32>
    %83 = vector.extract_strided_slice %54 {offsets = [12, 0], sizes = [1, 128], strides = [1, 1]} : vector<25x128xf32> to vector<1x128xf32>
    %84 = vector.broadcast %83 : vector<1x128xf32> to vector<16x128xf32>
    %85 = arith.mulf %55, %84 : vector<16x128xf32>
    %86 = vector.extract_strided_slice %54 {offsets = [17, 0], sizes = [1, 128], strides = [1, 1]} : vector<25x128xf32> to vector<1x128xf32>
    %87 = vector.broadcast %86 : vector<1x128xf32> to vector<16x128xf32>
    %88 = arith.mulf %56, %87 : vector<16x128xf32>
    %89 = arith.addf %85, %88 : vector<16x128xf32>
    %90 = vector.extract_strided_slice %54 {offsets = [22, 0], sizes = [1, 128], strides = [1, 1]} : vector<25x128xf32> to vector<1x128xf32>
    %91 = vector.broadcast %90 : vector<1x128xf32> to vector<16x128xf32>
    %92 = arith.mulf %57, %91 : vector<16x128xf32>
    %93 = arith.addf %89, %92 : vector<16x128xf32>
    %94 = arith.addf %82, %93 : vector<16x128xf32>
    %95 = vector.extract_strided_slice %54 {offsets = [13, 0], sizes = [1, 128], strides = [1, 1]} : vector<25x128xf32> to vector<1x128xf32>
    %96 = vector.broadcast %95 : vector<1x128xf32> to vector<16x128xf32>
    %97 = arith.mulf %55, %96 : vector<16x128xf32>
    %98 = vector.extract_strided_slice %54 {offsets = [18, 0], sizes = [1, 128], strides = [1, 1]} : vector<25x128xf32> to vector<1x128xf32>
    %99 = vector.broadcast %98 : vector<1x128xf32> to vector<16x128xf32>
    %100 = arith.mulf %56, %99 : vector<16x128xf32>
    %101 = arith.addf %97, %100 : vector<16x128xf32>
    %102 = vector.extract_strided_slice %54 {offsets = [23, 0], sizes = [1, 128], strides = [1, 1]} : vector<25x128xf32> to vector<1x128xf32>
    %103 = vector.broadcast %102 : vector<1x128xf32> to vector<16x128xf32>
    %104 = arith.mulf %57, %103 : vector<16x128xf32>
    %105 = arith.addf %101, %104 : vector<16x128xf32>
    %c15_i32 = arith.constant 15 : i32
    %106 = tpu.dynamic_rotate %105 by %c15_i32 dim 0 : vector<16x128xf32>, i32 -> vector<16x128xf32>
    %107 = arith.addf %94, %106 : vector<16x128xf32>
    %108 = vector.extract_strided_slice %54 {offsets = [14, 0], sizes = [1, 128], strides = [1, 1]} : vector<25x128xf32> to vector<1x128xf32>
    %109 = vector.broadcast %108 : vector<1x128xf32> to vector<16x128xf32>
    %110 = arith.mulf %55, %109 : vector<16x128xf32>
    %111 = vector.extract_strided_slice %54 {offsets = [19, 0], sizes = [1, 128], strides = [1, 1]} : vector<25x128xf32> to vector<1x128xf32>
    %112 = vector.broadcast %111 : vector<1x128xf32> to vector<16x128xf32>
    %113 = arith.mulf %56, %112 : vector<16x128xf32>
    %114 = arith.addf %110, %113 : vector<16x128xf32>
    %115 = vector.extract_strided_slice %54 {offsets = [24, 0], sizes = [1, 128], strides = [1, 1]} : vector<25x128xf32> to vector<1x128xf32>
    %116 = vector.broadcast %115 : vector<1x128xf32> to vector<16x128xf32>
    %117 = arith.mulf %57, %116 : vector<16x128xf32>
    %118 = arith.addf %114, %117 : vector<16x128xf32>
    %c14_i32_27 = arith.constant 14 : i32
    %119 = tpu.dynamic_rotate %118 by %c14_i32_27 dim 0 : vector<16x128xf32>, i32 -> vector<16x128xf32>
    %120 = arith.addf %107, %119 : vector<16x128xf32>
    %121 = vector.extract_strided_slice %120 {offsets = [0, 0], sizes = [14, 128], strides = [1, 1]} : vector<16x128xf32> to vector<14x128xf32>
    %c0_28 = arith.constant 0 : index
    %c0_29 = arith.constant 0 : index
    %c0_30 = arith.constant 0 : index
    %122 = vector.load %arg6[%c0_28, %c0_29, %c0_30] : memref<14x14x128xf32, #tpu.memory_space<vmem>>, vector<1x14x128xf32>
    %123 = vector.shape_cast %122 : vector<1x14x128xf32> to vector<14x128xf32>
    %124 = vector.shape_cast %121 : vector<14x128xf32> to vector<1x14x128xf32>
    tpu.vector_store %arg6[%c0_28, %c0_29, %c0_30], %124 {strides = array<i32>} : memref<14x14x128xf32, #tpu.memory_space<vmem>>, vector<1x14x128xf32>,
    %c0_31 = arith.constant 0 : index
    %c0_32 = arith.constant 0 : index
    %125 = vector.load %arg7[%c0_31, %c0_32] : memref<224x128xf32, #tpu.memory_space<vmem>>, vector<16x128xf32>
    %c16_33 = arith.constant 16 : index
    %c0_34 = arith.constant 0 : index
    %126 = vector.load %arg7[%c16_33, %c0_34] : memref<224x128xf32, #tpu.memory_space<vmem>>, vector<16x128xf32>
    %c32_35 = arith.constant 32 : index
    %c0_36 = arith.constant 0 : index
    %127 = vector.load %arg7[%c32_35, %c0_36] : memref<224x128xf32, #tpu.memory_space<vmem>>, vector<16x128xf32>
    %c48 = arith.constant 48 : index
    %c0_37 = arith.constant 0 : index
    %128 = vector.load %arg7[%c48, %c0_37] : memref<224x128xf32, #tpu.memory_space<vmem>>, vector<16x128xf32>
    %129 = vector.extract_strided_slice %54 {offsets = [5, 0], sizes = [1, 128], strides = [1, 1]} : vector<25x128xf32> to vector<1x128xf32>
    %130 = vector.broadcast %129 : vector<1x128xf32> to vector<16x128xf32>
    %131 = arith.mulf %125, %130 : vector<16x128xf32>
    %132 = vector.extract_strided_slice %54 {offsets = [10, 0], sizes = [1, 128], strides = [1, 1]} : vector<25x128xf32> to vector<1x128xf32>
    %133 = vector.broadcast %132 : vector<1x128xf32> to vector<16x128xf32>
    %134 = arith.mulf %126, %133 : vector<16x128xf32>
    %135 = arith.addf %131, %134 : vector<16x128xf32>
    %136 = vector.extract_strided_slice %54 {offsets = [15, 0], sizes = [1, 128], strides = [1, 1]} : vector<25x128xf32> to vector<1x128xf32>
    %137 = vector.broadcast %136 : vector<1x128xf32> to vector<16x128xf32>
    %138 = arith.mulf %127, %137 : vector<16x128xf32>
    %139 = arith.addf %135, %138 : vector<16x128xf32>
    %140 = vector.extract_strided_slice %54 {offsets = [20, 0], sizes = [1, 128], strides = [1, 1]} : vector<25x128xf32> to vector<1x128xf32>
    %141 = vector.broadcast %140 : vector<1x128xf32> to vector<16x128xf32>
    %142 = arith.mulf %128, %141 : vector<16x128xf32>
    %143 = arith.addf %139, %142 : vector<16x128xf32>
    %c2_i32_38 = arith.constant 2 : i32
    %144 = tpu.dynamic_rotate %143 by %c2_i32_38 dim 0 : vector<16x128xf32>, i32 -> vector<16x128xf32>
    %145 = vector.extract_strided_slice %54 {offsets = [6, 0], sizes = [1, 128], strides = [1, 1]} : vector<25x128xf32> to vector<1x128xf32>
    %146 = vector.broadcast %145 : vector<1x128xf32> to vector<16x128xf32>
    %147 = arith.mulf %125, %146 : vector<16x128xf32>
    %148 = vector.extract_strided_slice %54 {offsets = [11, 0], sizes = [1, 128], strides = [1, 1]} : vector<25x128xf32> to vector<1x128xf32>
    %149 = vector.broadcast %148 : vector<1x128xf32> to vector<16x128xf32>
    %150 = arith.mulf %126, %149 : vector<16x128xf32>
    %151 = arith.addf %147, %150 : vector<16x128xf32>
    %152 = vector.extract_strided_slice %54 {offsets = [16, 0], sizes = [1, 128], strides = [1, 1]} : vector<25x128xf32> to vector<1x128xf32>
    %153 = vector.broadcast %152 : vector<1x128xf32> to vector<16x128xf32>
    %154 = arith.mulf %127, %153 : vector<16x128xf32>
    %155 = arith.addf %151, %154 : vector<16x128xf32>
    %156 = vector.extract_strided_slice %54 {offsets = [21, 0], sizes = [1, 128], strides = [1, 1]} : vector<25x128xf32> to vector<1x128xf32>
    %157 = vector.broadcast %156 : vector<1x128xf32> to vector<16x128xf32>
    %158 = arith.mulf %128, %157 : vector<16x128xf32>
    %159 = arith.addf %155, %158 : vector<16x128xf32>
    %c1_i32_39 = arith.constant 1 : i32
    %160 = tpu.dynamic_rotate %159 by %c1_i32_39 dim 0 : vector<16x128xf32>, i32 -> vector<16x128xf32>
    %161 = arith.addf %144, %160 : vector<16x128xf32>
    %162 = vector.extract_strided_slice %54 {offsets = [7, 0], sizes = [1, 128], strides = [1, 1]} : vector<25x128xf32> to vector<1x128xf32>
    %163 = vector.broadcast %162 : vector<1x128xf32> to vector<16x128xf32>
    %164 = arith.mulf %125, %163 : vector<16x128xf32>
    %165 = vector.extract_strided_slice %54 {offsets = [12, 0], sizes = [1, 128], strides = [1, 1]} : vector<25x128xf32> to vector<1x128xf32>
    %166 = vector.broadcast %165 : vector<1x128xf32> to vector<16x128xf32>
    %167 = arith.mulf %126, %166 : vector<16x128xf32>
    %168 = arith.addf %164, %167 : vector<16x128xf32>
    %169 = vector.extract_strided_slice %54 {offsets = [17, 0], sizes = [1, 128], strides = [1, 1]} : vector<25x128xf32> to vector<1x128xf32>
    %170 = vector.broadcast %169 : vector<1x128xf32> to vector<16x128xf32>
    %171 = arith.mulf %127, %170 : vector<16x128xf32>
    %172 = arith.addf %168, %171 : vector<16x128xf32>
    %173 = vector.extract_strided_slice %54 {offsets = [22, 0], sizes = [1, 128], strides = [1, 1]} : vector<25x128xf32> to vector<1x128xf32>
    %174 = vector.broadcast %173 : vector<1x128xf32> to vector<16x128xf32>
    %175 = arith.mulf %128, %174 : vector<16x128xf32>
    %176 = arith.addf %172, %175 : vector<16x128xf32>
    %177 = arith.addf %161, %176 : vector<16x128xf32>
    %178 = vector.extract_strided_slice %54 {offsets = [8, 0], sizes = [1, 128], strides = [1, 1]} : vector<25x128xf32> to vector<1x128xf32>
    %179 = vector.broadcast %178 : vector<1x128xf32> to vector<16x128xf32>
    %180 = arith.mulf %125, %179 : vector<16x128xf32>
    %181 = vector.extract_strided_slice %54 {offsets = [13, 0], sizes = [1, 128], strides = [1, 1]} : vector<25x128xf32> to vector<1x128xf32>
    %182 = vector.broadcast %181 : vector<1x128xf32> to vector<16x128xf32>
    %183 = arith.mulf %126, %182 : vector<16x128xf32>
    %184 = arith.addf %180, %183 : vector<16x128xf32>
    %185 = vector.extract_strided_slice %54 {offsets = [18, 0], sizes = [1, 128], strides = [1, 1]} : vector<25x128xf32> to vector<1x128xf32>
    %186 = vector.broadcast %185 : vector<1x128xf32> to vector<16x128xf32>
    %187 = arith.mulf %127, %186 : vector<16x128xf32>
    %188 = arith.addf %184, %187 : vector<16x128xf32>
    %189 = vector.extract_strided_slice %54 {offsets = [23, 0], sizes = [1, 128], strides = [1, 1]} : vector<25x128xf32> to vector<1x128xf32>
    %190 = vector.broadcast %189 : vector<1x128xf32> to vector<16x128xf32>
    %191 = arith.mulf %128, %190 : vector<16x128xf32>
    %192 = arith.addf %188, %191 : vector<16x128xf32>
    %c15_i32_40 = arith.constant 15 : i32
    %193 = tpu.dynamic_rotate %192 by %c15_i32_40 dim 0 : vector<16x128xf32>, i32 -> vector<16x128xf32>
    %194 = arith.addf %177, %193 : vector<16x128xf32>
    %195 = vector.extract_strided_slice %54 {offsets = [9, 0], sizes = [1, 128], strides = [1, 1]} : vector<25x128xf32> to vector<1x128xf32>
    %196 = vector.broadcast %195 : vector<1x128xf32> to vector<16x128xf32>
    %197 = arith.mulf %125, %196 : vector<16x128xf32>
    %198 = vector.extract_strided_slice %54 {offsets = [14, 0], sizes = [1, 128], strides = [1, 1]} : vector<25x128xf32> to vector<1x128xf32>
    %199 = vector.broadcast %198 : vector<1x128xf32> to vector<16x128xf32>
    %200 = arith.mulf %126, %199 : vector<16x128xf32>
    %201 = arith.addf %197, %200 : vector<16x128xf32>
    %202 = vector.extract_strided_slice %54 {offsets = [19, 0], sizes = [1, 128], strides = [1, 1]} : vector<25x128xf32> to vector<1x128xf32>
    %203 = vector.broadcast %202 : vector<1x128xf32> to vector<16x128xf32>
    %204 = arith.mulf %127, %203 : vector<16x128xf32>
    %205 = arith.addf %201, %204 : vector<16x128xf32>
    %206 = vector.extract_strided_slice %54 {offsets = [24, 0], sizes = [1, 128], strides = [1, 1]} : vector<25x128xf32> to vector<1x128xf32>
    %207 = vector.broadcast %206 : vector<1x128xf32> to vector<16x128xf32>
    %208 = arith.mulf %128, %207 : vector<16x128xf32>
    %209 = arith.addf %205, %208 : vector<16x128xf32>
    %c14_i32_41 = arith.constant 14 : i32
    %210 = tpu.dynamic_rotate %209 by %c14_i32_41 dim 0 : vector<16x128xf32>, i32 -> vector<16x128xf32>
    %211 = arith.addf %194, %210 : vector<16x128xf32>
    %212 = vector.extract_strided_slice %211 {offsets = [0, 0], sizes = [14, 128], strides = [1, 1]} : vector<16x128xf32> to vector<14x128xf32>
    %c1 = arith.constant 1 : index
    %c0_42 = arith.constant 0 : index
    %c0_43 = arith.constant 0 : index
    %213 = vector.load %arg6[%c1, %c0_42, %c0_43] : memref<14x14x128xf32, #tpu.memory_space<vmem>>, vector<1x14x128xf32>
    %214 = vector.shape_cast %213 : vector<1x14x128xf32> to vector<14x128xf32>
    %215 = vector.shape_cast %212 : vector<14x128xf32> to vector<1x14x128xf32>
    tpu.vector_store %arg6[%c1, %c0_42, %c0_43], %215 {strides = array<i32>} : memref<14x14x128xf32, #tpu.memory_space<vmem>>, vector<1x14x128xf32>,
    %c0_44 = arith.constant 0 : index
    %c0_45 = arith.constant 0 : index
    %216 = vector.load %arg7[%c0_44, %c0_45] : memref<224x128xf32, #tpu.memory_space<vmem>>, vector<16x128xf32>
    %c16_46 = arith.constant 16 : index
    %c0_47 = arith.constant 0 : index
    %217 = vector.load %arg7[%c16_46, %c0_47] : memref<224x128xf32, #tpu.memory_space<vmem>>, vector<16x128xf32>
    %c32_48 = arith.constant 32 : index
    %c0_49 = arith.constant 0 : index
    %218 = vector.load %arg7[%c32_48, %c0_49] : memref<224x128xf32, #tpu.memory_space<vmem>>, vector<16x128xf32>
    %c48_50 = arith.constant 48 : index
    %c0_51 = arith.constant 0 : index
    %219 = vector.load %arg7[%c48_50, %c0_51] : memref<224x128xf32, #tpu.memory_space<vmem>>, vector<16x128xf32>
    %c64 = arith.constant 64 : index
    %c0_52 = arith.constant 0 : index
    %220 = vector.load %arg7[%c64, %c0_52] : memref<224x128xf32, #tpu.memory_space<vmem>>, vector<16x128xf32>
    %221 = vector.extract_strided_slice %54 {offsets = [0, 0], sizes = [1, 128], strides = [1, 1]} : vector<25x128xf32> to vector<1x128xf32>
    %222 = vector.broadcast %221 : vector<1x128xf32> to vector<16x128xf32>
    %223 = arith.mulf %216, %222 : vector<16x128xf32>
    %224 = vector.extract_strided_slice %54 {offsets = [5, 0], sizes = [1, 128], strides = [1, 1]} : vector<25x128xf32> to vector<1x128xf32>
    %225 = vector.broadcast %224 : vector<1x128xf32> to vector<16x128xf32>
    %226 = arith.mulf %217, %225 : vector<16x128xf32>
    %227 = arith.addf %223, %226 : vector<16x128xf32>
    %228 = vector.extract_strided_slice %54 {offsets = [10, 0], sizes = [1, 128], strides = [1, 1]} : vector<25x128xf32> to vector<1x128xf32>
    %229 = vector.broadcast %228 : vector<1x128xf32> to vector<16x128xf32>
    %230 = arith.mulf %218, %229 : vector<16x128xf32>
    %231 = arith.addf %227, %230 : vector<16x128xf32>
    %232 = vector.extract_strided_slice %54 {offsets = [15, 0], sizes = [1, 128], strides = [1, 1]} : vector<25x128xf32> to vector<1x128xf32>
    %233 = vector.broadcast %232 : vector<1x128xf32> to vector<16x128xf32>
    %234 = arith.mulf %219, %233 : vector<16x128xf32>
    %235 = arith.addf %231, %234 : vector<16x128xf32>
    %236 = vector.extract_strided_slice %54 {offsets = [20, 0], sizes = [1, 128], strides = [1, 1]} : vector<25x128xf32> to vector<1x128xf32>
    %237 = vector.broadcast %236 : vector<1x128xf32> to vector<16x128xf32>
    %238 = arith.mulf %220, %237 : vector<16x128xf32>
    %239 = arith.addf %235, %238 : vector<16x128xf32>
    %c2_i32_53 = arith.constant 2 : i32
    %240 = tpu.dynamic_rotate %239 by %c2_i32_53 dim 0 : vector<16x128xf32>, i32 -> vector<16x128xf32>
    %241 = vector.extract_strided_slice %54 {offsets = [1, 0], sizes = [1, 128], strides = [1, 1]} : vector<25x128xf32> to vector<1x128xf32>
    %242 = vector.broadcast %241 : vector<1x128xf32> to vector<16x128xf32>
    %243 = arith.mulf %216, %242 : vector<16x128xf32>
    %244 = vector.extract_strided_slice %54 {offsets = [6, 0], sizes = [1, 128], strides = [1, 1]} : vector<25x128xf32> to vector<1x128xf32>
    %245 = vector.broadcast %244 : vector<1x128xf32> to vector<16x128xf32>
    %246 = arith.mulf %217, %245 : vector<16x128xf32>
    %247 = arith.addf %243, %246 : vector<16x128xf32>
    %248 = vector.extract_strided_slice %54 {offsets = [11, 0], sizes = [1, 128], strides = [1, 1]} : vector<25x128xf32> to vector<1x128xf32>
    %249 = vector.broadcast %248 : vector<1x128xf32> to vector<16x128xf32>
    %250 = arith.mulf %218, %249 : vector<16x128xf32>
    %251 = arith.addf %247, %250 : vector<16x128xf32>
    %252 = vector.extract_strided_slice %54 {offsets = [16, 0], sizes = [1, 128], strides = [1, 1]} : vector<25x128xf32> to vector<1x128xf32>
    %253 = vector.broadcast %252 : vector<1x128xf32> to vector<16x128xf32>
    %254 = arith.mulf %219, %253 : vector<16x128xf32>
    %255 = arith.addf %251, %254 : vector<16x128xf32>
    %256 = vector.extract_strided_slice %54 {offsets = [21, 0], sizes = [1, 128], strides = [1, 1]} : vector<25x128xf32> to vector<1x128xf32>
    %257 = vector.broadcast %256 : vector<1x128xf32> to vector<16x128xf32>
    %258 = arith.mulf %220, %257 : vector<16x128xf32>
    %259 = arith.addf %255, %258 : vector<16x128xf32>
    %c1_i32_54 = arith.constant 1 : i32
    %260 = tpu.dynamic_rotate %259 by %c1_i32_54 dim 0 : vector<16x128xf32>, i32 -> vector<16x128xf32>
    %261 = arith.addf %240, %260 : vector<16x128xf32>
    %262 = vector.extract_strided_slice %54 {offsets = [2, 0], sizes = [1, 128], strides = [1, 1]} : vector<25x128xf32> to vector<1x128xf32>
    %263 = vector.broadcast %262 : vector<1x128xf32> to vector<16x128xf32>
    %264 = arith.mulf %216, %263 : vector<16x128xf32>
    %265 = vector.extract_strided_slice %54 {offsets = [7, 0], sizes = [1, 128], strides = [1, 1]} : vector<25x128xf32> to vector<1x128xf32>
    %266 = vector.broadcast %265 : vector<1x128xf32> to vector<16x128xf32>
    %267 = arith.mulf %217, %266 : vector<16x128xf32>
    %268 = arith.addf %264, %267 : vector<16x128xf32>
    %269 = vector.extract_strided_slice %54 {offsets = [12, 0], sizes = [1, 128], strides = [1, 1]} : vector<25x128xf32> to vector<1x128xf32>
    %270 = vector.broadcast %269 : vector<1x128xf32> to vector<16x128xf32>
    %271 = arith.mulf %218, %270 : vector<16x128xf32>
    %272 = arith.addf %268, %271 : vector<16x128xf32>
    %273 = vector.extract_strided_slice %54 {offsets = [17, 0], sizes = [1, 128], strides = [1, 1]} : vector<25x128xf32> to vector<1x128xf32>
    %274 = vector.broadcast %273 : vector<1x128xf32> to vector<16x128xf32>
    %275 = arith.mulf %219, %274 : vector<16x128xf32>
    %276 = arith.addf %272, %275 : vector<16x128xf32>
    %277 = vector.extract_strided_slice %54 {offsets = [22, 0], sizes = [1, 128], strides = [1, 1]} : vector<25x128xf32> to vector<1x128xf32>
    %278 = vector.broadcast %277 : vector<1x128xf32> to vector<16x128xf32>
    %279 = arith.mulf %220, %278 : vector<16x128xf32>
    %280 = arith.addf %276, %279 : vector<16x128xf32>
    %281 = arith.addf %261, %280 : vector<16x128xf32>
    %282 = vector.extract_strided_slice %54 {offsets = [3, 0], sizes = [1, 128], strides = [1, 1]} : vector<25x128xf32> to vector<1x128xf32>
    %283 = vector.broadcast %282 : vector<1x128xf32> to vector<16x128xf32>
    %284 = arith.mulf %216, %283 : vector<16x128xf32>
    %285 = vector.extract_strided_slice %54 {offsets = [8, 0], sizes = [1, 128], strides = [1, 1]} : vector<25x128xf32> to vector<1x128xf32>
    %286 = vector.broadcast %285 : vector<1x128xf32> to vector<16x128xf32>
    %287 = arith.mulf %217, %286 : vector<16x128xf32>
    %288 = arith.addf %284, %287 : vector<16x128xf32>
    %289 = vector.extract_strided_slice %54 {offsets = [13, 0], sizes = [1, 128], strides = [1, 1]} : vector<25x128xf32> to vector<1x128xf32>
    %290 = vector.broadcast %289 : vector<1x128xf32> to vector<16x128xf32>
    %291 = arith.mulf %218, %290 : vector<16x128xf32>
    %292 = arith.addf %288, %291 : vector<16x128xf32>
    %293 = vector.extract_strided_slice %54 {offsets = [18, 0], sizes = [1, 128], strides = [1, 1]} : vector<25x128xf32> to vector<1x128xf32>
    %294 = vector.broadcast %293 : vector<1x128xf32> to vector<16x128xf32>
    %295 = arith.mulf %219, %294 : vector<16x128xf32>
    %296 = arith.addf %292, %295 : vector<16x128xf32>
    %297 = vector.extract_strided_slice %54 {offsets = [23, 0], sizes = [1, 128], strides = [1, 1]} : vector<25x128xf32> to vector<1x128xf32>
    %298 = vector.broadcast %297 : vector<1x128xf32> to vector<16x128xf32>
    %299 = arith.mulf %220, %298 : vector<16x128xf32>
    %300 = arith.addf %296, %299 : vector<16x128xf32>
    %c15_i32_55 = arith.constant 15 : i32
    %301 = tpu.dynamic_rotate %300 by %c15_i32_55 dim 0 : vector<16x128xf32>, i32 -> vector<16x128xf32>
    %302 = arith.addf %281, %301 : vector<16x128xf32>
    %303 = vector.extract_strided_slice %54 {offsets = [4, 0], sizes = [1, 128], strides = [1, 1]} : vector<25x128xf32> to vector<1x128xf32>
    %304 = vector.broadcast %303 : vector<1x128xf32> to vector<16x128xf32>
    %305 = arith.mulf %216, %304 : vector<16x128xf32>
    %306 = vector.extract_strided_slice %54 {offsets = [9, 0], sizes = [1, 128], strides = [1, 1]} : vector<25x128xf32> to vector<1x128xf32>
    %307 = vector.broadcast %306 : vector<1x128xf32> to vector<16x128xf32>
    %308 = arith.mulf %217, %307 : vector<16x128xf32>
    %309 = arith.addf %305, %308 : vector<16x128xf32>
    %310 = vector.extract_strided_slice %54 {offsets = [14, 0], sizes = [1, 128], strides = [1, 1]} : vector<25x128xf32> to vector<1x128xf32>
    %311 = vector.broadcast %310 : vector<1x128xf32> to vector<16x128xf32>
    %312 = arith.mulf %218, %311 : vector<16x128xf32>
    %313 = arith.addf %309, %312 : vector<16x128xf32>
    %314 = vector.extract_strided_slice %54 {offsets = [19, 0], sizes = [1, 128], strides = [1, 1]} : vector<25x128xf32> to vector<1x128xf32>
    %315 = vector.broadcast %314 : vector<1x128xf32> to vector<16x128xf32>
    %316 = arith.mulf %219, %315 : vector<16x128xf32>
    %317 = arith.addf %313, %316 : vector<16x128xf32>
    %318 = vector.extract_strided_slice %54 {offsets = [24, 0], sizes = [1, 128], strides = [1, 1]} : vector<25x128xf32> to vector<1x128xf32>
    %319 = vector.broadcast %318 : vector<1x128xf32> to vector<16x128xf32>
    %320 = arith.mulf %220, %319 : vector<16x128xf32>
    %321 = arith.addf %317, %320 : vector<16x128xf32>
    %c14_i32_56 = arith.constant 14 : i32
    %322 = tpu.dynamic_rotate %321 by %c14_i32_56 dim 0 : vector<16x128xf32>, i32 -> vector<16x128xf32>
    %323 = arith.addf %302, %322 : vector<16x128xf32>
    %324 = vector.extract_strided_slice %323 {offsets = [0, 0], sizes = [14, 128], strides = [1, 1]} : vector<16x128xf32> to vector<14x128xf32>
    %c2 = arith.constant 2 : index
    %c0_57 = arith.constant 0 : index
    %c0_58 = arith.constant 0 : index
    %325 = vector.load %arg6[%c2, %c0_57, %c0_58] : memref<14x14x128xf32, #tpu.memory_space<vmem>>, vector<1x14x128xf32>
    %326 = vector.shape_cast %325 : vector<1x14x128xf32> to vector<14x128xf32>
    %327 = vector.shape_cast %324 : vector<14x128xf32> to vector<1x14x128xf32>
    tpu.vector_store %arg6[%c2, %c0_57, %c0_58], %327 {strides = array<i32>} : memref<14x14x128xf32, #tpu.memory_space<vmem>>, vector<1x14x128xf32>,
    %c16_59 = arith.constant 16 : index
    %c0_60 = arith.constant 0 : index
    %328 = vector.load %arg7[%c16_59, %c0_60] : memref<224x128xf32, #tpu.memory_space<vmem>>, vector<16x128xf32>
    %c32_61 = arith.constant 32 : index
    %c0_62 = arith.constant 0 : index
    %329 = vector.load %arg7[%c32_61, %c0_62] : memref<224x128xf32, #tpu.memory_space<vmem>>, vector<16x128xf32>
    %c48_63 = arith.constant 48 : index
    %c0_64 = arith.constant 0 : index
    %330 = vector.load %arg7[%c48_63, %c0_64] : memref<224x128xf32, #tpu.memory_space<vmem>>, vector<16x128xf32>
    %c64_65 = arith.constant 64 : index
    %c0_66 = arith.constant 0 : index
    %331 = vector.load %arg7[%c64_65, %c0_66] : memref<224x128xf32, #tpu.memory_space<vmem>>, vector<16x128xf32>
    %c80 = arith.constant 80 : index
    %c0_67 = arith.constant 0 : index
    %332 = vector.load %arg7[%c80, %c0_67] : memref<224x128xf32, #tpu.memory_space<vmem>>, vector<16x128xf32>
    %333 = vector.extract_strided_slice %54 {offsets = [0, 0], sizes = [1, 128], strides = [1, 1]} : vector<25x128xf32> to vector<1x128xf32>
    %334 = vector.broadcast %333 : vector<1x128xf32> to vector<16x128xf32>
    %335 = arith.mulf %328, %334 : vector<16x128xf32>
    %336 = vector.extract_strided_slice %54 {offsets = [5, 0], sizes = [1, 128], strides = [1, 1]} : vector<25x128xf32> to vector<1x128xf32>
    %337 = vector.broadcast %336 : vector<1x128xf32> to vector<16x128xf32>
    %338 = arith.mulf %329, %337 : vector<16x128xf32>
    %339 = arith.addf %335, %338 : vector<16x128xf32>
    %340 = vector.extract_strided_slice %54 {offsets = [10, 0], sizes = [1, 128], strides = [1, 1]} : vector<25x128xf32> to vector<1x128xf32>
    %341 = vector.broadcast %340 : vector<1x128xf32> to vector<16x128xf32>
    %342 = arith.mulf %330, %341 : vector<16x128xf32>
    %343 = arith.addf %339, %342 : vector<16x128xf32>
    %344 = vector.extract_strided_slice %54 {offsets = [15, 0], sizes = [1, 128], strides = [1, 1]} : vector<25x128xf32> to vector<1x128xf32>
    %345 = vector.broadcast %344 : vector<1x128xf32> to vector<16x128xf32>
    %346 = arith.mulf %331, %345 : vector<16x128xf32>
    %347 = arith.addf %343, %346 : vector<16x128xf32>
    %348 = vector.extract_strided_slice %54 {offsets = [20, 0], sizes = [1, 128], strides = [1, 1]} : vector<25x128xf32> to vector<1x128xf32>
    %349 = vector.broadcast %348 : vector<1x128xf32> to vector<16x128xf32>
    %350 = arith.mulf %332, %349 : vector<16x128xf32>
    %351 = arith.addf %347, %350 : vector<16x128xf32>
    %c2_i32_68 = arith.constant 2 : i32
    %352 = tpu.dynamic_rotate %351 by %c2_i32_68 dim 0 : vector<16x128xf32>, i32 -> vector<16x128xf32>
    %353 = vector.extract_strided_slice %54 {offsets = [1, 0], sizes = [1, 128], strides = [1, 1]} : vector<25x128xf32> to vector<1x128xf32>
    %354 = vector.broadcast %353 : vector<1x128xf32> to vector<16x128xf32>
    %355 = arith.mulf %328, %354 : vector<16x128xf32>
    %356 = vector.extract_strided_slice %54 {offsets = [6, 0], sizes = [1, 128], strides = [1, 1]} : vector<25x128xf32> to vector<1x128xf32>
    %357 = vector.broadcast %356 : vector<1x128xf32> to vector<16x128xf32>
    %358 = arith.mulf %329, %357 : vector<16x128xf32>
    %359 = arith.addf %355, %358 : vector<16x128xf32>
    %360 = vector.extract_strided_slice %54 {offsets = [11, 0], sizes = [1, 128], strides = [1, 1]} : vector<25x128xf32> to vector<1x128xf32>
    %361 = vector.broadcast %360 : vector<1x128xf32> to vector<16x128xf32>
    %362 = arith.mulf %330, %361 : vector<16x128xf32>
    %363 = arith.addf %359, %362 : vector<16x128xf32>
    %364 = vector.extract_strided_slice %54 {offsets = [16, 0], sizes = [1, 128], strides = [1, 1]} : vector<25x128xf32> to vector<1x128xf32>
    %365 = vector.broadcast %364 : vector<1x128xf32> to vector<16x128xf32>
    %366 = arith.mulf %331, %365 : vector<16x128xf32>
    %367 = arith.addf %363, %366 : vector<16x128xf32>
    %368 = vector.extract_strided_slice %54 {offsets = [21, 0], sizes = [1, 128], strides = [1, 1]} : vector<25x128xf32> to vector<1x128xf32>
    %369 = vector.broadcast %368 : vector<1x128xf32> to vector<16x128xf32>
    %370 = arith.mulf %332, %369 : vector<16x128xf32>
    %371 = arith.addf %367, %370 : vector<16x128xf32>
    %c1_i32_69 = arith.constant 1 : i32
    %372 = tpu.dynamic_rotate %371 by %c1_i32_69 dim 0 : vector<16x128xf32>, i32 -> vector<16x128xf32>
    %373 = arith.addf %352, %372 : vector<16x128xf32>
    %374 = vector.extract_strided_slice %54 {offsets = [2, 0], sizes = [1, 128], strides = [1, 1]} : vector<25x128xf32> to vector<1x128xf32>
    %375 = vector.broadcast %374 : vector<1x128xf32> to vector<16x128xf32>
    %376 = arith.mulf %328, %375 : vector<16x128xf32>
    %377 = vector.extract_strided_slice %54 {offsets = [7, 0], sizes = [1, 128], strides = [1, 1]} : vector<25x128xf32> to vector<1x128xf32>
    %378 = vector.broadcast %377 : vector<1x128xf32> to vector<16x128xf32>
    %379 = arith.mulf %329, %378 : vector<16x128xf32>
    %380 = arith.addf %376, %379 : vector<16x128xf32>
    %381 = vector.extract_strided_slice %54 {offsets = [12, 0], sizes = [1, 128], strides = [1, 1]} : vector<25x128xf32> to vector<1x128xf32>
    %382 = vector.broadcast %381 : vector<1x128xf32> to vector<16x128xf32>
    %383 = arith.mulf %330, %382 : vector<16x128xf32>
    %384 = arith.addf %380, %383 : vector<16x128xf32>
    %385 = vector.extract_strided_slice %54 {offsets = [17, 0], sizes = [1, 128], strides = [1, 1]} : vector<25x128xf32> to vector<1x128xf32>
    %386 = vector.broadcast %385 : vector<1x128xf32> to vector<16x128xf32>
    %387 = arith.mulf %331, %386 : vector<16x128xf32>
    %388 = arith.addf %384, %387 : vector<16x128xf32>
    %389 = vector.extract_strided_slice %54 {offsets = [22, 0], sizes = [1, 128], strides = [1, 1]} : vector<25x128xf32> to vector<1x128xf32>
    %390 = vector.broadcast %389 : vector<1x128xf32> to vector<16x128xf32>
    %391 = arith.mulf %332, %390 : vector<16x128xf32>
    %392 = arith.addf %388, %391 : vector<16x128xf32>
    %393 = arith.addf %373, %392 : vector<16x128xf32>
    %394 = vector.extract_strided_slice %54 {offsets = [3, 0], sizes = [1, 128], strides = [1, 1]} : vector<25x128xf32> to vector<1x128xf32>
    %395 = vector.broadcast %394 : vector<1x128xf32> to vector<16x128xf32>
    %396 = arith.mulf %328, %395 : vector<16x128xf32>
    %397 = vector.extract_strided_slice %54 {offsets = [8, 0], sizes = [1, 128], strides = [1, 1]} : vector<25x128xf32> to vector<1x128xf32>
    %398 = vector.broadcast %397 : vector<1x128xf32> to vector<16x128xf32>
    %399 = arith.mulf %329, %398 : vector<16x128xf32>
    %400 = arith.addf %396, %399 : vector<16x128xf32>
    %401 = vector.extract_strided_slice %54 {offsets = [13, 0], sizes = [1, 128], strides = [1, 1]} : vector<25x128xf32> to vector<1x128xf32>
    %402 = vector.broadcast %401 : vector<1x128xf32> to vector<16x128xf32>
    %403 = arith.mulf %330, %402 : vector<16x128xf32>
    %404 = arith.addf %400, %403 : vector<16x128xf32>
    %405 = vector.extract_strided_slice %54 {offsets = [18, 0], sizes = [1, 128], strides = [1, 1]} : vector<25x128xf32> to vector<1x128xf32>
    %406 = vector.broadcast %405 : vector<1x128xf32> to vector<16x128xf32>
    %407 = arith.mulf %331, %406 : vector<16x128xf32>
    %408 = arith.addf %404, %407 : vector<16x128xf32>
    %409 = vector.extract_strided_slice %54 {offsets = [23, 0], sizes = [1, 128], strides = [1, 1]} : vector<25x128xf32> to vector<1x128xf32>
    %410 = vector.broadcast %409 : vector<1x128xf32> to vector<16x128xf32>
    %411 = arith.mulf %332, %410 : vector<16x128xf32>
    %412 = arith.addf %408, %411 : vector<16x128xf32>
    %c15_i32_70 = arith.constant 15 : i32
    %413 = tpu.dynamic_rotate %412 by %c15_i32_70 dim 0 : vector<16x128xf32>, i32 -> vector<16x128xf32>
    %414 = arith.addf %393, %413 : vector<16x128xf32>
    %415 = vector.extract_strided_slice %54 {offsets = [4, 0], sizes = [1, 128], strides = [1, 1]} : vector<25x128xf32> to vector<1x128xf32>
    %416 = vector.broadcast %415 : vector<1x128xf32> to vector<16x128xf32>
    %417 = arith.mulf %328, %416 : vector<16x128xf32>
    %418 = vector.extract_strided_slice %54 {offsets = [9, 0], sizes = [1, 128], strides = [1, 1]} : vector<25x128xf32> to vector<1x128xf32>
    %419 = vector.broadcast %418 : vector<1x128xf32> to vector<16x128xf32>
    %420 = arith.mulf %329, %419 : vector<16x128xf32>
    %421 = arith.addf %417, %420 : vector<16x128xf32>
    %422 = vector.extract_strided_slice %54 {offsets = [14, 0], sizes = [1, 128], strides = [1, 1]} : vector<25x128xf32> to vector<1x128xf32>
    %423 = vector.broadcast %422 : vector<1x128xf32> to vector<16x128xf32>
    %424 = arith.mulf %330, %423 : vector<16x128xf32>
    %425 = arith.addf %421, %424 : vector<16x128xf32>
    %426 = vector.extract_strided_slice %54 {offsets = [19, 0], sizes = [1, 128], strides = [1, 1]} : vector<25x128xf32> to vector<1x128xf32>
    %427 = vector.broadcast %426 : vector<1x128xf32> to vector<16x128xf32>
    %428 = arith.mulf %331, %427 : vector<16x128xf32>
    %429 = arith.addf %425, %428 : vector<16x128xf32>
    %430 = vector.extract_strided_slice %54 {offsets = [24, 0], sizes = [1, 128], strides = [1, 1]} : vector<25x128xf32> to vector<1x128xf32>
    %431 = vector.broadcast %430 : vector<1x128xf32> to vector<16x128xf32>
    %432 = arith.mulf %332, %431 : vector<16x128xf32>
    %433 = arith.addf %429, %432 : vector<16x128xf32>
    %c14_i32_71 = arith.constant 14 : i32
    %434 = tpu.dynamic_rotate %433 by %c14_i32_71 dim 0 : vector<16x128xf32>, i32 -> vector<16x128xf32>
    %435 = arith.addf %414, %434 : vector<16x128xf32>
    %436 = vector.extract_strided_slice %435 {offsets = [0, 0], sizes = [14, 128], strides = [1, 1]} : vector<16x128xf32> to vector<14x128xf32>
    %c3 = arith.constant 3 : index
    %c0_72 = arith.constant 0 : index
    %c0_73 = arith.constant 0 : index
    %437 = vector.load %arg6[%c3, %c0_72, %c0_73] : memref<14x14x128xf32, #tpu.memory_space<vmem>>, vector<1x14x128xf32>
    %438 = vector.shape_cast %437 : vector<1x14x128xf32> to vector<14x128xf32>
    %439 = vector.shape_cast %436 : vector<14x128xf32> to vector<1x14x128xf32>
    tpu.vector_store %arg6[%c3, %c0_72, %c0_73], %439 {strides = array<i32>} : memref<14x14x128xf32, #tpu.memory_space<vmem>>, vector<1x14x128xf32>,
    %c32_74 = arith.constant 32 : index
    %c0_75 = arith.constant 0 : index
    %440 = vector.load %arg7[%c32_74, %c0_75] : memref<224x128xf32, #tpu.memory_space<vmem>>, vector<16x128xf32>
    %c48_76 = arith.constant 48 : index
    %c0_77 = arith.constant 0 : index
    %441 = vector.load %arg7[%c48_76, %c0_77] : memref<224x128xf32, #tpu.memory_space<vmem>>, vector<16x128xf32>
    %c64_78 = arith.constant 64 : index
    %c0_79 = arith.constant 0 : index
    %442 = vector.load %arg7[%c64_78, %c0_79] : memref<224x128xf32, #tpu.memory_space<vmem>>, vector<16x128xf32>
    %c80_80 = arith.constant 80 : index
    %c0_81 = arith.constant 0 : index
    %443 = vector.load %arg7[%c80_80, %c0_81] : memref<224x128xf32, #tpu.memory_space<vmem>>, vector<16x128xf32>
    %c96 = arith.constant 96 : index
    %c0_82 = arith.constant 0 : index
    %444 = vector.load %arg7[%c96, %c0_82] : memref<224x128xf32, #tpu.memory_space<vmem>>, vector<16x128xf32>
    %445 = vector.extract_strided_slice %54 {offsets = [0, 0], sizes = [1, 128], strides = [1, 1]} : vector<25x128xf32> to vector<1x128xf32>
    %446 = vector.broadcast %445 : vector<1x128xf32> to vector<16x128xf32>
    %447 = arith.mulf %440, %446 : vector<16x128xf32>
    %448 = vector.extract_strided_slice %54 {offsets = [5, 0], sizes = [1, 128], strides = [1, 1]} : vector<25x128xf32> to vector<1x128xf32>
    %449 = vector.broadcast %448 : vector<1x128xf32> to vector<16x128xf32>
    %450 = arith.mulf %441, %449 : vector<16x128xf32>
    %451 = arith.addf %447, %450 : vector<16x128xf32>
    %452 = vector.extract_strided_slice %54 {offsets = [10, 0], sizes = [1, 128], strides = [1, 1]} : vector<25x128xf32> to vector<1x128xf32>
    %453 = vector.broadcast %452 : vector<1x128xf32> to vector<16x128xf32>
    %454 = arith.mulf %442, %453 : vector<16x128xf32>
    %455 = arith.addf %451, %454 : vector<16x128xf32>
    %456 = vector.extract_strided_slice %54 {offsets = [15, 0], sizes = [1, 128], strides = [1, 1]} : vector<25x128xf32> to vector<1x128xf32>
    %457 = vector.broadcast %456 : vector<1x128xf32> to vector<16x128xf32>
    %458 = arith.mulf %443, %457 : vector<16x128xf32>
    %459 = arith.addf %455, %458 : vector<16x128xf32>
    %460 = vector.extract_strided_slice %54 {offsets = [20, 0], sizes = [1, 128], strides = [1, 1]} : vector<25x128xf32> to vector<1x128xf32>
    %461 = vector.broadcast %460 : vector<1x128xf32> to vector<16x128xf32>
    %462 = arith.mulf %444, %461 : vector<16x128xf32>
    %463 = arith.addf %459, %462 : vector<16x128xf32>
    %c2_i32_83 = arith.constant 2 : i32
    %464 = tpu.dynamic_rotate %463 by %c2_i32_83 dim 0 : vector<16x128xf32>, i32 -> vector<16x128xf32>
    %465 = vector.extract_strided_slice %54 {offsets = [1, 0], sizes = [1, 128], strides = [1, 1]} : vector<25x128xf32> to vector<1x128xf32>
    %466 = vector.broadcast %465 : vector<1x128xf32> to vector<16x128xf32>
    %467 = arith.mulf %440, %466 : vector<16x128xf32>
    %468 = vector.extract_strided_slice %54 {offsets = [6, 0], sizes = [1, 128], strides = [1, 1]} : vector<25x128xf32> to vector<1x128xf32>
    %469 = vector.broadcast %468 : vector<1x128xf32> to vector<16x128xf32>
    %470 = arith.mulf %441, %469 : vector<16x128xf32>
    %471 = arith.addf %467, %470 : vector<16x128xf32>
    %472 = vector.extract_strided_slice %54 {offsets = [11, 0], sizes = [1, 128], strides = [1, 1]} : vector<25x128xf32> to vector<1x128xf32>
    %473 = vector.broadcast %472 : vector<1x128xf32> to vector<16x128xf32>
    %474 = arith.mulf %442, %473 : vector<16x128xf32>
    %475 = arith.addf %471, %474 : vector<16x128xf32>
    %476 = vector.extract_strided_slice %54 {offsets = [16, 0], sizes = [1, 128], strides = [1, 1]} : vector<25x128xf32> to vector<1x128xf32>
    %477 = vector.broadcast %476 : vector<1x128xf32> to vector<16x128xf32>
    %478 = arith.mulf %443, %477 : vector<16x128xf32>
    %479 = arith.addf %475, %478 : vector<16x128xf32>
    %480 = vector.extract_strided_slice %54 {offsets = [21, 0], sizes = [1, 128], strides = [1, 1]} : vector<25x128xf32> to vector<1x128xf32>
    %481 = vector.broadcast %480 : vector<1x128xf32> to vector<16x128xf32>
    %482 = arith.mulf %444, %481 : vector<16x128xf32>
    %483 = arith.addf %479, %482 : vector<16x128xf32>
    %c1_i32_84 = arith.constant 1 : i32
    %484 = tpu.dynamic_rotate %483 by %c1_i32_84 dim 0 : vector<16x128xf32>, i32 -> vector<16x128xf32>
    %485 = arith.addf %464, %484 : vector<16x128xf32>
    %486 = vector.extract_strided_slice %54 {offsets = [2, 0], sizes = [1, 128], strides = [1, 1]} : vector<25x128xf32> to vector<1x128xf32>
    %487 = vector.broadcast %486 : vector<1x128xf32> to vector<16x128xf32>
    %488 = arith.mulf %440, %487 : vector<16x128xf32>
    %489 = vector.extract_strided_slice %54 {offsets = [7, 0], sizes = [1, 128], strides = [1, 1]} : vector<25x128xf32> to vector<1x128xf32>
    %490 = vector.broadcast %489 : vector<1x128xf32> to vector<16x128xf32>
    %491 = arith.mulf %441, %490 : vector<16x128xf32>
    %492 = arith.addf %488, %491 : vector<16x128xf32>
    %493 = vector.extract_strided_slice %54 {offsets = [12, 0], sizes = [1, 128], strides = [1, 1]} : vector<25x128xf32> to vector<1x128xf32>
    %494 = vector.broadcast %493 : vector<1x128xf32> to vector<16x128xf32>
    %495 = arith.mulf %442, %494 : vector<16x128xf32>
    %496 = arith.addf %492, %495 : vector<16x128xf32>
    %497 = vector.extract_strided_slice %54 {offsets = [17, 0], sizes = [1, 128], strides = [1, 1]} : vector<25x128xf32> to vector<1x128xf32>
    %498 = vector.broadcast %497 : vector<1x128xf32> to vector<16x128xf32>
    %499 = arith.mulf %443, %498 : vector<16x128xf32>
    %500 = arith.addf %496, %499 : vector<16x128xf32>
    %501 = vector.extract_strided_slice %54 {offsets = [22, 0], sizes = [1, 128], strides = [1, 1]} : vector<25x128xf32> to vector<1x128xf32>
    %502 = vector.broadcast %501 : vector<1x128xf32> to vector<16x128xf32>
    %503 = arith.mulf %444, %502 : vector<16x128xf32>
    %504 = arith.addf %500, %503 : vector<16x128xf32>
    %505 = arith.addf %485, %504 : vector<16x128xf32>
    %506 = vector.extract_strided_slice %54 {offsets = [3, 0], sizes = [1, 128], strides = [1, 1]} : vector<25x128xf32> to vector<1x128xf32>
    %507 = vector.broadcast %506 : vector<1x128xf32> to vector<16x128xf32>
    %508 = arith.mulf %440, %507 : vector<16x128xf32>
    %509 = vector.extract_strided_slice %54 {offsets = [8, 0], sizes = [1, 128], strides = [1, 1]} : vector<25x128xf32> to vector<1x128xf32>
    %510 = vector.broadcast %509 : vector<1x128xf32> to vector<16x128xf32>
    %511 = arith.mulf %441, %510 : vector<16x128xf32>
    %512 = arith.addf %508, %511 : vector<16x128xf32>
    %513 = vector.extract_strided_slice %54 {offsets = [13, 0], sizes = [1, 128], strides = [1, 1]} : vector<25x128xf32> to vector<1x128xf32>
    %514 = vector.broadcast %513 : vector<1x128xf32> to vector<16x128xf32>
    %515 = arith.mulf %442, %514 : vector<16x128xf32>
    %516 = arith.addf %512, %515 : vector<16x128xf32>
    %517 = vector.extract_strided_slice %54 {offsets = [18, 0], sizes = [1, 128], strides = [1, 1]} : vector<25x128xf32> to vector<1x128xf32>
    %518 = vector.broadcast %517 : vector<1x128xf32> to vector<16x128xf32>
    %519 = arith.mulf %443, %518 : vector<16x128xf32>
    %520 = arith.addf %516, %519 : vector<16x128xf32>
    %521 = vector.extract_strided_slice %54 {offsets = [23, 0], sizes = [1, 128], strides = [1, 1]} : vector<25x128xf32> to vector<1x128xf32>
    %522 = vector.broadcast %521 : vector<1x128xf32> to vector<16x128xf32>
    %523 = arith.mulf %444, %522 : vector<16x128xf32>
    %524 = arith.addf %520, %523 : vector<16x128xf32>
    %c15_i32_85 = arith.constant 15 : i32
    %525 = tpu.dynamic_rotate %524 by %c15_i32_85 dim 0 : vector<16x128xf32>, i32 -> vector<16x128xf32>
    %526 = arith.addf %505, %525 : vector<16x128xf32>
    %527 = vector.extract_strided_slice %54 {offsets = [4, 0], sizes = [1, 128], strides = [1, 1]} : vector<25x128xf32> to vector<1x128xf32>
    %528 = vector.broadcast %527 : vector<1x128xf32> to vector<16x128xf32>
    %529 = arith.mulf %440, %528 : vector<16x128xf32>
    %530 = vector.extract_strided_slice %54 {offsets = [9, 0], sizes = [1, 128], strides = [1, 1]} : vector<25x128xf32> to vector<1x128xf32>
    %531 = vector.broadcast %530 : vector<1x128xf32> to vector<16x128xf32>
    %532 = arith.mulf %441, %531 : vector<16x128xf32>
    %533 = arith.addf %529, %532 : vector<16x128xf32>
    %534 = vector.extract_strided_slice %54 {offsets = [14, 0], sizes = [1, 128], strides = [1, 1]} : vector<25x128xf32> to vector<1x128xf32>
    %535 = vector.broadcast %534 : vector<1x128xf32> to vector<16x128xf32>
    %536 = arith.mulf %442, %535 : vector<16x128xf32>
    %537 = arith.addf %533, %536 : vector<16x128xf32>
    %538 = vector.extract_strided_slice %54 {offsets = [19, 0], sizes = [1, 128], strides = [1, 1]} : vector<25x128xf32> to vector<1x128xf32>
    %539 = vector.broadcast %538 : vector<1x128xf32> to vector<16x128xf32>
    %540 = arith.mulf %443, %539 : vector<16x128xf32>
    %541 = arith.addf %537, %540 : vector<16x128xf32>
    %542 = vector.extract_strided_slice %54 {offsets = [24, 0], sizes = [1, 128], strides = [1, 1]} : vector<25x128xf32> to vector<1x128xf32>
    %543 = vector.broadcast %542 : vector<1x128xf32> to vector<16x128xf32>
    %544 = arith.mulf %444, %543 : vector<16x128xf32>
    %545 = arith.addf %541, %544 : vector<16x128xf32>
    %c14_i32_86 = arith.constant 14 : i32
    %546 = tpu.dynamic_rotate %545 by %c14_i32_86 dim 0 : vector<16x128xf32>, i32 -> vector<16x128xf32>
    %547 = arith.addf %526, %546 : vector<16x128xf32>
    %548 = vector.extract_strided_slice %547 {offsets = [0, 0], sizes = [14, 128], strides = [1, 1]} : vector<16x128xf32> to vector<14x128xf32>
    %c4 = arith.constant 4 : index
    %c0_87 = arith.constant 0 : index
    %c0_88 = arith.constant 0 : index
    %549 = vector.load %arg6[%c4, %c0_87, %c0_88] : memref<14x14x128xf32, #tpu.memory_space<vmem>>, vector<1x14x128xf32>
    %550 = vector.shape_cast %549 : vector<1x14x128xf32> to vector<14x128xf32>
    %551 = vector.shape_cast %548 : vector<14x128xf32> to vector<1x14x128xf32>
    tpu.vector_store %arg6[%c4, %c0_87, %c0_88], %551 {strides = array<i32>} : memref<14x14x128xf32, #tpu.memory_space<vmem>>, vector<1x14x128xf32>,
    %c48_89 = arith.constant 48 : index
    %c0_90 = arith.constant 0 : index
    %552 = vector.load %arg7[%c48_89, %c0_90] : memref<224x128xf32, #tpu.memory_space<vmem>>, vector<16x128xf32>
    %c64_91 = arith.constant 64 : index
    %c0_92 = arith.constant 0 : index
    %553 = vector.load %arg7[%c64_91, %c0_92] : memref<224x128xf32, #tpu.memory_space<vmem>>, vector<16x128xf32>
    %c80_93 = arith.constant 80 : index
    %c0_94 = arith.constant 0 : index
    %554 = vector.load %arg7[%c80_93, %c0_94] : memref<224x128xf32, #tpu.memory_space<vmem>>, vector<16x128xf32>
    %c96_95 = arith.constant 96 : index
    %c0_96 = arith.constant 0 : index
    %555 = vector.load %arg7[%c96_95, %c0_96] : memref<224x128xf32, #tpu.memory_space<vmem>>, vector<16x128xf32>
    %c112 = arith.constant 112 : index
    %c0_97 = arith.constant 0 : index
    %556 = vector.load %arg7[%c112, %c0_97] : memref<224x128xf32, #tpu.memory_space<vmem>>, vector<16x128xf32>
    %557 = vector.extract_strided_slice %54 {offsets = [0, 0], sizes = [1, 128], strides = [1, 1]} : vector<25x128xf32> to vector<1x128xf32>
    %558 = vector.broadcast %557 : vector<1x128xf32> to vector<16x128xf32>
    %559 = arith.mulf %552, %558 : vector<16x128xf32>
    %560 = vector.extract_strided_slice %54 {offsets = [5, 0], sizes = [1, 128], strides = [1, 1]} : vector<25x128xf32> to vector<1x128xf32>
    %561 = vector.broadcast %560 : vector<1x128xf32> to vector<16x128xf32>
    %562 = arith.mulf %553, %561 : vector<16x128xf32>
    %563 = arith.addf %559, %562 : vector<16x128xf32>
    %564 = vector.extract_strided_slice %54 {offsets = [10, 0], sizes = [1, 128], strides = [1, 1]} : vector<25x128xf32> to vector<1x128xf32>
    %565 = vector.broadcast %564 : vector<1x128xf32> to vector<16x128xf32>
    %566 = arith.mulf %554, %565 : vector<16x128xf32>
    %567 = arith.addf %563, %566 : vector<16x128xf32>
    %568 = vector.extract_strided_slice %54 {offsets = [15, 0], sizes = [1, 128], strides = [1, 1]} : vector<25x128xf32> to vector<1x128xf32>
    %569 = vector.broadcast %568 : vector<1x128xf32> to vector<16x128xf32>
    %570 = arith.mulf %555, %569 : vector<16x128xf32>
    %571 = arith.addf %567, %570 : vector<16x128xf32>
    %572 = vector.extract_strided_slice %54 {offsets = [20, 0], sizes = [1, 128], strides = [1, 1]} : vector<25x128xf32> to vector<1x128xf32>
    %573 = vector.broadcast %572 : vector<1x128xf32> to vector<16x128xf32>
    %574 = arith.mulf %556, %573 : vector<16x128xf32>
    %575 = arith.addf %571, %574 : vector<16x128xf32>
    %c2_i32_98 = arith.constant 2 : i32
    %576 = tpu.dynamic_rotate %575 by %c2_i32_98 dim 0 : vector<16x128xf32>, i32 -> vector<16x128xf32>
    %577 = vector.extract_strided_slice %54 {offsets = [1, 0], sizes = [1, 128], strides = [1, 1]} : vector<25x128xf32> to vector<1x128xf32>
    %578 = vector.broadcast %577 : vector<1x128xf32> to vector<16x128xf32>
    %579 = arith.mulf %552, %578 : vector<16x128xf32>
    %580 = vector.extract_strided_slice %54 {offsets = [6, 0], sizes = [1, 128], strides = [1, 1]} : vector<25x128xf32> to vector<1x128xf32>
    %581 = vector.broadcast %580 : vector<1x128xf32> to vector<16x128xf32>
    %582 = arith.mulf %553, %581 : vector<16x128xf32>
    %583 = arith.addf %579, %582 : vector<16x128xf32>
    %584 = vector.extract_strided_slice %54 {offsets = [11, 0], sizes = [1, 128], strides = [1, 1]} : vector<25x128xf32> to vector<1x128xf32>
    %585 = vector.broadcast %584 : vector<1x128xf32> to vector<16x128xf32>
    %586 = arith.mulf %554, %585 : vector<16x128xf32>
    %587 = arith.addf %583, %586 : vector<16x128xf32>
    %588 = vector.extract_strided_slice %54 {offsets = [16, 0], sizes = [1, 128], strides = [1, 1]} : vector<25x128xf32> to vector<1x128xf32>
    %589 = vector.broadcast %588 : vector<1x128xf32> to vector<16x128xf32>
    %590 = arith.mulf %555, %589 : vector<16x128xf32>
    %591 = arith.addf %587, %590 : vector<16x128xf32>
    %592 = vector.extract_strided_slice %54 {offsets = [21, 0], sizes = [1, 128], strides = [1, 1]} : vector<25x128xf32> to vector<1x128xf32>
    %593 = vector.broadcast %592 : vector<1x128xf32> to vector<16x128xf32>
    %594 = arith.mulf %556, %593 : vector<16x128xf32>
    %595 = arith.addf %591, %594 : vector<16x128xf32>
    %c1_i32_99 = arith.constant 1 : i32
    %596 = tpu.dynamic_rotate %595 by %c1_i32_99 dim 0 : vector<16x128xf32>, i32 -> vector<16x128xf32>
    %597 = arith.addf %576, %596 : vector<16x128xf32>
    %598 = vector.extract_strided_slice %54 {offsets = [2, 0], sizes = [1, 128], strides = [1, 1]} : vector<25x128xf32> to vector<1x128xf32>
    %599 = vector.broadcast %598 : vector<1x128xf32> to vector<16x128xf32>
    %600 = arith.mulf %552, %599 : vector<16x128xf32>
    %601 = vector.extract_strided_slice %54 {offsets = [7, 0], sizes = [1, 128], strides = [1, 1]} : vector<25x128xf32> to vector<1x128xf32>
    %602 = vector.broadcast %601 : vector<1x128xf32> to vector<16x128xf32>
    %603 = arith.mulf %553, %602 : vector<16x128xf32>
    %604 = arith.addf %600, %603 : vector<16x128xf32>
    %605 = vector.extract_strided_slice %54 {offsets = [12, 0], sizes = [1, 128], strides = [1, 1]} : vector<25x128xf32> to vector<1x128xf32>
    %606 = vector.broadcast %605 : vector<1x128xf32> to vector<16x128xf32>
    %607 = arith.mulf %554, %606 : vector<16x128xf32>
    %608 = arith.addf %604, %607 : vector<16x128xf32>
    %609 = vector.extract_strided_slice %54 {offsets = [17, 0], sizes = [1, 128], strides = [1, 1]} : vector<25x128xf32> to vector<1x128xf32>
    %610 = vector.broadcast %609 : vector<1x128xf32> to vector<16x128xf32>
    %611 = arith.mulf %555, %610 : vector<16x128xf32>
    %612 = arith.addf %608, %611 : vector<16x128xf32>
    %613 = vector.extract_strided_slice %54 {offsets = [22, 0], sizes = [1, 128], strides = [1, 1]} : vector<25x128xf32> to vector<1x128xf32>
    %614 = vector.broadcast %613 : vector<1x128xf32> to vector<16x128xf32>
    %615 = arith.mulf %556, %614 : vector<16x128xf32>
    %616 = arith.addf %612, %615 : vector<16x128xf32>
    %617 = arith.addf %597, %616 : vector<16x128xf32>
    %618 = vector.extract_strided_slice %54 {offsets = [3, 0], sizes = [1, 128], strides = [1, 1]} : vector<25x128xf32> to vector<1x128xf32>
    %619 = vector.broadcast %618 : vector<1x128xf32> to vector<16x128xf32>
    %620 = arith.mulf %552, %619 : vector<16x128xf32>
    %621 = vector.extract_strided_slice %54 {offsets = [8, 0], sizes = [1, 128], strides = [1, 1]} : vector<25x128xf32> to vector<1x128xf32>
    %622 = vector.broadcast %621 : vector<1x128xf32> to vector<16x128xf32>
    %623 = arith.mulf %553, %622 : vector<16x128xf32>
    %624 = arith.addf %620, %623 : vector<16x128xf32>
    %625 = vector.extract_strided_slice %54 {offsets = [13, 0], sizes = [1, 128], strides = [1, 1]} : vector<25x128xf32> to vector<1x128xf32>
    %626 = vector.broadcast %625 : vector<1x128xf32> to vector<16x128xf32>
    %627 = arith.mulf %554, %626 : vector<16x128xf32>
    %628 = arith.addf %624, %627 : vector<16x128xf32>
    %629 = vector.extract_strided_slice %54 {offsets = [18, 0], sizes = [1, 128], strides = [1, 1]} : vector<25x128xf32> to vector<1x128xf32>
    %630 = vector.broadcast %629 : vector<1x128xf32> to vector<16x128xf32>
    %631 = arith.mulf %555, %630 : vector<16x128xf32>
    %632 = arith.addf %628, %631 : vector<16x128xf32>
    %633 = vector.extract_strided_slice %54 {offsets = [23, 0], sizes = [1, 128], strides = [1, 1]} : vector<25x128xf32> to vector<1x128xf32>
    %634 = vector.broadcast %633 : vector<1x128xf32> to vector<16x128xf32>
    %635 = arith.mulf %556, %634 : vector<16x128xf32>
    %636 = arith.addf %632, %635 : vector<16x128xf32>
    %c15_i32_100 = arith.constant 15 : i32
    %637 = tpu.dynamic_rotate %636 by %c15_i32_100 dim 0 : vector<16x128xf32>, i32 -> vector<16x128xf32>
    %638 = arith.addf %617, %637 : vector<16x128xf32>
    %639 = vector.extract_strided_slice %54 {offsets = [4, 0], sizes = [1, 128], strides = [1, 1]} : vector<25x128xf32> to vector<1x128xf32>
    %640 = vector.broadcast %639 : vector<1x128xf32> to vector<16x128xf32>
    %641 = arith.mulf %552, %640 : vector<16x128xf32>
    %642 = vector.extract_strided_slice %54 {offsets = [9, 0], sizes = [1, 128], strides = [1, 1]} : vector<25x128xf32> to vector<1x128xf32>
    %643 = vector.broadcast %642 : vector<1x128xf32> to vector<16x128xf32>
    %644 = arith.mulf %553, %643 : vector<16x128xf32>
    %645 = arith.addf %641, %644 : vector<16x128xf32>
    %646 = vector.extract_strided_slice %54 {offsets = [14, 0], sizes = [1, 128], strides = [1, 1]} : vector<25x128xf32> to vector<1x128xf32>
    %647 = vector.broadcast %646 : vector<1x128xf32> to vector<16x128xf32>
    %648 = arith.mulf %554, %647 : vector<16x128xf32>
    %649 = arith.addf %645, %648 : vector<16x128xf32>
    %650 = vector.extract_strided_slice %54 {offsets = [19, 0], sizes = [1, 128], strides = [1, 1]} : vector<25x128xf32> to vector<1x128xf32>
    %651 = vector.broadcast %650 : vector<1x128xf32> to vector<16x128xf32>
    %652 = arith.mulf %555, %651 : vector<16x128xf32>
    %653 = arith.addf %649, %652 : vector<16x128xf32>
    %654 = vector.extract_strided_slice %54 {offsets = [24, 0], sizes = [1, 128], strides = [1, 1]} : vector<25x128xf32> to vector<1x128xf32>
    %655 = vector.broadcast %654 : vector<1x128xf32> to vector<16x128xf32>
    %656 = arith.mulf %556, %655 : vector<16x128xf32>
    %657 = arith.addf %653, %656 : vector<16x128xf32>
    %c14_i32_101 = arith.constant 14 : i32
    %658 = tpu.dynamic_rotate %657 by %c14_i32_101 dim 0 : vector<16x128xf32>, i32 -> vector<16x128xf32>
    %659 = arith.addf %638, %658 : vector<16x128xf32>
    %660 = vector.extract_strided_slice %659 {offsets = [0, 0], sizes = [14, 128], strides = [1, 1]} : vector<16x128xf32> to vector<14x128xf32>
    %c5 = arith.constant 5 : index
    %c0_102 = arith.constant 0 : index
    %c0_103 = arith.constant 0 : index
    %661 = vector.load %arg6[%c5, %c0_102, %c0_103] : memref<14x14x128xf32, #tpu.memory_space<vmem>>, vector<1x14x128xf32>
    %662 = vector.shape_cast %661 : vector<1x14x128xf32> to vector<14x128xf32>
    %663 = vector.shape_cast %660 : vector<14x128xf32> to vector<1x14x128xf32>
    tpu.vector_store %arg6[%c5, %c0_102, %c0_103], %663 {strides = array<i32>} : memref<14x14x128xf32, #tpu.memory_space<vmem>>, vector<1x14x128xf32>,
    %c64_104 = arith.constant 64 : index
    %c0_105 = arith.constant 0 : index
    %664 = vector.load %arg7[%c64_104, %c0_105] : memref<224x128xf32, #tpu.memory_space<vmem>>, vector<16x128xf32>
    %c80_106 = arith.constant 80 : index
    %c0_107 = arith.constant 0 : index
    %665 = vector.load %arg7[%c80_106, %c0_107] : memref<224x128xf32, #tpu.memory_space<vmem>>, vector<16x128xf32>
    %c96_108 = arith.constant 96 : index
    %c0_109 = arith.constant 0 : index
    %666 = vector.load %arg7[%c96_108, %c0_109] : memref<224x128xf32, #tpu.memory_space<vmem>>, vector<16x128xf32>
    %c112_110 = arith.constant 112 : index
    %c0_111 = arith.constant 0 : index
    %667 = vector.load %arg7[%c112_110, %c0_111] : memref<224x128xf32, #tpu.memory_space<vmem>>, vector<16x128xf32>
    %c128 = arith.constant 128 : index
    %c0_112 = arith.constant 0 : index
    %668 = vector.load %arg7[%c128, %c0_112] : memref<224x128xf32, #tpu.memory_space<vmem>>, vector<16x128xf32>
    %669 = vector.extract_strided_slice %54 {offsets = [0, 0], sizes = [1, 128], strides = [1, 1]} : vector<25x128xf32> to vector<1x128xf32>
    %670 = vector.broadcast %669 : vector<1x128xf32> to vector<16x128xf32>
    %671 = arith.mulf %664, %670 : vector<16x128xf32>
    %672 = vector.extract_strided_slice %54 {offsets = [5, 0], sizes = [1, 128], strides = [1, 1]} : vector<25x128xf32> to vector<1x128xf32>
    %673 = vector.broadcast %672 : vector<1x128xf32> to vector<16x128xf32>
    %674 = arith.mulf %665, %673 : vector<16x128xf32>
    %675 = arith.addf %671, %674 : vector<16x128xf32>
    %676 = vector.extract_strided_slice %54 {offsets = [10, 0], sizes = [1, 128], strides = [1, 1]} : vector<25x128xf32> to vector<1x128xf32>
    %677 = vector.broadcast %676 : vector<1x128xf32> to vector<16x128xf32>
    %678 = arith.mulf %666, %677 : vector<16x128xf32>
    %679 = arith.addf %675, %678 : vector<16x128xf32>
    %680 = vector.extract_strided_slice %54 {offsets = [15, 0], sizes = [1, 128], strides = [1, 1]} : vector<25x128xf32> to vector<1x128xf32>
    %681 = vector.broadcast %680 : vector<1x128xf32> to vector<16x128xf32>
    %682 = arith.mulf %667, %681 : vector<16x128xf32>
    %683 = arith.addf %679, %682 : vector<16x128xf32>
    %684 = vector.extract_strided_slice %54 {offsets = [20, 0], sizes = [1, 128], strides = [1, 1]} : vector<25x128xf32> to vector<1x128xf32>
    %685 = vector.broadcast %684 : vector<1x128xf32> to vector<16x128xf32>
    %686 = arith.mulf %668, %685 : vector<16x128xf32>
    %687 = arith.addf %683, %686 : vector<16x128xf32>
    %c2_i32_113 = arith.constant 2 : i32
    %688 = tpu.dynamic_rotate %687 by %c2_i32_113 dim 0 : vector<16x128xf32>, i32 -> vector<16x128xf32>
    %689 = vector.extract_strided_slice %54 {offsets = [1, 0], sizes = [1, 128], strides = [1, 1]} : vector<25x128xf32> to vector<1x128xf32>
    %690 = vector.broadcast %689 : vector<1x128xf32> to vector<16x128xf32>
    %691 = arith.mulf %664, %690 : vector<16x128xf32>
    %692 = vector.extract_strided_slice %54 {offsets = [6, 0], sizes = [1, 128], strides = [1, 1]} : vector<25x128xf32> to vector<1x128xf32>
    %693 = vector.broadcast %692 : vector<1x128xf32> to vector<16x128xf32>
    %694 = arith.mulf %665, %693 : vector<16x128xf32>
    %695 = arith.addf %691, %694 : vector<16x128xf32>
    %696 = vector.extract_strided_slice %54 {offsets = [11, 0], sizes = [1, 128], strides = [1, 1]} : vector<25x128xf32> to vector<1x128xf32>
    %697 = vector.broadcast %696 : vector<1x128xf32> to vector<16x128xf32>
    %698 = arith.mulf %666, %697 : vector<16x128xf32>
    %699 = arith.addf %695, %698 : vector<16x128xf32>
    %700 = vector.extract_strided_slice %54 {offsets = [16, 0], sizes = [1, 128], strides = [1, 1]} : vector<25x128xf32> to vector<1x128xf32>
    %701 = vector.broadcast %700 : vector<1x128xf32> to vector<16x128xf32>
    %702 = arith.mulf %667, %701 : vector<16x128xf32>
    %703 = arith.addf %699, %702 : vector<16x128xf32>
    %704 = vector.extract_strided_slice %54 {offsets = [21, 0], sizes = [1, 128], strides = [1, 1]} : vector<25x128xf32> to vector<1x128xf32>
    %705 = vector.broadcast %704 : vector<1x128xf32> to vector<16x128xf32>
    %706 = arith.mulf %668, %705 : vector<16x128xf32>
    %707 = arith.addf %703, %706 : vector<16x128xf32>
    %c1_i32_114 = arith.constant 1 : i32
    %708 = tpu.dynamic_rotate %707 by %c1_i32_114 dim 0 : vector<16x128xf32>, i32 -> vector<16x128xf32>
    %709 = arith.addf %688, %708 : vector<16x128xf32>
    %710 = vector.extract_strided_slice %54 {offsets = [2, 0], sizes = [1, 128], strides = [1, 1]} : vector<25x128xf32> to vector<1x128xf32>
    %711 = vector.broadcast %710 : vector<1x128xf32> to vector<16x128xf32>
    %712 = arith.mulf %664, %711 : vector<16x128xf32>
    %713 = vector.extract_strided_slice %54 {offsets = [7, 0], sizes = [1, 128], strides = [1, 1]} : vector<25x128xf32> to vector<1x128xf32>
    %714 = vector.broadcast %713 : vector<1x128xf32> to vector<16x128xf32>
    %715 = arith.mulf %665, %714 : vector<16x128xf32>
    %716 = arith.addf %712, %715 : vector<16x128xf32>
    %717 = vector.extract_strided_slice %54 {offsets = [12, 0], sizes = [1, 128], strides = [1, 1]} : vector<25x128xf32> to vector<1x128xf32>
    %718 = vector.broadcast %717 : vector<1x128xf32> to vector<16x128xf32>
    %719 = arith.mulf %666, %718 : vector<16x128xf32>
    %720 = arith.addf %716, %719 : vector<16x128xf32>
    %721 = vector.extract_strided_slice %54 {offsets = [17, 0], sizes = [1, 128], strides = [1, 1]} : vector<25x128xf32> to vector<1x128xf32>
    %722 = vector.broadcast %721 : vector<1x128xf32> to vector<16x128xf32>
    %723 = arith.mulf %667, %722 : vector<16x128xf32>
    %724 = arith.addf %720, %723 : vector<16x128xf32>
    %725 = vector.extract_strided_slice %54 {offsets = [22, 0], sizes = [1, 128], strides = [1, 1]} : vector<25x128xf32> to vector<1x128xf32>
    %726 = vector.broadcast %725 : vector<1x128xf32> to vector<16x128xf32>
    %727 = arith.mulf %668, %726 : vector<16x128xf32>
    %728 = arith.addf %724, %727 : vector<16x128xf32>
    %729 = arith.addf %709, %728 : vector<16x128xf32>
    %730 = vector.extract_strided_slice %54 {offsets = [3, 0], sizes = [1, 128], strides = [1, 1]} : vector<25x128xf32> to vector<1x128xf32>
    %731 = vector.broadcast %730 : vector<1x128xf32> to vector<16x128xf32>
    %732 = arith.mulf %664, %731 : vector<16x128xf32>
    %733 = vector.extract_strided_slice %54 {offsets = [8, 0], sizes = [1, 128], strides = [1, 1]} : vector<25x128xf32> to vector<1x128xf32>
    %734 = vector.broadcast %733 : vector<1x128xf32> to vector<16x128xf32>
    %735 = arith.mulf %665, %734 : vector<16x128xf32>
    %736 = arith.addf %732, %735 : vector<16x128xf32>
    %737 = vector.extract_strided_slice %54 {offsets = [13, 0], sizes = [1, 128], strides = [1, 1]} : vector<25x128xf32> to vector<1x128xf32>
    %738 = vector.broadcast %737 : vector<1x128xf32> to vector<16x128xf32>
    %739 = arith.mulf %666, %738 : vector<16x128xf32>
    %740 = arith.addf %736, %739 : vector<16x128xf32>
    %741 = vector.extract_strided_slice %54 {offsets = [18, 0], sizes = [1, 128], strides = [1, 1]} : vector<25x128xf32> to vector<1x128xf32>
    %742 = vector.broadcast %741 : vector<1x128xf32> to vector<16x128xf32>
    %743 = arith.mulf %667, %742 : vector<16x128xf32>
    %744 = arith.addf %740, %743 : vector<16x128xf32>
    %745 = vector.extract_strided_slice %54 {offsets = [23, 0], sizes = [1, 128], strides = [1, 1]} : vector<25x128xf32> to vector<1x128xf32>
    %746 = vector.broadcast %745 : vector<1x128xf32> to vector<16x128xf32>
    %747 = arith.mulf %668, %746 : vector<16x128xf32>
    %748 = arith.addf %744, %747 : vector<16x128xf32>
    %c15_i32_115 = arith.constant 15 : i32
    %749 = tpu.dynamic_rotate %748 by %c15_i32_115 dim 0 : vector<16x128xf32>, i32 -> vector<16x128xf32>
    %750 = arith.addf %729, %749 : vector<16x128xf32>
    %751 = vector.extract_strided_slice %54 {offsets = [4, 0], sizes = [1, 128], strides = [1, 1]} : vector<25x128xf32> to vector<1x128xf32>
    %752 = vector.broadcast %751 : vector<1x128xf32> to vector<16x128xf32>
    %753 = arith.mulf %664, %752 : vector<16x128xf32>
    %754 = vector.extract_strided_slice %54 {offsets = [9, 0], sizes = [1, 128], strides = [1, 1]} : vector<25x128xf32> to vector<1x128xf32>
    %755 = vector.broadcast %754 : vector<1x128xf32> to vector<16x128xf32>
    %756 = arith.mulf %665, %755 : vector<16x128xf32>
    %757 = arith.addf %753, %756 : vector<16x128xf32>
    %758 = vector.extract_strided_slice %54 {offsets = [14, 0], sizes = [1, 128], strides = [1, 1]} : vector<25x128xf32> to vector<1x128xf32>
    %759 = vector.broadcast %758 : vector<1x128xf32> to vector<16x128xf32>
    %760 = arith.mulf %666, %759 : vector<16x128xf32>
    %761 = arith.addf %757, %760 : vector<16x128xf32>
    %762 = vector.extract_strided_slice %54 {offsets = [19, 0], sizes = [1, 128], strides = [1, 1]} : vector<25x128xf32> to vector<1x128xf32>
    %763 = vector.broadcast %762 : vector<1x128xf32> to vector<16x128xf32>
    %764 = arith.mulf %667, %763 : vector<16x128xf32>
    %765 = arith.addf %761, %764 : vector<16x128xf32>
    %766 = vector.extract_strided_slice %54 {offsets = [24, 0], sizes = [1, 128], strides = [1, 1]} : vector<25x128xf32> to vector<1x128xf32>
    %767 = vector.broadcast %766 : vector<1x128xf32> to vector<16x128xf32>
    %768 = arith.mulf %668, %767 : vector<16x128xf32>
    %769 = arith.addf %765, %768 : vector<16x128xf32>
    %c14_i32_116 = arith.constant 14 : i32
    %770 = tpu.dynamic_rotate %769 by %c14_i32_116 dim 0 : vector<16x128xf32>, i32 -> vector<16x128xf32>
    %771 = arith.addf %750, %770 : vector<16x128xf32>
    %772 = vector.extract_strided_slice %771 {offsets = [0, 0], sizes = [14, 128], strides = [1, 1]} : vector<16x128xf32> to vector<14x128xf32>
    %c6 = arith.constant 6 : index
    %c0_117 = arith.constant 0 : index
    %c0_118 = arith.constant 0 : index
    %773 = vector.load %arg6[%c6, %c0_117, %c0_118] : memref<14x14x128xf32, #tpu.memory_space<vmem>>, vector<1x14x128xf32>
    %774 = vector.shape_cast %773 : vector<1x14x128xf32> to vector<14x128xf32>
    %775 = vector.shape_cast %772 : vector<14x128xf32> to vector<1x14x128xf32>
    tpu.vector_store %arg6[%c6, %c0_117, %c0_118], %775 {strides = array<i32>} : memref<14x14x128xf32, #tpu.memory_space<vmem>>, vector<1x14x128xf32>,
    %c80_119 = arith.constant 80 : index
    %c0_120 = arith.constant 0 : index
    %776 = vector.load %arg7[%c80_119, %c0_120] : memref<224x128xf32, #tpu.memory_space<vmem>>, vector<16x128xf32>
    %c96_121 = arith.constant 96 : index
    %c0_122 = arith.constant 0 : index
    %777 = vector.load %arg7[%c96_121, %c0_122] : memref<224x128xf32, #tpu.memory_space<vmem>>, vector<16x128xf32>
    %c112_123 = arith.constant 112 : index
    %c0_124 = arith.constant 0 : index
    %778 = vector.load %arg7[%c112_123, %c0_124] : memref<224x128xf32, #tpu.memory_space<vmem>>, vector<16x128xf32>
    %c128_125 = arith.constant 128 : index
    %c0_126 = arith.constant 0 : index
    %779 = vector.load %arg7[%c128_125, %c0_126] : memref<224x128xf32, #tpu.memory_space<vmem>>, vector<16x128xf32>
    %c144 = arith.constant 144 : index
    %c0_127 = arith.constant 0 : index
    %780 = vector.load %arg7[%c144, %c0_127] : memref<224x128xf32, #tpu.memory_space<vmem>>, vector<16x128xf32>
    %781 = vector.extract_strided_slice %54 {offsets = [0, 0], sizes = [1, 128], strides = [1, 1]} : vector<25x128xf32> to vector<1x128xf32>
    %782 = vector.broadcast %781 : vector<1x128xf32> to vector<16x128xf32>
    %783 = arith.mulf %776, %782 : vector<16x128xf32>
    %784 = vector.extract_strided_slice %54 {offsets = [5, 0], sizes = [1, 128], strides = [1, 1]} : vector<25x128xf32> to vector<1x128xf32>
    %785 = vector.broadcast %784 : vector<1x128xf32> to vector<16x128xf32>
    %786 = arith.mulf %777, %785 : vector<16x128xf32>
    %787 = arith.addf %783, %786 : vector<16x128xf32>
    %788 = vector.extract_strided_slice %54 {offsets = [10, 0], sizes = [1, 128], strides = [1, 1]} : vector<25x128xf32> to vector<1x128xf32>
    %789 = vector.broadcast %788 : vector<1x128xf32> to vector<16x128xf32>
    %790 = arith.mulf %778, %789 : vector<16x128xf32>
    %791 = arith.addf %787, %790 : vector<16x128xf32>
    %792 = vector.extract_strided_slice %54 {offsets = [15, 0], sizes = [1, 128], strides = [1, 1]} : vector<25x128xf32> to vector<1x128xf32>
    %793 = vector.broadcast %792 : vector<1x128xf32> to vector<16x128xf32>
    %794 = arith.mulf %779, %793 : vector<16x128xf32>
    %795 = arith.addf %791, %794 : vector<16x128xf32>
    %796 = vector.extract_strided_slice %54 {offsets = [20, 0], sizes = [1, 128], strides = [1, 1]} : vector<25x128xf32> to vector<1x128xf32>
    %797 = vector.broadcast %796 : vector<1x128xf32> to vector<16x128xf32>
    %798 = arith.mulf %780, %797 : vector<16x128xf32>
    %799 = arith.addf %795, %798 : vector<16x128xf32>
    %c2_i32_128 = arith.constant 2 : i32
    %800 = tpu.dynamic_rotate %799 by %c2_i32_128 dim 0 : vector<16x128xf32>, i32 -> vector<16x128xf32>
    %801 = vector.extract_strided_slice %54 {offsets = [1, 0], sizes = [1, 128], strides = [1, 1]} : vector<25x128xf32> to vector<1x128xf32>
    %802 = vector.broadcast %801 : vector<1x128xf32> to vector<16x128xf32>
    %803 = arith.mulf %776, %802 : vector<16x128xf32>
    %804 = vector.extract_strided_slice %54 {offsets = [6, 0], sizes = [1, 128], strides = [1, 1]} : vector<25x128xf32> to vector<1x128xf32>
    %805 = vector.broadcast %804 : vector<1x128xf32> to vector<16x128xf32>
    %806 = arith.mulf %777, %805 : vector<16x128xf32>
    %807 = arith.addf %803, %806 : vector<16x128xf32>
    %808 = vector.extract_strided_slice %54 {offsets = [11, 0], sizes = [1, 128], strides = [1, 1]} : vector<25x128xf32> to vector<1x128xf32>
    %809 = vector.broadcast %808 : vector<1x128xf32> to vector<16x128xf32>
    %810 = arith.mulf %778, %809 : vector<16x128xf32>
    %811 = arith.addf %807, %810 : vector<16x128xf32>
    %812 = vector.extract_strided_slice %54 {offsets = [16, 0], sizes = [1, 128], strides = [1, 1]} : vector<25x128xf32> to vector<1x128xf32>
    %813 = vector.broadcast %812 : vector<1x128xf32> to vector<16x128xf32>
    %814 = arith.mulf %779, %813 : vector<16x128xf32>
    %815 = arith.addf %811, %814 : vector<16x128xf32>
    %816 = vector.extract_strided_slice %54 {offsets = [21, 0], sizes = [1, 128], strides = [1, 1]} : vector<25x128xf32> to vector<1x128xf32>
    %817 = vector.broadcast %816 : vector<1x128xf32> to vector<16x128xf32>
    %818 = arith.mulf %780, %817 : vector<16x128xf32>
    %819 = arith.addf %815, %818 : vector<16x128xf32>
    %c1_i32_129 = arith.constant 1 : i32
    %820 = tpu.dynamic_rotate %819 by %c1_i32_129 dim 0 : vector<16x128xf32>, i32 -> vector<16x128xf32>
    %821 = arith.addf %800, %820 : vector<16x128xf32>
    %822 = vector.extract_strided_slice %54 {offsets = [2, 0], sizes = [1, 128], strides = [1, 1]} : vector<25x128xf32> to vector<1x128xf32>
    %823 = vector.broadcast %822 : vector<1x128xf32> to vector<16x128xf32>
    %824 = arith.mulf %776, %823 : vector<16x128xf32>
    %825 = vector.extract_strided_slice %54 {offsets = [7, 0], sizes = [1, 128], strides = [1, 1]} : vector<25x128xf32> to vector<1x128xf32>
    %826 = vector.broadcast %825 : vector<1x128xf32> to vector<16x128xf32>
    %827 = arith.mulf %777, %826 : vector<16x128xf32>
    %828 = arith.addf %824, %827 : vector<16x128xf32>
    %829 = vector.extract_strided_slice %54 {offsets = [12, 0], sizes = [1, 128], strides = [1, 1]} : vector<25x128xf32> to vector<1x128xf32>
    %830 = vector.broadcast %829 : vector<1x128xf32> to vector<16x128xf32>
    %831 = arith.mulf %778, %830 : vector<16x128xf32>
    %832 = arith.addf %828, %831 : vector<16x128xf32>
    %833 = vector.extract_strided_slice %54 {offsets = [17, 0], sizes = [1, 128], strides = [1, 1]} : vector<25x128xf32> to vector<1x128xf32>
    %834 = vector.broadcast %833 : vector<1x128xf32> to vector<16x128xf32>
    %835 = arith.mulf %779, %834 : vector<16x128xf32>
    %836 = arith.addf %832, %835 : vector<16x128xf32>
    %837 = vector.extract_strided_slice %54 {offsets = [22, 0], sizes = [1, 128], strides = [1, 1]} : vector<25x128xf32> to vector<1x128xf32>
    %838 = vector.broadcast %837 : vector<1x128xf32> to vector<16x128xf32>
    %839 = arith.mulf %780, %838 : vector<16x128xf32>
    %840 = arith.addf %836, %839 : vector<16x128xf32>
    %841 = arith.addf %821, %840 : vector<16x128xf32>
    %842 = vector.extract_strided_slice %54 {offsets = [3, 0], sizes = [1, 128], strides = [1, 1]} : vector<25x128xf32> to vector<1x128xf32>
    %843 = vector.broadcast %842 : vector<1x128xf32> to vector<16x128xf32>
    %844 = arith.mulf %776, %843 : vector<16x128xf32>
    %845 = vector.extract_strided_slice %54 {offsets = [8, 0], sizes = [1, 128], strides = [1, 1]} : vector<25x128xf32> to vector<1x128xf32>
    %846 = vector.broadcast %845 : vector<1x128xf32> to vector<16x128xf32>
    %847 = arith.mulf %777, %846 : vector<16x128xf32>
    %848 = arith.addf %844, %847 : vector<16x128xf32>
    %849 = vector.extract_strided_slice %54 {offsets = [13, 0], sizes = [1, 128], strides = [1, 1]} : vector<25x128xf32> to vector<1x128xf32>
    %850 = vector.broadcast %849 : vector<1x128xf32> to vector<16x128xf32>
    %851 = arith.mulf %778, %850 : vector<16x128xf32>
    %852 = arith.addf %848, %851 : vector<16x128xf32>
    %853 = vector.extract_strided_slice %54 {offsets = [18, 0], sizes = [1, 128], strides = [1, 1]} : vector<25x128xf32> to vector<1x128xf32>
    %854 = vector.broadcast %853 : vector<1x128xf32> to vector<16x128xf32>
    %855 = arith.mulf %779, %854 : vector<16x128xf32>
    %856 = arith.addf %852, %855 : vector<16x128xf32>
    %857 = vector.extract_strided_slice %54 {offsets = [23, 0], sizes = [1, 128], strides = [1, 1]} : vector<25x128xf32> to vector<1x128xf32>
    %858 = vector.broadcast %857 : vector<1x128xf32> to vector<16x128xf32>
    %859 = arith.mulf %780, %858 : vector<16x128xf32>
    %860 = arith.addf %856, %859 : vector<16x128xf32>
    %c15_i32_130 = arith.constant 15 : i32
    %861 = tpu.dynamic_rotate %860 by %c15_i32_130 dim 0 : vector<16x128xf32>, i32 -> vector<16x128xf32>
    %862 = arith.addf %841, %861 : vector<16x128xf32>
    %863 = vector.extract_strided_slice %54 {offsets = [4, 0], sizes = [1, 128], strides = [1, 1]} : vector<25x128xf32> to vector<1x128xf32>
    %864 = vector.broadcast %863 : vector<1x128xf32> to vector<16x128xf32>
    %865 = arith.mulf %776, %864 : vector<16x128xf32>
    %866 = vector.extract_strided_slice %54 {offsets = [9, 0], sizes = [1, 128], strides = [1, 1]} : vector<25x128xf32> to vector<1x128xf32>
    %867 = vector.broadcast %866 : vector<1x128xf32> to vector<16x128xf32>
    %868 = arith.mulf %777, %867 : vector<16x128xf32>
    %869 = arith.addf %865, %868 : vector<16x128xf32>
    %870 = vector.extract_strided_slice %54 {offsets = [14, 0], sizes = [1, 128], strides = [1, 1]} : vector<25x128xf32> to vector<1x128xf32>
    %871 = vector.broadcast %870 : vector<1x128xf32> to vector<16x128xf32>
    %872 = arith.mulf %778, %871 : vector<16x128xf32>
    %873 = arith.addf %869, %872 : vector<16x128xf32>
    %874 = vector.extract_strided_slice %54 {offsets = [19, 0], sizes = [1, 128], strides = [1, 1]} : vector<25x128xf32> to vector<1x128xf32>
    %875 = vector.broadcast %874 : vector<1x128xf32> to vector<16x128xf32>
    %876 = arith.mulf %779, %875 : vector<16x128xf32>
    %877 = arith.addf %873, %876 : vector<16x128xf32>
    %878 = vector.extract_strided_slice %54 {offsets = [24, 0], sizes = [1, 128], strides = [1, 1]} : vector<25x128xf32> to vector<1x128xf32>
    %879 = vector.broadcast %878 : vector<1x128xf32> to vector<16x128xf32>
    %880 = arith.mulf %780, %879 : vector<16x128xf32>
    %881 = arith.addf %877, %880 : vector<16x128xf32>
    %c14_i32_131 = arith.constant 14 : i32
    %882 = tpu.dynamic_rotate %881 by %c14_i32_131 dim 0 : vector<16x128xf32>, i32 -> vector<16x128xf32>
    %883 = arith.addf %862, %882 : vector<16x128xf32>
    %884 = vector.extract_strided_slice %883 {offsets = [0, 0], sizes = [14, 128], strides = [1, 1]} : vector<16x128xf32> to vector<14x128xf32>
    %c7 = arith.constant 7 : index
    %c0_132 = arith.constant 0 : index
    %c0_133 = arith.constant 0 : index
    %885 = vector.load %arg6[%c7, %c0_132, %c0_133] : memref<14x14x128xf32, #tpu.memory_space<vmem>>, vector<1x14x128xf32>
    %886 = vector.shape_cast %885 : vector<1x14x128xf32> to vector<14x128xf32>
    %887 = vector.shape_cast %884 : vector<14x128xf32> to vector<1x14x128xf32>
    tpu.vector_store %arg6[%c7, %c0_132, %c0_133], %887 {strides = array<i32>} : memref<14x14x128xf32, #tpu.memory_space<vmem>>, vector<1x14x128xf32>,
    %c96_134 = arith.constant 96 : index
    %c0_135 = arith.constant 0 : index
    %888 = vector.load %arg7[%c96_134, %c0_135] : memref<224x128xf32, #tpu.memory_space<vmem>>, vector<16x128xf32>
    %c112_136 = arith.constant 112 : index
    %c0_137 = arith.constant 0 : index
    %889 = vector.load %arg7[%c112_136, %c0_137] : memref<224x128xf32, #tpu.memory_space<vmem>>, vector<16x128xf32>
    %c128_138 = arith.constant 128 : index
    %c0_139 = arith.constant 0 : index
    %890 = vector.load %arg7[%c128_138, %c0_139] : memref<224x128xf32, #tpu.memory_space<vmem>>, vector<16x128xf32>
    %c144_140 = arith.constant 144 : index
    %c0_141 = arith.constant 0 : index
    %891 = vector.load %arg7[%c144_140, %c0_141] : memref<224x128xf32, #tpu.memory_space<vmem>>, vector<16x128xf32>
    %c160 = arith.constant 160 : index
    %c0_142 = arith.constant 0 : index
    %892 = vector.load %arg7[%c160, %c0_142] : memref<224x128xf32, #tpu.memory_space<vmem>>, vector<16x128xf32>
    %893 = vector.extract_strided_slice %54 {offsets = [0, 0], sizes = [1, 128], strides = [1, 1]} : vector<25x128xf32> to vector<1x128xf32>
    %894 = vector.broadcast %893 : vector<1x128xf32> to vector<16x128xf32>
    %895 = arith.mulf %888, %894 : vector<16x128xf32>
    %896 = vector.extract_strided_slice %54 {offsets = [5, 0], sizes = [1, 128], strides = [1, 1]} : vector<25x128xf32> to vector<1x128xf32>
    %897 = vector.broadcast %896 : vector<1x128xf32> to vector<16x128xf32>
    %898 = arith.mulf %889, %897 : vector<16x128xf32>
    %899 = arith.addf %895, %898 : vector<16x128xf32>
    %900 = vector.extract_strided_slice %54 {offsets = [10, 0], sizes = [1, 128], strides = [1, 1]} : vector<25x128xf32> to vector<1x128xf32>
    %901 = vector.broadcast %900 : vector<1x128xf32> to vector<16x128xf32>
    %902 = arith.mulf %890, %901 : vector<16x128xf32>
    %903 = arith.addf %899, %902 : vector<16x128xf32>
    %904 = vector.extract_strided_slice %54 {offsets = [15, 0], sizes = [1, 128], strides = [1, 1]} : vector<25x128xf32> to vector<1x128xf32>
    %905 = vector.broadcast %904 : vector<1x128xf32> to vector<16x128xf32>
    %906 = arith.mulf %891, %905 : vector<16x128xf32>
    %907 = arith.addf %903, %906 : vector<16x128xf32>
    %908 = vector.extract_strided_slice %54 {offsets = [20, 0], sizes = [1, 128], strides = [1, 1]} : vector<25x128xf32> to vector<1x128xf32>
    %909 = vector.broadcast %908 : vector<1x128xf32> to vector<16x128xf32>
    %910 = arith.mulf %892, %909 : vector<16x128xf32>
    %911 = arith.addf %907, %910 : vector<16x128xf32>
    %c2_i32_143 = arith.constant 2 : i32
    %912 = tpu.dynamic_rotate %911 by %c2_i32_143 dim 0 : vector<16x128xf32>, i32 -> vector<16x128xf32>
    %913 = vector.extract_strided_slice %54 {offsets = [1, 0], sizes = [1, 128], strides = [1, 1]} : vector<25x128xf32> to vector<1x128xf32>
    %914 = vector.broadcast %913 : vector<1x128xf32> to vector<16x128xf32>
    %915 = arith.mulf %888, %914 : vector<16x128xf32>
    %916 = vector.extract_strided_slice %54 {offsets = [6, 0], sizes = [1, 128], strides = [1, 1]} : vector<25x128xf32> to vector<1x128xf32>
    %917 = vector.broadcast %916 : vector<1x128xf32> to vector<16x128xf32>
    %918 = arith.mulf %889, %917 : vector<16x128xf32>
    %919 = arith.addf %915, %918 : vector<16x128xf32>
    %920 = vector.extract_strided_slice %54 {offsets = [11, 0], sizes = [1, 128], strides = [1, 1]} : vector<25x128xf32> to vector<1x128xf32>
    %921 = vector.broadcast %920 : vector<1x128xf32> to vector<16x128xf32>
    %922 = arith.mulf %890, %921 : vector<16x128xf32>
    %923 = arith.addf %919, %922 : vector<16x128xf32>
    %924 = vector.extract_strided_slice %54 {offsets = [16, 0], sizes = [1, 128], strides = [1, 1]} : vector<25x128xf32> to vector<1x128xf32>
    %925 = vector.broadcast %924 : vector<1x128xf32> to vector<16x128xf32>
    %926 = arith.mulf %891, %925 : vector<16x128xf32>
    %927 = arith.addf %923, %926 : vector<16x128xf32>
    %928 = vector.extract_strided_slice %54 {offsets = [21, 0], sizes = [1, 128], strides = [1, 1]} : vector<25x128xf32> to vector<1x128xf32>
    %929 = vector.broadcast %928 : vector<1x128xf32> to vector<16x128xf32>
    %930 = arith.mulf %892, %929 : vector<16x128xf32>
    %931 = arith.addf %927, %930 : vector<16x128xf32>
    %c1_i32_144 = arith.constant 1 : i32
    %932 = tpu.dynamic_rotate %931 by %c1_i32_144 dim 0 : vector<16x128xf32>, i32 -> vector<16x128xf32>
    %933 = arith.addf %912, %932 : vector<16x128xf32>
    %934 = vector.extract_strided_slice %54 {offsets = [2, 0], sizes = [1, 128], strides = [1, 1]} : vector<25x128xf32> to vector<1x128xf32>
    %935 = vector.broadcast %934 : vector<1x128xf32> to vector<16x128xf32>
    %936 = arith.mulf %888, %935 : vector<16x128xf32>
    %937 = vector.extract_strided_slice %54 {offsets = [7, 0], sizes = [1, 128], strides = [1, 1]} : vector<25x128xf32> to vector<1x128xf32>
    %938 = vector.broadcast %937 : vector<1x128xf32> to vector<16x128xf32>
    %939 = arith.mulf %889, %938 : vector<16x128xf32>
    %940 = arith.addf %936, %939 : vector<16x128xf32>
    %941 = vector.extract_strided_slice %54 {offsets = [12, 0], sizes = [1, 128], strides = [1, 1]} : vector<25x128xf32> to vector<1x128xf32>
    %942 = vector.broadcast %941 : vector<1x128xf32> to vector<16x128xf32>
    %943 = arith.mulf %890, %942 : vector<16x128xf32>
    %944 = arith.addf %940, %943 : vector<16x128xf32>
    %945 = vector.extract_strided_slice %54 {offsets = [17, 0], sizes = [1, 128], strides = [1, 1]} : vector<25x128xf32> to vector<1x128xf32>
    %946 = vector.broadcast %945 : vector<1x128xf32> to vector<16x128xf32>
    %947 = arith.mulf %891, %946 : vector<16x128xf32>
    %948 = arith.addf %944, %947 : vector<16x128xf32>
    %949 = vector.extract_strided_slice %54 {offsets = [22, 0], sizes = [1, 128], strides = [1, 1]} : vector<25x128xf32> to vector<1x128xf32>
    %950 = vector.broadcast %949 : vector<1x128xf32> to vector<16x128xf32>
    %951 = arith.mulf %892, %950 : vector<16x128xf32>
    %952 = arith.addf %948, %951 : vector<16x128xf32>
    %953 = arith.addf %933, %952 : vector<16x128xf32>
    %954 = vector.extract_strided_slice %54 {offsets = [3, 0], sizes = [1, 128], strides = [1, 1]} : vector<25x128xf32> to vector<1x128xf32>
    %955 = vector.broadcast %954 : vector<1x128xf32> to vector<16x128xf32>
    %956 = arith.mulf %888, %955 : vector<16x128xf32>
    %957 = vector.extract_strided_slice %54 {offsets = [8, 0], sizes = [1, 128], strides = [1, 1]} : vector<25x128xf32> to vector<1x128xf32>
    %958 = vector.broadcast %957 : vector<1x128xf32> to vector<16x128xf32>
    %959 = arith.mulf %889, %958 : vector<16x128xf32>
    %960 = arith.addf %956, %959 : vector<16x128xf32>
    %961 = vector.extract_strided_slice %54 {offsets = [13, 0], sizes = [1, 128], strides = [1, 1]} : vector<25x128xf32> to vector<1x128xf32>
    %962 = vector.broadcast %961 : vector<1x128xf32> to vector<16x128xf32>
    %963 = arith.mulf %890, %962 : vector<16x128xf32>
    %964 = arith.addf %960, %963 : vector<16x128xf32>
    %965 = vector.extract_strided_slice %54 {offsets = [18, 0], sizes = [1, 128], strides = [1, 1]} : vector<25x128xf32> to vector<1x128xf32>
    %966 = vector.broadcast %965 : vector<1x128xf32> to vector<16x128xf32>
    %967 = arith.mulf %891, %966 : vector<16x128xf32>
    %968 = arith.addf %964, %967 : vector<16x128xf32>
    %969 = vector.extract_strided_slice %54 {offsets = [23, 0], sizes = [1, 128], strides = [1, 1]} : vector<25x128xf32> to vector<1x128xf32>
    %970 = vector.broadcast %969 : vector<1x128xf32> to vector<16x128xf32>
    %971 = arith.mulf %892, %970 : vector<16x128xf32>
    %972 = arith.addf %968, %971 : vector<16x128xf32>
    %c15_i32_145 = arith.constant 15 : i32
    %973 = tpu.dynamic_rotate %972 by %c15_i32_145 dim 0 : vector<16x128xf32>, i32 -> vector<16x128xf32>
    %974 = arith.addf %953, %973 : vector<16x128xf32>
    %975 = vector.extract_strided_slice %54 {offsets = [4, 0], sizes = [1, 128], strides = [1, 1]} : vector<25x128xf32> to vector<1x128xf32>
    %976 = vector.broadcast %975 : vector<1x128xf32> to vector<16x128xf32>
    %977 = arith.mulf %888, %976 : vector<16x128xf32>
    %978 = vector.extract_strided_slice %54 {offsets = [9, 0], sizes = [1, 128], strides = [1, 1]} : vector<25x128xf32> to vector<1x128xf32>
    %979 = vector.broadcast %978 : vector<1x128xf32> to vector<16x128xf32>
    %980 = arith.mulf %889, %979 : vector<16x128xf32>
    %981 = arith.addf %977, %980 : vector<16x128xf32>
    %982 = vector.extract_strided_slice %54 {offsets = [14, 0], sizes = [1, 128], strides = [1, 1]} : vector<25x128xf32> to vector<1x128xf32>
    %983 = vector.broadcast %982 : vector<1x128xf32> to vector<16x128xf32>
    %984 = arith.mulf %890, %983 : vector<16x128xf32>
    %985 = arith.addf %981, %984 : vector<16x128xf32>
    %986 = vector.extract_strided_slice %54 {offsets = [19, 0], sizes = [1, 128], strides = [1, 1]} : vector<25x128xf32> to vector<1x128xf32>
    %987 = vector.broadcast %986 : vector<1x128xf32> to vector<16x128xf32>
    %988 = arith.mulf %891, %987 : vector<16x128xf32>
    %989 = arith.addf %985, %988 : vector<16x128xf32>
    %990 = vector.extract_strided_slice %54 {offsets = [24, 0], sizes = [1, 128], strides = [1, 1]} : vector<25x128xf32> to vector<1x128xf32>
    %991 = vector.broadcast %990 : vector<1x128xf32> to vector<16x128xf32>
    %992 = arith.mulf %892, %991 : vector<16x128xf32>
    %993 = arith.addf %989, %992 : vector<16x128xf32>
    %c14_i32_146 = arith.constant 14 : i32
    %994 = tpu.dynamic_rotate %993 by %c14_i32_146 dim 0 : vector<16x128xf32>, i32 -> vector<16x128xf32>
    %995 = arith.addf %974, %994 : vector<16x128xf32>
    %996 = vector.extract_strided_slice %995 {offsets = [0, 0], sizes = [14, 128], strides = [1, 1]} : vector<16x128xf32> to vector<14x128xf32>
    %c8 = arith.constant 8 : index
    %c0_147 = arith.constant 0 : index
    %c0_148 = arith.constant 0 : index
    %997 = vector.load %arg6[%c8, %c0_147, %c0_148] : memref<14x14x128xf32, #tpu.memory_space<vmem>>, vector<1x14x128xf32>
    %998 = vector.shape_cast %997 : vector<1x14x128xf32> to vector<14x128xf32>
    %999 = vector.shape_cast %996 : vector<14x128xf32> to vector<1x14x128xf32>
    tpu.vector_store %arg6[%c8, %c0_147, %c0_148], %999 {strides = array<i32>} : memref<14x14x128xf32, #tpu.memory_space<vmem>>, vector<1x14x128xf32>,
    %c112_149 = arith.constant 112 : index
    %c0_150 = arith.constant 0 : index
    %1000 = vector.load %arg7[%c112_149, %c0_150] : memref<224x128xf32, #tpu.memory_space<vmem>>, vector<16x128xf32>
    %c128_151 = arith.constant 128 : index
    %c0_152 = arith.constant 0 : index
    %1001 = vector.load %arg7[%c128_151, %c0_152] : memref<224x128xf32, #tpu.memory_space<vmem>>, vector<16x128xf32>
    %c144_153 = arith.constant 144 : index
    %c0_154 = arith.constant 0 : index
    %1002 = vector.load %arg7[%c144_153, %c0_154] : memref<224x128xf32, #tpu.memory_space<vmem>>, vector<16x128xf32>
    %c160_155 = arith.constant 160 : index
    %c0_156 = arith.constant 0 : index
    %1003 = vector.load %arg7[%c160_155, %c0_156] : memref<224x128xf32, #tpu.memory_space<vmem>>, vector<16x128xf32>
    %c176 = arith.constant 176 : index
    %c0_157 = arith.constant 0 : index
    %1004 = vector.load %arg7[%c176, %c0_157] : memref<224x128xf32, #tpu.memory_space<vmem>>, vector<16x128xf32>
    %1005 = vector.extract_strided_slice %54 {offsets = [0, 0], sizes = [1, 128], strides = [1, 1]} : vector<25x128xf32> to vector<1x128xf32>
    %1006 = vector.broadcast %1005 : vector<1x128xf32> to vector<16x128xf32>
    %1007 = arith.mulf %1000, %1006 : vector<16x128xf32>
    %1008 = vector.extract_strided_slice %54 {offsets = [5, 0], sizes = [1, 128], strides = [1, 1]} : vector<25x128xf32> to vector<1x128xf32>
    %1009 = vector.broadcast %1008 : vector<1x128xf32> to vector<16x128xf32>
    %1010 = arith.mulf %1001, %1009 : vector<16x128xf32>
    %1011 = arith.addf %1007, %1010 : vector<16x128xf32>
    %1012 = vector.extract_strided_slice %54 {offsets = [10, 0], sizes = [1, 128], strides = [1, 1]} : vector<25x128xf32> to vector<1x128xf32>
    %1013 = vector.broadcast %1012 : vector<1x128xf32> to vector<16x128xf32>
    %1014 = arith.mulf %1002, %1013 : vector<16x128xf32>
    %1015 = arith.addf %1011, %1014 : vector<16x128xf32>
    %1016 = vector.extract_strided_slice %54 {offsets = [15, 0], sizes = [1, 128], strides = [1, 1]} : vector<25x128xf32> to vector<1x128xf32>
    %1017 = vector.broadcast %1016 : vector<1x128xf32> to vector<16x128xf32>
    %1018 = arith.mulf %1003, %1017 : vector<16x128xf32>
    %1019 = arith.addf %1015, %1018 : vector<16x128xf32>
    %1020 = vector.extract_strided_slice %54 {offsets = [20, 0], sizes = [1, 128], strides = [1, 1]} : vector<25x128xf32> to vector<1x128xf32>
    %1021 = vector.broadcast %1020 : vector<1x128xf32> to vector<16x128xf32>
    %1022 = arith.mulf %1004, %1021 : vector<16x128xf32>
    %1023 = arith.addf %1019, %1022 : vector<16x128xf32>
    %c2_i32_158 = arith.constant 2 : i32
    %1024 = tpu.dynamic_rotate %1023 by %c2_i32_158 dim 0 : vector<16x128xf32>, i32 -> vector<16x128xf32>
    %1025 = vector.extract_strided_slice %54 {offsets = [1, 0], sizes = [1, 128], strides = [1, 1]} : vector<25x128xf32> to vector<1x128xf32>
    %1026 = vector.broadcast %1025 : vector<1x128xf32> to vector<16x128xf32>
    %1027 = arith.mulf %1000, %1026 : vector<16x128xf32>
    %1028 = vector.extract_strided_slice %54 {offsets = [6, 0], sizes = [1, 128], strides = [1, 1]} : vector<25x128xf32> to vector<1x128xf32>
    %1029 = vector.broadcast %1028 : vector<1x128xf32> to vector<16x128xf32>
    %1030 = arith.mulf %1001, %1029 : vector<16x128xf32>
    %1031 = arith.addf %1027, %1030 : vector<16x128xf32>
    %1032 = vector.extract_strided_slice %54 {offsets = [11, 0], sizes = [1, 128], strides = [1, 1]} : vector<25x128xf32> to vector<1x128xf32>
    %1033 = vector.broadcast %1032 : vector<1x128xf32> to vector<16x128xf32>
    %1034 = arith.mulf %1002, %1033 : vector<16x128xf32>
    %1035 = arith.addf %1031, %1034 : vector<16x128xf32>
    %1036 = vector.extract_strided_slice %54 {offsets = [16, 0], sizes = [1, 128], strides = [1, 1]} : vector<25x128xf32> to vector<1x128xf32>
    %1037 = vector.broadcast %1036 : vector<1x128xf32> to vector<16x128xf32>
    %1038 = arith.mulf %1003, %1037 : vector<16x128xf32>
    %1039 = arith.addf %1035, %1038 : vector<16x128xf32>
    %1040 = vector.extract_strided_slice %54 {offsets = [21, 0], sizes = [1, 128], strides = [1, 1]} : vector<25x128xf32> to vector<1x128xf32>
    %1041 = vector.broadcast %1040 : vector<1x128xf32> to vector<16x128xf32>
    %1042 = arith.mulf %1004, %1041 : vector<16x128xf32>
    %1043 = arith.addf %1039, %1042 : vector<16x128xf32>
    %c1_i32_159 = arith.constant 1 : i32
    %1044 = tpu.dynamic_rotate %1043 by %c1_i32_159 dim 0 : vector<16x128xf32>, i32 -> vector<16x128xf32>
    %1045 = arith.addf %1024, %1044 : vector<16x128xf32>
    %1046 = vector.extract_strided_slice %54 {offsets = [2, 0], sizes = [1, 128], strides = [1, 1]} : vector<25x128xf32> to vector<1x128xf32>
    %1047 = vector.broadcast %1046 : vector<1x128xf32> to vector<16x128xf32>
    %1048 = arith.mulf %1000, %1047 : vector<16x128xf32>
    %1049 = vector.extract_strided_slice %54 {offsets = [7, 0], sizes = [1, 128], strides = [1, 1]} : vector<25x128xf32> to vector<1x128xf32>
    %1050 = vector.broadcast %1049 : vector<1x128xf32> to vector<16x128xf32>
    %1051 = arith.mulf %1001, %1050 : vector<16x128xf32>
    %1052 = arith.addf %1048, %1051 : vector<16x128xf32>
    %1053 = vector.extract_strided_slice %54 {offsets = [12, 0], sizes = [1, 128], strides = [1, 1]} : vector<25x128xf32> to vector<1x128xf32>
    %1054 = vector.broadcast %1053 : vector<1x128xf32> to vector<16x128xf32>
    %1055 = arith.mulf %1002, %1054 : vector<16x128xf32>
    %1056 = arith.addf %1052, %1055 : vector<16x128xf32>
    %1057 = vector.extract_strided_slice %54 {offsets = [17, 0], sizes = [1, 128], strides = [1, 1]} : vector<25x128xf32> to vector<1x128xf32>
    %1058 = vector.broadcast %1057 : vector<1x128xf32> to vector<16x128xf32>
    %1059 = arith.mulf %1003, %1058 : vector<16x128xf32>
    %1060 = arith.addf %1056, %1059 : vector<16x128xf32>
    %1061 = vector.extract_strided_slice %54 {offsets = [22, 0], sizes = [1, 128], strides = [1, 1]} : vector<25x128xf32> to vector<1x128xf32>
    %1062 = vector.broadcast %1061 : vector<1x128xf32> to vector<16x128xf32>
    %1063 = arith.mulf %1004, %1062 : vector<16x128xf32>
    %1064 = arith.addf %1060, %1063 : vector<16x128xf32>
    %1065 = arith.addf %1045, %1064 : vector<16x128xf32>
    %1066 = vector.extract_strided_slice %54 {offsets = [3, 0], sizes = [1, 128], strides = [1, 1]} : vector<25x128xf32> to vector<1x128xf32>
    %1067 = vector.broadcast %1066 : vector<1x128xf32> to vector<16x128xf32>
    %1068 = arith.mulf %1000, %1067 : vector<16x128xf32>
    %1069 = vector.extract_strided_slice %54 {offsets = [8, 0], sizes = [1, 128], strides = [1, 1]} : vector<25x128xf32> to vector<1x128xf32>
    %1070 = vector.broadcast %1069 : vector<1x128xf32> to vector<16x128xf32>
    %1071 = arith.mulf %1001, %1070 : vector<16x128xf32>
    %1072 = arith.addf %1068, %1071 : vector<16x128xf32>
    %1073 = vector.extract_strided_slice %54 {offsets = [13, 0], sizes = [1, 128], strides = [1, 1]} : vector<25x128xf32> to vector<1x128xf32>
    %1074 = vector.broadcast %1073 : vector<1x128xf32> to vector<16x128xf32>
    %1075 = arith.mulf %1002, %1074 : vector<16x128xf32>
    %1076 = arith.addf %1072, %1075 : vector<16x128xf32>
    %1077 = vector.extract_strided_slice %54 {offsets = [18, 0], sizes = [1, 128], strides = [1, 1]} : vector<25x128xf32> to vector<1x128xf32>
    %1078 = vector.broadcast %1077 : vector<1x128xf32> to vector<16x128xf32>
    %1079 = arith.mulf %1003, %1078 : vector<16x128xf32>
    %1080 = arith.addf %1076, %1079 : vector<16x128xf32>
    %1081 = vector.extract_strided_slice %54 {offsets = [23, 0], sizes = [1, 128], strides = [1, 1]} : vector<25x128xf32> to vector<1x128xf32>
    %1082 = vector.broadcast %1081 : vector<1x128xf32> to vector<16x128xf32>
    %1083 = arith.mulf %1004, %1082 : vector<16x128xf32>
    %1084 = arith.addf %1080, %1083 : vector<16x128xf32>
    %c15_i32_160 = arith.constant 15 : i32
    %1085 = tpu.dynamic_rotate %1084 by %c15_i32_160 dim 0 : vector<16x128xf32>, i32 -> vector<16x128xf32>
    %1086 = arith.addf %1065, %1085 : vector<16x128xf32>
    %1087 = vector.extract_strided_slice %54 {offsets = [4, 0], sizes = [1, 128], strides = [1, 1]} : vector<25x128xf32> to vector<1x128xf32>
    %1088 = vector.broadcast %1087 : vector<1x128xf32> to vector<16x128xf32>
    %1089 = arith.mulf %1000, %1088 : vector<16x128xf32>
    %1090 = vector.extract_strided_slice %54 {offsets = [9, 0], sizes = [1, 128], strides = [1, 1]} : vector<25x128xf32> to vector<1x128xf32>
    %1091 = vector.broadcast %1090 : vector<1x128xf32> to vector<16x128xf32>
    %1092 = arith.mulf %1001, %1091 : vector<16x128xf32>
    %1093 = arith.addf %1089, %1092 : vector<16x128xf32>
    %1094 = vector.extract_strided_slice %54 {offsets = [14, 0], sizes = [1, 128], strides = [1, 1]} : vector<25x128xf32> to vector<1x128xf32>
    %1095 = vector.broadcast %1094 : vector<1x128xf32> to vector<16x128xf32>
    %1096 = arith.mulf %1002, %1095 : vector<16x128xf32>
    %1097 = arith.addf %1093, %1096 : vector<16x128xf32>
    %1098 = vector.extract_strided_slice %54 {offsets = [19, 0], sizes = [1, 128], strides = [1, 1]} : vector<25x128xf32> to vector<1x128xf32>
    %1099 = vector.broadcast %1098 : vector<1x128xf32> to vector<16x128xf32>
    %1100 = arith.mulf %1003, %1099 : vector<16x128xf32>
    %1101 = arith.addf %1097, %1100 : vector<16x128xf32>
    %1102 = vector.extract_strided_slice %54 {offsets = [24, 0], sizes = [1, 128], strides = [1, 1]} : vector<25x128xf32> to vector<1x128xf32>
    %1103 = vector.broadcast %1102 : vector<1x128xf32> to vector<16x128xf32>
    %1104 = arith.mulf %1004, %1103 : vector<16x128xf32>
    %1105 = arith.addf %1101, %1104 : vector<16x128xf32>
    %c14_i32_161 = arith.constant 14 : i32
    %1106 = tpu.dynamic_rotate %1105 by %c14_i32_161 dim 0 : vector<16x128xf32>, i32 -> vector<16x128xf32>
    %1107 = arith.addf %1086, %1106 : vector<16x128xf32>
    %1108 = vector.extract_strided_slice %1107 {offsets = [0, 0], sizes = [14, 128], strides = [1, 1]} : vector<16x128xf32> to vector<14x128xf32>
    %c9 = arith.constant 9 : index
    %c0_162 = arith.constant 0 : index
    %c0_163 = arith.constant 0 : index
    %1109 = vector.load %arg6[%c9, %c0_162, %c0_163] : memref<14x14x128xf32, #tpu.memory_space<vmem>>, vector<1x14x128xf32>
    %1110 = vector.shape_cast %1109 : vector<1x14x128xf32> to vector<14x128xf32>
    %1111 = vector.shape_cast %1108 : vector<14x128xf32> to vector<1x14x128xf32>
    tpu.vector_store %arg6[%c9, %c0_162, %c0_163], %1111 {strides = array<i32>} : memref<14x14x128xf32, #tpu.memory_space<vmem>>, vector<1x14x128xf32>,
    %c128_164 = arith.constant 128 : index
    %c0_165 = arith.constant 0 : index
    %1112 = vector.load %arg7[%c128_164, %c0_165] : memref<224x128xf32, #tpu.memory_space<vmem>>, vector<16x128xf32>
    %c144_166 = arith.constant 144 : index
    %c0_167 = arith.constant 0 : index
    %1113 = vector.load %arg7[%c144_166, %c0_167] : memref<224x128xf32, #tpu.memory_space<vmem>>, vector<16x128xf32>
    %c160_168 = arith.constant 160 : index
    %c0_169 = arith.constant 0 : index
    %1114 = vector.load %arg7[%c160_168, %c0_169] : memref<224x128xf32, #tpu.memory_space<vmem>>, vector<16x128xf32>
    %c176_170 = arith.constant 176 : index
    %c0_171 = arith.constant 0 : index
    %1115 = vector.load %arg7[%c176_170, %c0_171] : memref<224x128xf32, #tpu.memory_space<vmem>>, vector<16x128xf32>
    %c192 = arith.constant 192 : index
    %c0_172 = arith.constant 0 : index
    %1116 = vector.load %arg7[%c192, %c0_172] : memref<224x128xf32, #tpu.memory_space<vmem>>, vector<16x128xf32>
    %1117 = vector.extract_strided_slice %54 {offsets = [0, 0], sizes = [1, 128], strides = [1, 1]} : vector<25x128xf32> to vector<1x128xf32>
    %1118 = vector.broadcast %1117 : vector<1x128xf32> to vector<16x128xf32>
    %1119 = arith.mulf %1112, %1118 : vector<16x128xf32>
    %1120 = vector.extract_strided_slice %54 {offsets = [5, 0], sizes = [1, 128], strides = [1, 1]} : vector<25x128xf32> to vector<1x128xf32>
    %1121 = vector.broadcast %1120 : vector<1x128xf32> to vector<16x128xf32>
    %1122 = arith.mulf %1113, %1121 : vector<16x128xf32>
    %1123 = arith.addf %1119, %1122 : vector<16x128xf32>
    %1124 = vector.extract_strided_slice %54 {offsets = [10, 0], sizes = [1, 128], strides = [1, 1]} : vector<25x128xf32> to vector<1x128xf32>
    %1125 = vector.broadcast %1124 : vector<1x128xf32> to vector<16x128xf32>
    %1126 = arith.mulf %1114, %1125 : vector<16x128xf32>
    %1127 = arith.addf %1123, %1126 : vector<16x128xf32>
    %1128 = vector.extract_strided_slice %54 {offsets = [15, 0], sizes = [1, 128], strides = [1, 1]} : vector<25x128xf32> to vector<1x128xf32>
    %1129 = vector.broadcast %1128 : vector<1x128xf32> to vector<16x128xf32>
    %1130 = arith.mulf %1115, %1129 : vector<16x128xf32>
    %1131 = arith.addf %1127, %1130 : vector<16x128xf32>
    %1132 = vector.extract_strided_slice %54 {offsets = [20, 0], sizes = [1, 128], strides = [1, 1]} : vector<25x128xf32> to vector<1x128xf32>
    %1133 = vector.broadcast %1132 : vector<1x128xf32> to vector<16x128xf32>
    %1134 = arith.mulf %1116, %1133 : vector<16x128xf32>
    %1135 = arith.addf %1131, %1134 : vector<16x128xf32>
    %c2_i32_173 = arith.constant 2 : i32
    %1136 = tpu.dynamic_rotate %1135 by %c2_i32_173 dim 0 : vector<16x128xf32>, i32 -> vector<16x128xf32>
    %1137 = vector.extract_strided_slice %54 {offsets = [1, 0], sizes = [1, 128], strides = [1, 1]} : vector<25x128xf32> to vector<1x128xf32>
    %1138 = vector.broadcast %1137 : vector<1x128xf32> to vector<16x128xf32>
    %1139 = arith.mulf %1112, %1138 : vector<16x128xf32>
    %1140 = vector.extract_strided_slice %54 {offsets = [6, 0], sizes = [1, 128], strides = [1, 1]} : vector<25x128xf32> to vector<1x128xf32>
    %1141 = vector.broadcast %1140 : vector<1x128xf32> to vector<16x128xf32>
    %1142 = arith.mulf %1113, %1141 : vector<16x128xf32>
    %1143 = arith.addf %1139, %1142 : vector<16x128xf32>
    %1144 = vector.extract_strided_slice %54 {offsets = [11, 0], sizes = [1, 128], strides = [1, 1]} : vector<25x128xf32> to vector<1x128xf32>
    %1145 = vector.broadcast %1144 : vector<1x128xf32> to vector<16x128xf32>
    %1146 = arith.mulf %1114, %1145 : vector<16x128xf32>
    %1147 = arith.addf %1143, %1146 : vector<16x128xf32>
    %1148 = vector.extract_strided_slice %54 {offsets = [16, 0], sizes = [1, 128], strides = [1, 1]} : vector<25x128xf32> to vector<1x128xf32>
    %1149 = vector.broadcast %1148 : vector<1x128xf32> to vector<16x128xf32>
    %1150 = arith.mulf %1115, %1149 : vector<16x128xf32>
    %1151 = arith.addf %1147, %1150 : vector<16x128xf32>
    %1152 = vector.extract_strided_slice %54 {offsets = [21, 0], sizes = [1, 128], strides = [1, 1]} : vector<25x128xf32> to vector<1x128xf32>
    %1153 = vector.broadcast %1152 : vector<1x128xf32> to vector<16x128xf32>
    %1154 = arith.mulf %1116, %1153 : vector<16x128xf32>
    %1155 = arith.addf %1151, %1154 : vector<16x128xf32>
    %c1_i32_174 = arith.constant 1 : i32
    %1156 = tpu.dynamic_rotate %1155 by %c1_i32_174 dim 0 : vector<16x128xf32>, i32 -> vector<16x128xf32>
    %1157 = arith.addf %1136, %1156 : vector<16x128xf32>
    %1158 = vector.extract_strided_slice %54 {offsets = [2, 0], sizes = [1, 128], strides = [1, 1]} : vector<25x128xf32> to vector<1x128xf32>
    %1159 = vector.broadcast %1158 : vector<1x128xf32> to vector<16x128xf32>
    %1160 = arith.mulf %1112, %1159 : vector<16x128xf32>
    %1161 = vector.extract_strided_slice %54 {offsets = [7, 0], sizes = [1, 128], strides = [1, 1]} : vector<25x128xf32> to vector<1x128xf32>
    %1162 = vector.broadcast %1161 : vector<1x128xf32> to vector<16x128xf32>
    %1163 = arith.mulf %1113, %1162 : vector<16x128xf32>
    %1164 = arith.addf %1160, %1163 : vector<16x128xf32>
    %1165 = vector.extract_strided_slice %54 {offsets = [12, 0], sizes = [1, 128], strides = [1, 1]} : vector<25x128xf32> to vector<1x128xf32>
    %1166 = vector.broadcast %1165 : vector<1x128xf32> to vector<16x128xf32>
    %1167 = arith.mulf %1114, %1166 : vector<16x128xf32>
    %1168 = arith.addf %1164, %1167 : vector<16x128xf32>
    %1169 = vector.extract_strided_slice %54 {offsets = [17, 0], sizes = [1, 128], strides = [1, 1]} : vector<25x128xf32> to vector<1x128xf32>
    %1170 = vector.broadcast %1169 : vector<1x128xf32> to vector<16x128xf32>
    %1171 = arith.mulf %1115, %1170 : vector<16x128xf32>
    %1172 = arith.addf %1168, %1171 : vector<16x128xf32>
    %1173 = vector.extract_strided_slice %54 {offsets = [22, 0], sizes = [1, 128], strides = [1, 1]} : vector<25x128xf32> to vector<1x128xf32>
    %1174 = vector.broadcast %1173 : vector<1x128xf32> to vector<16x128xf32>
    %1175 = arith.mulf %1116, %1174 : vector<16x128xf32>
    %1176 = arith.addf %1172, %1175 : vector<16x128xf32>
    %1177 = arith.addf %1157, %1176 : vector<16x128xf32>
    %1178 = vector.extract_strided_slice %54 {offsets = [3, 0], sizes = [1, 128], strides = [1, 1]} : vector<25x128xf32> to vector<1x128xf32>
    %1179 = vector.broadcast %1178 : vector<1x128xf32> to vector<16x128xf32>
    %1180 = arith.mulf %1112, %1179 : vector<16x128xf32>
    %1181 = vector.extract_strided_slice %54 {offsets = [8, 0], sizes = [1, 128], strides = [1, 1]} : vector<25x128xf32> to vector<1x128xf32>
    %1182 = vector.broadcast %1181 : vector<1x128xf32> to vector<16x128xf32>
    %1183 = arith.mulf %1113, %1182 : vector<16x128xf32>
    %1184 = arith.addf %1180, %1183 : vector<16x128xf32>
    %1185 = vector.extract_strided_slice %54 {offsets = [13, 0], sizes = [1, 128], strides = [1, 1]} : vector<25x128xf32> to vector<1x128xf32>
    %1186 = vector.broadcast %1185 : vector<1x128xf32> to vector<16x128xf32>
    %1187 = arith.mulf %1114, %1186 : vector<16x128xf32>
    %1188 = arith.addf %1184, %1187 : vector<16x128xf32>
    %1189 = vector.extract_strided_slice %54 {offsets = [18, 0], sizes = [1, 128], strides = [1, 1]} : vector<25x128xf32> to vector<1x128xf32>
    %1190 = vector.broadcast %1189 : vector<1x128xf32> to vector<16x128xf32>
    %1191 = arith.mulf %1115, %1190 : vector<16x128xf32>
    %1192 = arith.addf %1188, %1191 : vector<16x128xf32>
    %1193 = vector.extract_strided_slice %54 {offsets = [23, 0], sizes = [1, 128], strides = [1, 1]} : vector<25x128xf32> to vector<1x128xf32>
    %1194 = vector.broadcast %1193 : vector<1x128xf32> to vector<16x128xf32>
    %1195 = arith.mulf %1116, %1194 : vector<16x128xf32>
    %1196 = arith.addf %1192, %1195 : vector<16x128xf32>
    %c15_i32_175 = arith.constant 15 : i32
    %1197 = tpu.dynamic_rotate %1196 by %c15_i32_175 dim 0 : vector<16x128xf32>, i32 -> vector<16x128xf32>
    %1198 = arith.addf %1177, %1197 : vector<16x128xf32>
    %1199 = vector.extract_strided_slice %54 {offsets = [4, 0], sizes = [1, 128], strides = [1, 1]} : vector<25x128xf32> to vector<1x128xf32>
    %1200 = vector.broadcast %1199 : vector<1x128xf32> to vector<16x128xf32>
    %1201 = arith.mulf %1112, %1200 : vector<16x128xf32>
    %1202 = vector.extract_strided_slice %54 {offsets = [9, 0], sizes = [1, 128], strides = [1, 1]} : vector<25x128xf32> to vector<1x128xf32>
    %1203 = vector.broadcast %1202 : vector<1x128xf32> to vector<16x128xf32>
    %1204 = arith.mulf %1113, %1203 : vector<16x128xf32>
    %1205 = arith.addf %1201, %1204 : vector<16x128xf32>
    %1206 = vector.extract_strided_slice %54 {offsets = [14, 0], sizes = [1, 128], strides = [1, 1]} : vector<25x128xf32> to vector<1x128xf32>
    %1207 = vector.broadcast %1206 : vector<1x128xf32> to vector<16x128xf32>
    %1208 = arith.mulf %1114, %1207 : vector<16x128xf32>
    %1209 = arith.addf %1205, %1208 : vector<16x128xf32>
    %1210 = vector.extract_strided_slice %54 {offsets = [19, 0], sizes = [1, 128], strides = [1, 1]} : vector<25x128xf32> to vector<1x128xf32>
    %1211 = vector.broadcast %1210 : vector<1x128xf32> to vector<16x128xf32>
    %1212 = arith.mulf %1115, %1211 : vector<16x128xf32>
    %1213 = arith.addf %1209, %1212 : vector<16x128xf32>
    %1214 = vector.extract_strided_slice %54 {offsets = [24, 0], sizes = [1, 128], strides = [1, 1]} : vector<25x128xf32> to vector<1x128xf32>
    %1215 = vector.broadcast %1214 : vector<1x128xf32> to vector<16x128xf32>
    %1216 = arith.mulf %1116, %1215 : vector<16x128xf32>
    %1217 = arith.addf %1213, %1216 : vector<16x128xf32>
    %c14_i32_176 = arith.constant 14 : i32
    %1218 = tpu.dynamic_rotate %1217 by %c14_i32_176 dim 0 : vector<16x128xf32>, i32 -> vector<16x128xf32>
    %1219 = arith.addf %1198, %1218 : vector<16x128xf32>
    %1220 = vector.extract_strided_slice %1219 {offsets = [0, 0], sizes = [14, 128], strides = [1, 1]} : vector<16x128xf32> to vector<14x128xf32>
    %c10 = arith.constant 10 : index
    %c0_177 = arith.constant 0 : index
    %c0_178 = arith.constant 0 : index
    %1221 = vector.load %arg6[%c10, %c0_177, %c0_178] : memref<14x14x128xf32, #tpu.memory_space<vmem>>, vector<1x14x128xf32>
    %1222 = vector.shape_cast %1221 : vector<1x14x128xf32> to vector<14x128xf32>
    %1223 = vector.shape_cast %1220 : vector<14x128xf32> to vector<1x14x128xf32>
    tpu.vector_store %arg6[%c10, %c0_177, %c0_178], %1223 {strides = array<i32>} : memref<14x14x128xf32, #tpu.memory_space<vmem>>, vector<1x14x128xf32>,
    %c144_179 = arith.constant 144 : index
    %c0_180 = arith.constant 0 : index
    %1224 = vector.load %arg7[%c144_179, %c0_180] : memref<224x128xf32, #tpu.memory_space<vmem>>, vector<16x128xf32>
    %c160_181 = arith.constant 160 : index
    %c0_182 = arith.constant 0 : index
    %1225 = vector.load %arg7[%c160_181, %c0_182] : memref<224x128xf32, #tpu.memory_space<vmem>>, vector<16x128xf32>
    %c176_183 = arith.constant 176 : index
    %c0_184 = arith.constant 0 : index
    %1226 = vector.load %arg7[%c176_183, %c0_184] : memref<224x128xf32, #tpu.memory_space<vmem>>, vector<16x128xf32>
    %c192_185 = arith.constant 192 : index
    %c0_186 = arith.constant 0 : index
    %1227 = vector.load %arg7[%c192_185, %c0_186] : memref<224x128xf32, #tpu.memory_space<vmem>>, vector<16x128xf32>
    %c208 = arith.constant 208 : index
    %c0_187 = arith.constant 0 : index
    %1228 = vector.load %arg7[%c208, %c0_187] : memref<224x128xf32, #tpu.memory_space<vmem>>, vector<16x128xf32>
    %1229 = vector.extract_strided_slice %54 {offsets = [0, 0], sizes = [1, 128], strides = [1, 1]} : vector<25x128xf32> to vector<1x128xf32>
    %1230 = vector.broadcast %1229 : vector<1x128xf32> to vector<16x128xf32>
    %1231 = arith.mulf %1224, %1230 : vector<16x128xf32>
    %1232 = vector.extract_strided_slice %54 {offsets = [5, 0], sizes = [1, 128], strides = [1, 1]} : vector<25x128xf32> to vector<1x128xf32>
    %1233 = vector.broadcast %1232 : vector<1x128xf32> to vector<16x128xf32>
    %1234 = arith.mulf %1225, %1233 : vector<16x128xf32>
    %1235 = arith.addf %1231, %1234 : vector<16x128xf32>
    %1236 = vector.extract_strided_slice %54 {offsets = [10, 0], sizes = [1, 128], strides = [1, 1]} : vector<25x128xf32> to vector<1x128xf32>
    %1237 = vector.broadcast %1236 : vector<1x128xf32> to vector<16x128xf32>
    %1238 = arith.mulf %1226, %1237 : vector<16x128xf32>
    %1239 = arith.addf %1235, %1238 : vector<16x128xf32>
    %1240 = vector.extract_strided_slice %54 {offsets = [15, 0], sizes = [1, 128], strides = [1, 1]} : vector<25x128xf32> to vector<1x128xf32>
    %1241 = vector.broadcast %1240 : vector<1x128xf32> to vector<16x128xf32>
    %1242 = arith.mulf %1227, %1241 : vector<16x128xf32>
    %1243 = arith.addf %1239, %1242 : vector<16x128xf32>
    %1244 = vector.extract_strided_slice %54 {offsets = [20, 0], sizes = [1, 128], strides = [1, 1]} : vector<25x128xf32> to vector<1x128xf32>
    %1245 = vector.broadcast %1244 : vector<1x128xf32> to vector<16x128xf32>
    %1246 = arith.mulf %1228, %1245 : vector<16x128xf32>
    %1247 = arith.addf %1243, %1246 : vector<16x128xf32>
    %c2_i32_188 = arith.constant 2 : i32
    %1248 = tpu.dynamic_rotate %1247 by %c2_i32_188 dim 0 : vector<16x128xf32>, i32 -> vector<16x128xf32>
    %1249 = vector.extract_strided_slice %54 {offsets = [1, 0], sizes = [1, 128], strides = [1, 1]} : vector<25x128xf32> to vector<1x128xf32>
    %1250 = vector.broadcast %1249 : vector<1x128xf32> to vector<16x128xf32>
    %1251 = arith.mulf %1224, %1250 : vector<16x128xf32>
    %1252 = vector.extract_strided_slice %54 {offsets = [6, 0], sizes = [1, 128], strides = [1, 1]} : vector<25x128xf32> to vector<1x128xf32>
    %1253 = vector.broadcast %1252 : vector<1x128xf32> to vector<16x128xf32>
    %1254 = arith.mulf %1225, %1253 : vector<16x128xf32>
    %1255 = arith.addf %1251, %1254 : vector<16x128xf32>
    %1256 = vector.extract_strided_slice %54 {offsets = [11, 0], sizes = [1, 128], strides = [1, 1]} : vector<25x128xf32> to vector<1x128xf32>
    %1257 = vector.broadcast %1256 : vector<1x128xf32> to vector<16x128xf32>
    %1258 = arith.mulf %1226, %1257 : vector<16x128xf32>
    %1259 = arith.addf %1255, %1258 : vector<16x128xf32>
    %1260 = vector.extract_strided_slice %54 {offsets = [16, 0], sizes = [1, 128], strides = [1, 1]} : vector<25x128xf32> to vector<1x128xf32>
    %1261 = vector.broadcast %1260 : vector<1x128xf32> to vector<16x128xf32>
    %1262 = arith.mulf %1227, %1261 : vector<16x128xf32>
    %1263 = arith.addf %1259, %1262 : vector<16x128xf32>
    %1264 = vector.extract_strided_slice %54 {offsets = [21, 0], sizes = [1, 128], strides = [1, 1]} : vector<25x128xf32> to vector<1x128xf32>
    %1265 = vector.broadcast %1264 : vector<1x128xf32> to vector<16x128xf32>
    %1266 = arith.mulf %1228, %1265 : vector<16x128xf32>
    %1267 = arith.addf %1263, %1266 : vector<16x128xf32>
    %c1_i32_189 = arith.constant 1 : i32
    %1268 = tpu.dynamic_rotate %1267 by %c1_i32_189 dim 0 : vector<16x128xf32>, i32 -> vector<16x128xf32>
    %1269 = arith.addf %1248, %1268 : vector<16x128xf32>
    %1270 = vector.extract_strided_slice %54 {offsets = [2, 0], sizes = [1, 128], strides = [1, 1]} : vector<25x128xf32> to vector<1x128xf32>
    %1271 = vector.broadcast %1270 : vector<1x128xf32> to vector<16x128xf32>
    %1272 = arith.mulf %1224, %1271 : vector<16x128xf32>
    %1273 = vector.extract_strided_slice %54 {offsets = [7, 0], sizes = [1, 128], strides = [1, 1]} : vector<25x128xf32> to vector<1x128xf32>
    %1274 = vector.broadcast %1273 : vector<1x128xf32> to vector<16x128xf32>
    %1275 = arith.mulf %1225, %1274 : vector<16x128xf32>
    %1276 = arith.addf %1272, %1275 : vector<16x128xf32>
    %1277 = vector.extract_strided_slice %54 {offsets = [12, 0], sizes = [1, 128], strides = [1, 1]} : vector<25x128xf32> to vector<1x128xf32>
    %1278 = vector.broadcast %1277 : vector<1x128xf32> to vector<16x128xf32>
    %1279 = arith.mulf %1226, %1278 : vector<16x128xf32>
    %1280 = arith.addf %1276, %1279 : vector<16x128xf32>
    %1281 = vector.extract_strided_slice %54 {offsets = [17, 0], sizes = [1, 128], strides = [1, 1]} : vector<25x128xf32> to vector<1x128xf32>
    %1282 = vector.broadcast %1281 : vector<1x128xf32> to vector<16x128xf32>
    %1283 = arith.mulf %1227, %1282 : vector<16x128xf32>
    %1284 = arith.addf %1280, %1283 : vector<16x128xf32>
    %1285 = vector.extract_strided_slice %54 {offsets = [22, 0], sizes = [1, 128], strides = [1, 1]} : vector<25x128xf32> to vector<1x128xf32>
    %1286 = vector.broadcast %1285 : vector<1x128xf32> to vector<16x128xf32>
    %1287 = arith.mulf %1228, %1286 : vector<16x128xf32>
    %1288 = arith.addf %1284, %1287 : vector<16x128xf32>
    %1289 = arith.addf %1269, %1288 : vector<16x128xf32>
    %1290 = vector.extract_strided_slice %54 {offsets = [3, 0], sizes = [1, 128], strides = [1, 1]} : vector<25x128xf32> to vector<1x128xf32>
    %1291 = vector.broadcast %1290 : vector<1x128xf32> to vector<16x128xf32>
    %1292 = arith.mulf %1224, %1291 : vector<16x128xf32>
    %1293 = vector.extract_strided_slice %54 {offsets = [8, 0], sizes = [1, 128], strides = [1, 1]} : vector<25x128xf32> to vector<1x128xf32>
    %1294 = vector.broadcast %1293 : vector<1x128xf32> to vector<16x128xf32>
    %1295 = arith.mulf %1225, %1294 : vector<16x128xf32>
    %1296 = arith.addf %1292, %1295 : vector<16x128xf32>
    %1297 = vector.extract_strided_slice %54 {offsets = [13, 0], sizes = [1, 128], strides = [1, 1]} : vector<25x128xf32> to vector<1x128xf32>
    %1298 = vector.broadcast %1297 : vector<1x128xf32> to vector<16x128xf32>
    %1299 = arith.mulf %1226, %1298 : vector<16x128xf32>
    %1300 = arith.addf %1296, %1299 : vector<16x128xf32>
    %1301 = vector.extract_strided_slice %54 {offsets = [18, 0], sizes = [1, 128], strides = [1, 1]} : vector<25x128xf32> to vector<1x128xf32>
    %1302 = vector.broadcast %1301 : vector<1x128xf32> to vector<16x128xf32>
    %1303 = arith.mulf %1227, %1302 : vector<16x128xf32>
    %1304 = arith.addf %1300, %1303 : vector<16x128xf32>
    %1305 = vector.extract_strided_slice %54 {offsets = [23, 0], sizes = [1, 128], strides = [1, 1]} : vector<25x128xf32> to vector<1x128xf32>
    %1306 = vector.broadcast %1305 : vector<1x128xf32> to vector<16x128xf32>
    %1307 = arith.mulf %1228, %1306 : vector<16x128xf32>
    %1308 = arith.addf %1304, %1307 : vector<16x128xf32>
    %c15_i32_190 = arith.constant 15 : i32
    %1309 = tpu.dynamic_rotate %1308 by %c15_i32_190 dim 0 : vector<16x128xf32>, i32 -> vector<16x128xf32>
    %1310 = arith.addf %1289, %1309 : vector<16x128xf32>
    %1311 = vector.extract_strided_slice %54 {offsets = [4, 0], sizes = [1, 128], strides = [1, 1]} : vector<25x128xf32> to vector<1x128xf32>
    %1312 = vector.broadcast %1311 : vector<1x128xf32> to vector<16x128xf32>
    %1313 = arith.mulf %1224, %1312 : vector<16x128xf32>
    %1314 = vector.extract_strided_slice %54 {offsets = [9, 0], sizes = [1, 128], strides = [1, 1]} : vector<25x128xf32> to vector<1x128xf32>
    %1315 = vector.broadcast %1314 : vector<1x128xf32> to vector<16x128xf32>
    %1316 = arith.mulf %1225, %1315 : vector<16x128xf32>
    %1317 = arith.addf %1313, %1316 : vector<16x128xf32>
    %1318 = vector.extract_strided_slice %54 {offsets = [14, 0], sizes = [1, 128], strides = [1, 1]} : vector<25x128xf32> to vector<1x128xf32>
    %1319 = vector.broadcast %1318 : vector<1x128xf32> to vector<16x128xf32>
    %1320 = arith.mulf %1226, %1319 : vector<16x128xf32>
    %1321 = arith.addf %1317, %1320 : vector<16x128xf32>
    %1322 = vector.extract_strided_slice %54 {offsets = [19, 0], sizes = [1, 128], strides = [1, 1]} : vector<25x128xf32> to vector<1x128xf32>
    %1323 = vector.broadcast %1322 : vector<1x128xf32> to vector<16x128xf32>
    %1324 = arith.mulf %1227, %1323 : vector<16x128xf32>
    %1325 = arith.addf %1321, %1324 : vector<16x128xf32>
    %1326 = vector.extract_strided_slice %54 {offsets = [24, 0], sizes = [1, 128], strides = [1, 1]} : vector<25x128xf32> to vector<1x128xf32>
    %1327 = vector.broadcast %1326 : vector<1x128xf32> to vector<16x128xf32>
    %1328 = arith.mulf %1228, %1327 : vector<16x128xf32>
    %1329 = arith.addf %1325, %1328 : vector<16x128xf32>
    %c14_i32_191 = arith.constant 14 : i32
    %1330 = tpu.dynamic_rotate %1329 by %c14_i32_191 dim 0 : vector<16x128xf32>, i32 -> vector<16x128xf32>
    %1331 = arith.addf %1310, %1330 : vector<16x128xf32>
    %1332 = vector.extract_strided_slice %1331 {offsets = [0, 0], sizes = [14, 128], strides = [1, 1]} : vector<16x128xf32> to vector<14x128xf32>
    %c11 = arith.constant 11 : index
    %c0_192 = arith.constant 0 : index
    %c0_193 = arith.constant 0 : index
    %1333 = vector.load %arg6[%c11, %c0_192, %c0_193] : memref<14x14x128xf32, #tpu.memory_space<vmem>>, vector<1x14x128xf32>
    %1334 = vector.shape_cast %1333 : vector<1x14x128xf32> to vector<14x128xf32>
    %1335 = vector.shape_cast %1332 : vector<14x128xf32> to vector<1x14x128xf32>
    tpu.vector_store %arg6[%c11, %c0_192, %c0_193], %1335 {strides = array<i32>} : memref<14x14x128xf32, #tpu.memory_space<vmem>>, vector<1x14x128xf32>,
    %c160_194 = arith.constant 160 : index
    %c0_195 = arith.constant 0 : index
    %1336 = vector.load %arg7[%c160_194, %c0_195] : memref<224x128xf32, #tpu.memory_space<vmem>>, vector<16x128xf32>
    %c176_196 = arith.constant 176 : index
    %c0_197 = arith.constant 0 : index
    %1337 = vector.load %arg7[%c176_196, %c0_197] : memref<224x128xf32, #tpu.memory_space<vmem>>, vector<16x128xf32>
    %c192_198 = arith.constant 192 : index
    %c0_199 = arith.constant 0 : index
    %1338 = vector.load %arg7[%c192_198, %c0_199] : memref<224x128xf32, #tpu.memory_space<vmem>>, vector<16x128xf32>
    %c208_200 = arith.constant 208 : index
    %c0_201 = arith.constant 0 : index
    %1339 = vector.load %arg7[%c208_200, %c0_201] : memref<224x128xf32, #tpu.memory_space<vmem>>, vector<16x128xf32>
    %1340 = vector.extract_strided_slice %54 {offsets = [0, 0], sizes = [1, 128], strides = [1, 1]} : vector<25x128xf32> to vector<1x128xf32>
    %1341 = vector.broadcast %1340 : vector<1x128xf32> to vector<16x128xf32>
    %1342 = arith.mulf %1336, %1341 : vector<16x128xf32>
    %1343 = vector.extract_strided_slice %54 {offsets = [5, 0], sizes = [1, 128], strides = [1, 1]} : vector<25x128xf32> to vector<1x128xf32>
    %1344 = vector.broadcast %1343 : vector<1x128xf32> to vector<16x128xf32>
    %1345 = arith.mulf %1337, %1344 : vector<16x128xf32>
    %1346 = arith.addf %1342, %1345 : vector<16x128xf32>
    %1347 = vector.extract_strided_slice %54 {offsets = [10, 0], sizes = [1, 128], strides = [1, 1]} : vector<25x128xf32> to vector<1x128xf32>
    %1348 = vector.broadcast %1347 : vector<1x128xf32> to vector<16x128xf32>
    %1349 = arith.mulf %1338, %1348 : vector<16x128xf32>
    %1350 = arith.addf %1346, %1349 : vector<16x128xf32>
    %1351 = vector.extract_strided_slice %54 {offsets = [15, 0], sizes = [1, 128], strides = [1, 1]} : vector<25x128xf32> to vector<1x128xf32>
    %1352 = vector.broadcast %1351 : vector<1x128xf32> to vector<16x128xf32>
    %1353 = arith.mulf %1339, %1352 : vector<16x128xf32>
    %1354 = arith.addf %1350, %1353 : vector<16x128xf32>
    %c2_i32_202 = arith.constant 2 : i32
    %1355 = tpu.dynamic_rotate %1354 by %c2_i32_202 dim 0 : vector<16x128xf32>, i32 -> vector<16x128xf32>
    %1356 = vector.extract_strided_slice %54 {offsets = [1, 0], sizes = [1, 128], strides = [1, 1]} : vector<25x128xf32> to vector<1x128xf32>
    %1357 = vector.broadcast %1356 : vector<1x128xf32> to vector<16x128xf32>
    %1358 = arith.mulf %1336, %1357 : vector<16x128xf32>
    %1359 = vector.extract_strided_slice %54 {offsets = [6, 0], sizes = [1, 128], strides = [1, 1]} : vector<25x128xf32> to vector<1x128xf32>
    %1360 = vector.broadcast %1359 : vector<1x128xf32> to vector<16x128xf32>
    %1361 = arith.mulf %1337, %1360 : vector<16x128xf32>
    %1362 = arith.addf %1358, %1361 : vector<16x128xf32>
    %1363 = vector.extract_strided_slice %54 {offsets = [11, 0], sizes = [1, 128], strides = [1, 1]} : vector<25x128xf32> to vector<1x128xf32>
    %1364 = vector.broadcast %1363 : vector<1x128xf32> to vector<16x128xf32>
    %1365 = arith.mulf %1338, %1364 : vector<16x128xf32>
    %1366 = arith.addf %1362, %1365 : vector<16x128xf32>
    %1367 = vector.extract_strided_slice %54 {offsets = [16, 0], sizes = [1, 128], strides = [1, 1]} : vector<25x128xf32> to vector<1x128xf32>
    %1368 = vector.broadcast %1367 : vector<1x128xf32> to vector<16x128xf32>
    %1369 = arith.mulf %1339, %1368 : vector<16x128xf32>
    %1370 = arith.addf %1366, %1369 : vector<16x128xf32>
    %c1_i32_203 = arith.constant 1 : i32
    %1371 = tpu.dynamic_rotate %1370 by %c1_i32_203 dim 0 : vector<16x128xf32>, i32 -> vector<16x128xf32>
    %1372 = arith.addf %1355, %1371 : vector<16x128xf32>
    %1373 = vector.extract_strided_slice %54 {offsets = [2, 0], sizes = [1, 128], strides = [1, 1]} : vector<25x128xf32> to vector<1x128xf32>
    %1374 = vector.broadcast %1373 : vector<1x128xf32> to vector<16x128xf32>
    %1375 = arith.mulf %1336, %1374 : vector<16x128xf32>
    %1376 = vector.extract_strided_slice %54 {offsets = [7, 0], sizes = [1, 128], strides = [1, 1]} : vector<25x128xf32> to vector<1x128xf32>
    %1377 = vector.broadcast %1376 : vector<1x128xf32> to vector<16x128xf32>
    %1378 = arith.mulf %1337, %1377 : vector<16x128xf32>
    %1379 = arith.addf %1375, %1378 : vector<16x128xf32>
    %1380 = vector.extract_strided_slice %54 {offsets = [12, 0], sizes = [1, 128], strides = [1, 1]} : vector<25x128xf32> to vector<1x128xf32>
    %1381 = vector.broadcast %1380 : vector<1x128xf32> to vector<16x128xf32>
    %1382 = arith.mulf %1338, %1381 : vector<16x128xf32>
    %1383 = arith.addf %1379, %1382 : vector<16x128xf32>
    %1384 = vector.extract_strided_slice %54 {offsets = [17, 0], sizes = [1, 128], strides = [1, 1]} : vector<25x128xf32> to vector<1x128xf32>
    %1385 = vector.broadcast %1384 : vector<1x128xf32> to vector<16x128xf32>
    %1386 = arith.mulf %1339, %1385 : vector<16x128xf32>
    %1387 = arith.addf %1383, %1386 : vector<16x128xf32>
    %1388 = arith.addf %1372, %1387 : vector<16x128xf32>
    %1389 = vector.extract_strided_slice %54 {offsets = [3, 0], sizes = [1, 128], strides = [1, 1]} : vector<25x128xf32> to vector<1x128xf32>
    %1390 = vector.broadcast %1389 : vector<1x128xf32> to vector<16x128xf32>
    %1391 = arith.mulf %1336, %1390 : vector<16x128xf32>
    %1392 = vector.extract_strided_slice %54 {offsets = [8, 0], sizes = [1, 128], strides = [1, 1]} : vector<25x128xf32> to vector<1x128xf32>
    %1393 = vector.broadcast %1392 : vector<1x128xf32> to vector<16x128xf32>
    %1394 = arith.mulf %1337, %1393 : vector<16x128xf32>
    %1395 = arith.addf %1391, %1394 : vector<16x128xf32>
    %1396 = vector.extract_strided_slice %54 {offsets = [13, 0], sizes = [1, 128], strides = [1, 1]} : vector<25x128xf32> to vector<1x128xf32>
    %1397 = vector.broadcast %1396 : vector<1x128xf32> to vector<16x128xf32>
    %1398 = arith.mulf %1338, %1397 : vector<16x128xf32>
    %1399 = arith.addf %1395, %1398 : vector<16x128xf32>
    %1400 = vector.extract_strided_slice %54 {offsets = [18, 0], sizes = [1, 128], strides = [1, 1]} : vector<25x128xf32> to vector<1x128xf32>
    %1401 = vector.broadcast %1400 : vector<1x128xf32> to vector<16x128xf32>
    %1402 = arith.mulf %1339, %1401 : vector<16x128xf32>
    %1403 = arith.addf %1399, %1402 : vector<16x128xf32>
    %c15_i32_204 = arith.constant 15 : i32
    %1404 = tpu.dynamic_rotate %1403 by %c15_i32_204 dim 0 : vector<16x128xf32>, i32 -> vector<16x128xf32>
    %1405 = arith.addf %1388, %1404 : vector<16x128xf32>
    %1406 = vector.extract_strided_slice %54 {offsets = [4, 0], sizes = [1, 128], strides = [1, 1]} : vector<25x128xf32> to vector<1x128xf32>
    %1407 = vector.broadcast %1406 : vector<1x128xf32> to vector<16x128xf32>
    %1408 = arith.mulf %1336, %1407 : vector<16x128xf32>
    %1409 = vector.extract_strided_slice %54 {offsets = [9, 0], sizes = [1, 128], strides = [1, 1]} : vector<25x128xf32> to vector<1x128xf32>
    %1410 = vector.broadcast %1409 : vector<1x128xf32> to vector<16x128xf32>
    %1411 = arith.mulf %1337, %1410 : vector<16x128xf32>
    %1412 = arith.addf %1408, %1411 : vector<16x128xf32>
    %1413 = vector.extract_strided_slice %54 {offsets = [14, 0], sizes = [1, 128], strides = [1, 1]} : vector<25x128xf32> to vector<1x128xf32>
    %1414 = vector.broadcast %1413 : vector<1x128xf32> to vector<16x128xf32>
    %1415 = arith.mulf %1338, %1414 : vector<16x128xf32>
    %1416 = arith.addf %1412, %1415 : vector<16x128xf32>
    %1417 = vector.extract_strided_slice %54 {offsets = [19, 0], sizes = [1, 128], strides = [1, 1]} : vector<25x128xf32> to vector<1x128xf32>
    %1418 = vector.broadcast %1417 : vector<1x128xf32> to vector<16x128xf32>
    %1419 = arith.mulf %1339, %1418 : vector<16x128xf32>
    %1420 = arith.addf %1416, %1419 : vector<16x128xf32>
    %c14_i32_205 = arith.constant 14 : i32
    %1421 = tpu.dynamic_rotate %1420 by %c14_i32_205 dim 0 : vector<16x128xf32>, i32 -> vector<16x128xf32>
    %1422 = arith.addf %1405, %1421 : vector<16x128xf32>
    %1423 = vector.extract_strided_slice %1422 {offsets = [0, 0], sizes = [14, 128], strides = [1, 1]} : vector<16x128xf32> to vector<14x128xf32>
    %c12 = arith.constant 12 : index
    %c0_206 = arith.constant 0 : index
    %c0_207 = arith.constant 0 : index
    %1424 = vector.load %arg6[%c12, %c0_206, %c0_207] : memref<14x14x128xf32, #tpu.memory_space<vmem>>, vector<1x14x128xf32>
    %1425 = vector.shape_cast %1424 : vector<1x14x128xf32> to vector<14x128xf32>
    %1426 = vector.shape_cast %1423 : vector<14x128xf32> to vector<1x14x128xf32>
    tpu.vector_store %arg6[%c12, %c0_206, %c0_207], %1426 {strides = array<i32>} : memref<14x14x128xf32, #tpu.memory_space<vmem>>, vector<1x14x128xf32>,
    %c176_208 = arith.constant 176 : index
    %c0_209 = arith.constant 0 : index
    %1427 = vector.load %arg7[%c176_208, %c0_209] : memref<224x128xf32, #tpu.memory_space<vmem>>, vector<16x128xf32>
    %c192_210 = arith.constant 192 : index
    %c0_211 = arith.constant 0 : index
    %1428 = vector.load %arg7[%c192_210, %c0_211] : memref<224x128xf32, #tpu.memory_space<vmem>>, vector<16x128xf32>
    %c208_212 = arith.constant 208 : index
    %c0_213 = arith.constant 0 : index
    %1429 = vector.load %arg7[%c208_212, %c0_213] : memref<224x128xf32, #tpu.memory_space<vmem>>, vector<16x128xf32>
    %1430 = vector.extract_strided_slice %54 {offsets = [0, 0], sizes = [1, 128], strides = [1, 1]} : vector<25x128xf32> to vector<1x128xf32>
    %1431 = vector.broadcast %1430 : vector<1x128xf32> to vector<16x128xf32>
    %1432 = arith.mulf %1427, %1431 : vector<16x128xf32>
    %1433 = vector.extract_strided_slice %54 {offsets = [5, 0], sizes = [1, 128], strides = [1, 1]} : vector<25x128xf32> to vector<1x128xf32>
    %1434 = vector.broadcast %1433 : vector<1x128xf32> to vector<16x128xf32>
    %1435 = arith.mulf %1428, %1434 : vector<16x128xf32>
    %1436 = arith.addf %1432, %1435 : vector<16x128xf32>
    %1437 = vector.extract_strided_slice %54 {offsets = [10, 0], sizes = [1, 128], strides = [1, 1]} : vector<25x128xf32> to vector<1x128xf32>
    %1438 = vector.broadcast %1437 : vector<1x128xf32> to vector<16x128xf32>
    %1439 = arith.mulf %1429, %1438 : vector<16x128xf32>
    %1440 = arith.addf %1436, %1439 : vector<16x128xf32>
    %c2_i32_214 = arith.constant 2 : i32
    %1441 = tpu.dynamic_rotate %1440 by %c2_i32_214 dim 0 : vector<16x128xf32>, i32 -> vector<16x128xf32>
    %1442 = vector.extract_strided_slice %54 {offsets = [1, 0], sizes = [1, 128], strides = [1, 1]} : vector<25x128xf32> to vector<1x128xf32>
    %1443 = vector.broadcast %1442 : vector<1x128xf32> to vector<16x128xf32>
    %1444 = arith.mulf %1427, %1443 : vector<16x128xf32>
    %1445 = vector.extract_strided_slice %54 {offsets = [6, 0], sizes = [1, 128], strides = [1, 1]} : vector<25x128xf32> to vector<1x128xf32>
    %1446 = vector.broadcast %1445 : vector<1x128xf32> to vector<16x128xf32>
    %1447 = arith.mulf %1428, %1446 : vector<16x128xf32>
    %1448 = arith.addf %1444, %1447 : vector<16x128xf32>
    %1449 = vector.extract_strided_slice %54 {offsets = [11, 0], sizes = [1, 128], strides = [1, 1]} : vector<25x128xf32> to vector<1x128xf32>
    %1450 = vector.broadcast %1449 : vector<1x128xf32> to vector<16x128xf32>
    %1451 = arith.mulf %1429, %1450 : vector<16x128xf32>
    %1452 = arith.addf %1448, %1451 : vector<16x128xf32>
    %c1_i32_215 = arith.constant 1 : i32
    %1453 = tpu.dynamic_rotate %1452 by %c1_i32_215 dim 0 : vector<16x128xf32>, i32 -> vector<16x128xf32>
    %1454 = arith.addf %1441, %1453 : vector<16x128xf32>
    %1455 = vector.extract_strided_slice %54 {offsets = [2, 0], sizes = [1, 128], strides = [1, 1]} : vector<25x128xf32> to vector<1x128xf32>
    %1456 = vector.broadcast %1455 : vector<1x128xf32> to vector<16x128xf32>
    %1457 = arith.mulf %1427, %1456 : vector<16x128xf32>
    %1458 = vector.extract_strided_slice %54 {offsets = [7, 0], sizes = [1, 128], strides = [1, 1]} : vector<25x128xf32> to vector<1x128xf32>
    %1459 = vector.broadcast %1458 : vector<1x128xf32> to vector<16x128xf32>
    %1460 = arith.mulf %1428, %1459 : vector<16x128xf32>
    %1461 = arith.addf %1457, %1460 : vector<16x128xf32>
    %1462 = vector.extract_strided_slice %54 {offsets = [12, 0], sizes = [1, 128], strides = [1, 1]} : vector<25x128xf32> to vector<1x128xf32>
    %1463 = vector.broadcast %1462 : vector<1x128xf32> to vector<16x128xf32>
    %1464 = arith.mulf %1429, %1463 : vector<16x128xf32>
    %1465 = arith.addf %1461, %1464 : vector<16x128xf32>
    %1466 = arith.addf %1454, %1465 : vector<16x128xf32>
    %1467 = vector.extract_strided_slice %54 {offsets = [3, 0], sizes = [1, 128], strides = [1, 1]} : vector<25x128xf32> to vector<1x128xf32>
    %1468 = vector.broadcast %1467 : vector<1x128xf32> to vector<16x128xf32>
    %1469 = arith.mulf %1427, %1468 : vector<16x128xf32>
    %1470 = vector.extract_strided_slice %54 {offsets = [8, 0], sizes = [1, 128], strides = [1, 1]} : vector<25x128xf32> to vector<1x128xf32>
    %1471 = vector.broadcast %1470 : vector<1x128xf32> to vector<16x128xf32>
    %1472 = arith.mulf %1428, %1471 : vector<16x128xf32>
    %1473 = arith.addf %1469, %1472 : vector<16x128xf32>
    %1474 = vector.extract_strided_slice %54 {offsets = [13, 0], sizes = [1, 128], strides = [1, 1]} : vector<25x128xf32> to vector<1x128xf32>
    %1475 = vector.broadcast %1474 : vector<1x128xf32> to vector<16x128xf32>
    %1476 = arith.mulf %1429, %1475 : vector<16x128xf32>
    %1477 = arith.addf %1473, %1476 : vector<16x128xf32>
    %c15_i32_216 = arith.constant 15 : i32
    %1478 = tpu.dynamic_rotate %1477 by %c15_i32_216 dim 0 : vector<16x128xf32>, i32 -> vector<16x128xf32>
    %1479 = arith.addf %1466, %1478 : vector<16x128xf32>
    %1480 = vector.extract_strided_slice %54 {offsets = [4, 0], sizes = [1, 128], strides = [1, 1]} : vector<25x128xf32> to vector<1x128xf32>
    %1481 = vector.broadcast %1480 : vector<1x128xf32> to vector<16x128xf32>
    %1482 = arith.mulf %1427, %1481 : vector<16x128xf32>
    %1483 = vector.extract_strided_slice %54 {offsets = [9, 0], sizes = [1, 128], strides = [1, 1]} : vector<25x128xf32> to vector<1x128xf32>
    %1484 = vector.broadcast %1483 : vector<1x128xf32> to vector<16x128xf32>
    %1485 = arith.mulf %1428, %1484 : vector<16x128xf32>
    %1486 = arith.addf %1482, %1485 : vector<16x128xf32>
    %1487 = vector.extract_strided_slice %54 {offsets = [14, 0], sizes = [1, 128], strides = [1, 1]} : vector<25x128xf32> to vector<1x128xf32>
    %1488 = vector.broadcast %1487 : vector<1x128xf32> to vector<16x128xf32>
    %1489 = arith.mulf %1429, %1488 : vector<16x128xf32>
    %1490 = arith.addf %1486, %1489 : vector<16x128xf32>
    %c14_i32_217 = arith.constant 14 : i32
    %1491 = tpu.dynamic_rotate %1490 by %c14_i32_217 dim 0 : vector<16x128xf32>, i32 -> vector<16x128xf32>
    %1492 = arith.addf %1479, %1491 : vector<16x128xf32>
    %1493 = vector.extract_strided_slice %1492 {offsets = [0, 0], sizes = [14, 128], strides = [1, 1]} : vector<16x128xf32> to vector<14x128xf32>
    %c13 = arith.constant 13 : index
    %c0_218 = arith.constant 0 : index
    %c0_219 = arith.constant 0 : index
    %1494 = vector.load %arg6[%c13, %c0_218, %c0_219] : memref<14x14x128xf32, #tpu.memory_space<vmem>>, vector<1x14x128xf32>
    %1495 = vector.shape_cast %1494 : vector<1x14x128xf32> to vector<14x128xf32>
    %1496 = vector.shape_cast %1493 : vector<14x128xf32> to vector<1x14x128xf32>
    tpu.vector_store %arg6[%c13, %c0_218, %c0_219], %1496 {strides = array<i32>} : memref<14x14x128xf32, #tpu.memory_space<vmem>>, vector<1x14x128xf32>,
    return
  }
  func.func @transform_0(%arg0: i32) -> (i32, i32) {
    %c0_i32 = arith.constant 0 : i32
    %c0_i32_0 = arith.constant 0 : i32
    %c0_i32_1 = arith.constant 0 : i32
    return %c0_i32, %c0_i32_0 : i32, i32
  }
  func.func @transform_1(%arg0: i32) -> (i32, i32) {
    %c0_i32 = arith.constant 0 : i32
    %c0_i32_0 = arith.constant 0 : i32
    return %c0_i32, %arg0 : i32, i32
  }
  func.func @transform_2(%arg0: i32) -> (i32, i32) {
    %c0_i32 = arith.constant 0 : i32
    %c0_i32_0 = arith.constant 0 : i32
    return %c0_i32, %arg0 : i32, i32
  }
  func.func @transform_3(%arg0: i32) -> (i32, i32) {
    %c0_i32 = arith.constant 0 : i32
    %c0_i32_0 = arith.constant 0 : i32
    return %c0_i32, %arg0 : i32, i32
  }
  func.func @transform_4(%arg0: i32) -> (i32, i32) {
    %c0_i32 = arith.constant 0 : i32
    %c0_i32_0 = arith.constant 0 : i32
    return %c0_i32, %arg0 : i32, i32
  }
  func.func @transform_5(%arg0: i32) -> (i32, i32, i32) {
    %c0_i32 = arith.constant 0 : i32
    %c0_i32_0 = arith.constant 0 : i32
    %c0_i32_1 = arith.constant 0 : i32
    return %c0_i32, %c0_i32_0, %arg0 : i32, i32, i32
  }
}

</mosaic_0001>

<llo_original>
// kernel: forward_pallas.1
$region0: #{forward_pallas.1}
  #allocation0 [shape = 'u32[]', space=smem, size = 0x4, offset = 0x4, fixed_abs, tag = 'smem constant byte address 0x4 - core index']
  #allocation1 [shape = 'u32[144,128]{1,0:T(1,128)}', space=vmem, size = 0x12000, scoped, tag = 'internal scratch']
  #allocation2 [shape = 'f32[224,128]{1,0:T(8,128)}', space=vmem, size = 0x1c000, scoped, tag = 'scratch operand']
  %s0 = inlined_call_operand.vmem [shape: f32[80,224], index: 0, kind: input, shape index: {}]
  %s1 = inlined_call_operand.vmem [shape: f32[80,512], index: 1, kind: input, shape index: {}]
  %s2 = inlined_call_operand.vmem [shape: f32[1,512], index: 2, kind: input, shape index: {}]
  %s3 = inlined_call_operand.vmem [shape: f32[1,512], index: 3, kind: input, shape index: {}]
  %s4 = inlined_call_operand.vmem [shape: f32[25,512], index: 4, kind: input, shape index: {}]
  %s5 = inlined_call_operand.vmem [shape: f32[14,14,512], index: 5, kind: output, shape index: {}]
  %s6 = sld [smem:[#allocation0]]
  $region163: #{forward_pallas.1} parent=0
    _
  %s8 = ssub.s32 1, %s6
  %s9 = scalar_select 0, %s8, %s6
  $region1: #{forward_pallas.1} parent=0
    #allocation3 [shape = 'u8[81920]{0}', space=vmem, size = 0x14000, scoped, tag = 'input window, operand 1']
    #allocation4 [shape = 'u8[32768]{0}', space=vmem, size = 0x8000, scoped, tag = 'input window, operand 4']
    #allocation5 [shape = 'u8[229376]{0}', space=vmem, size = 0x38000, scoped, tag = 'output window, operand 0']
    loop: start=0, step=1, limit=6
    $region2: #{forward_pallas.1} parent=1 // loop_pre_header
      _
    $region3: #{forward_pallas.1} parent=1 // loop_header
      %s11 = sphi 0, %s15
      %p12 = scmp.ge.s32.totalorder %s11, 6
      %s19 = sphi 0, %s19
      %s21 = sphi 0, %s19
      %s22 = sphi 0, %s21
      %s36 = sphi 0, %s22
      %s42 = sphi 0, %s44
      %s45 = sphi 0, %s42
      %s46 = sphi 0, %s45
      %s62 = sphi 0, %s46
      %s68 = sphi 0, %s70
      %s71 = sphi 0, %s68
      %s72 = sphi 0, %s71
      %s88 = sphi 0, %s72
      %s94 = sphi 0, %s96
      %s97 = sphi 0, %s94
      %s98 = sphi 0, %s97
      %s114 = sphi 0, %s98
      %s120 = sphi 0, %s122
      %s123 = sphi 0, %s120
      %s124 = sphi 0, %s123
      %s140 = sphi 0, %s124
      %s146 = sphi 0, %s148
      %s149 = sphi 0, %s146
      %s150 = sphi 0, %s149
      %s166 = sphi 0, %s150
    $region4: #{forward_pallas.1} parent=1 // loop_header_branch
      %14 = sbr.rel (%p12) target = $region8
    $region5: #{forward_pallas.1} parent=1 // loop_body
      %s16 = ssub.s32 %s11, 1
      %s17 = ssub.s32 %s11, 2
      %s18 = sadd.s32 %s11, 1
      %s20 = sadd.s32 %s19, 1
      %p23 = scmp.eq.s32.totalorder %s11, 3
      %p24 = scmp.ne.s32.totalorder %s19, %s21
      %p25 = scmp.eq.s32.totalorder %s11, 0
      %p26 = por %p24, %p25
      %p27 = scmp.ne.s32.totalorder %s19, %s21
      %p28 = scmp.eq.s32.totalorder %s16, 3
      %p29 = por %p27, %p28
      %p30 = scmp.ne.s32.totalorder %s21, %s22
      %p31 = scmp.eq.s32.totalorder %s16, 0
      %p32 = por %p30, %p31
      %p33 = scmp.ne.s32.totalorder %s21, %s22
      %p34 = scmp.eq.s32.totalorder %s17, 3
      %p35 = por %p33, %p34
      %p37 = scmp.ne.s32.totalorder %s22, %s36
      %p38 = scmp.eq.s32.totalorder %s17, 0
      %p39 = por %p37, %p38
      %s40 = ssub.s32 %s11, %s18
      %p41 = scmp.eq.s32.totalorder %s40, 0
      %s43 = sadd.s32 %s42, 1
      %s44 = scalar_select %p41, %s42, %s43
      %p47 = pneg %p41
      %p48 = scmp.eq.s32.totalorder %s11, 3
      %p49 = por %p47, %p48
      %p50 = scmp.ne.s32.totalorder %s42, %s45
      %p51 = scmp.eq.s32.totalorder %s11, 0
      %p52 = por %p50, %p51
      %p53 = scmp.ne.s32.totalorder %s42, %s45
      %p54 = scmp.eq.s32.totalorder %s16, 3
      %p55 = por %p53, %p54
      %p56 = scmp.ne.s32.totalorder %s45, %s46
      %p57 = scmp.eq.s32.totalorder %s16, 0
      %p58 = por %p56, %p57
      %p59 = scmp.ne.s32.totalorder %s45, %s46
      %p60 = scmp.eq.s32.totalorder %s17, 3
      %p61 = por %p59, %p60
      %p63 = scmp.ne.s32.totalorder %s46, %s62
      %p64 = scmp.eq.s32.totalorder %s17, 0
      %p65 = por %p63, %p64
      %s66 = ssub.s32 %s11, %s18
      %p67 = scmp.eq.s32.totalorder %s66, 0
      %s69 = sadd.s32 %s68, 1
      %s70 = scalar_select %p67, %s68, %s69
      %p73 = pneg %p67
      %p74 = scmp.eq.s32.totalorder %s11, 3
      %p75 = por %p73, %p74
      %p76 = scmp.ne.s32.totalorder %s68, %s71
      %p77 = scmp.eq.s32.totalorder %s11, 0
      %p78 = por %p76, %p77
      %p79 = scmp.ne.s32.totalorder %s68, %s71
      %p80 = scmp.eq.s32.totalorder %s16, 3
      %p81 = por %p79, %p80
      %p82 = scmp.ne.s32.totalorder %s71, %s72
      %p83 = scmp.eq.s32.totalorder %s16, 0
      %p84 = por %p82, %p83
      %p85 = scmp.ne.s32.totalorder %s71, %s72
      %p86 = scmp.eq.s32.totalorder %s17, 3
      %p87 = por %p85, %p86
      %p89 = scmp.ne.s32.totalorder %s72, %s88
      %p90 = scmp.eq.s32.totalorder %s17, 0
      %p91 = por %p89, %p90
      %s92 = ssub.s32 %s11, %s18
      %p93 = scmp.eq.s32.totalorder %s92, 0
      %s95 = sadd.s32 %s94, 1
      %s96 = scalar_select %p93, %s94, %s95
      %p99 = pneg %p93
      %p100 = scmp.eq.s32.totalorder %s11, 3
      %p101 = por %p99, %p100
      %p102 = scmp.ne.s32.totalorder %s94, %s97
      %p103 = scmp.eq.s32.totalorder %s11, 0
      %p104 = por %p102, %p103
      %p105 = scmp.ne.s32.totalorder %s94, %s97
      %p106 = scmp.eq.s32.totalorder %s16, 3
      %p107 = por %p105, %p106
      %p108 = scmp.ne.s32.totalorder %s97, %s98
      %p109 = scmp.eq.s32.totalorder %s16, 0
      %p110 = por %p108, %p109
      %p111 = scmp.ne.s32.totalorder %s97, %s98
      %p112 = scmp.eq.s32.totalorder %s17, 3
      %p113 = por %p111, %p112
      %p115 = scmp.ne.s32.totalorder %s98, %s114
      %p116 = scmp.eq.s32.totalorder %s17, 0
      %p117 = por %p115, %p116
      %s118 = ssub.s32 %s11, %s18
      %p119 = scmp.eq.s32.totalorder %s118, 0
      %s121 = sadd.s32 %s120, 1
      %s122 = scalar_select %p119, %s120, %s121
      %p125 = pneg %p119
      %p126 = scmp.eq.s32.totalorder %s11, 3
      %p127 = por %p125, %p126
      %p128 = scmp.ne.s32.totalorder %s120, %s123
      %p129 = scmp.eq.s32.totalorder %s11, 0
      %p130 = por %p128, %p129
      %p131 = scmp.ne.s32.totalorder %s120, %s123
      %p132 = scmp.eq.s32.totalorder %s16, 3
      %p133 = por %p131, %p132
      %p134 = scmp.ne.s32.totalorder %s123, %s124
      %p135 = scmp.eq.s32.totalorder %s16, 0
      %p136 = por %p134, %p135
      %p137 = scmp.ne.s32.totalorder %s123, %s124
      %p138 = scmp.eq.s32.totalorder %s17, 3
      %p139 = por %p137, %p138
      %p141 = scmp.ne.s32.totalorder %s124, %s140
      %p142 = scmp.eq.s32.totalorder %s17, 0
      %p143 = por %p141, %p142
      %s144 = ssub.s32 %s11, %s18
      %p145 = scmp.eq.s32.totalorder %s144, 0
      %s147 = sadd.s32 %s146, 1
      %s148 = scalar_select %p145, %s146, %s147
      %p151 = pneg %p145
      %p152 = scmp.eq.s32.totalorder %s11, 3
      %p153 = por %p151, %p152
      %p154 = scmp.ne.s32.totalorder %s146, %s149
      %p155 = scmp.eq.s32.totalorder %s11, 0
      %p156 = por %p154, %p155
      %p157 = scmp.ne.s32.totalorder %s146, %s149
      %p158 = scmp.eq.s32.totalorder %s16, 3
      %p159 = por %p157, %p158
      %p160 = scmp.ne.s32.totalorder %s149, %s150
      %p161 = scmp.eq.s32.totalorder %s16, 0
      %p162 = por %p160, %p161
      %p163 = scmp.ne.s32.totalorder %s149, %s150
      %p164 = scmp.eq.s32.totalorder %s17, 3
      %p165 = por %p163, %p164
      %p167 = scmp.ne.s32.totalorder %s150, %s166
      %p168 = scmp.eq.s32.totalorder %s17, 0
      %p169 = por %p167, %p168
      %p170 = scmp.le.s32.totalorder 1, %s11
      %p171 = scmp.lt.s32.totalorder %s11, 5
      %p172 = pnand %p170, %p171
      %p173 = pneg %p172
      // Predicated region
      $region9: #{forward_pallas.1} parent=5 // pred_check
        _
      $region10: #{forward_pallas.1} parent=5 // pred_check_branch
        %175 = sbr.rel (%p172) target = $region12
      $region11: #{forward_pallas.1} parent=5 // pred_region
        %s176 = ssub.s32 %s11, 1
        // Predicated region
        $region13: #{forward_pallas.1} parent=11 // pred_check
          %p177 = pneg %p32
        $region14: #{forward_pallas.1} parent=11 // pred_check_branch
          %179 = sbr.rel (%p177) target = $region16
        $region15: #{forward_pallas.1} parent=11 // pred_region
          _
        $region16: #{forward_pallas.1} parent=11 // pred_fallthru
          _
      $region12: #{forward_pallas.1} parent=5 // pred_fallthru
        _
      %p180 = scmp.lt.s32.totalorder %s11, 4
      // Predicated region
      $region17: #{forward_pallas.1} parent=5 // pred_check
        %p181 = pneg %p180
      $region18: #{forward_pallas.1} parent=5 // pred_check_branch
        %183 = sbr.rel (%p181) target = $region20
      $region19: #{forward_pallas.1} parent=5 // pred_region
        // Predicated region
        $region21: #{forward_pallas.1} parent=19 // pred_check
          %p184 = pneg %p52
        $region22: #{forward_pallas.1} parent=19 // pred_check_branch
          %186 = sbr.rel (%p184) target = $region24
        $region23: #{forward_pallas.1} parent=19 // pred_region
          %s187 = sand.u32 %s42, 1
          %s188 = sand.u32 %s42, 1
          %s189 = smul.addr %s188, 80
          %s190 = scalar_lea.vmem [#allocation3], %s189
          %s191 = smul.addr %s11, 8
          %s192 = scalar_lea.vmem %s1, %s191
          // Predicated region
          $region25: #{forward_pallas.1} parent=23 // pred_check
            _
          $region26: #{forward_pallas.1} parent=23 // pred_check_branch
            %194 = sbr.rel (0) target = $region28
          $region27: #{forward_pallas.1} parent=23 // pred_region
            // Predicated region
            $region29: #{forward_pallas.1} parent=27 // pred_check
              _
            $region30: #{forward_pallas.1} parent=27 // pred_check_branch
              %196 = sbr.rel (0) target = $region32
            $region31: #{forward_pallas.1} parent=27 // pred_region
              // Predicated region
              $region44: #{forward_pallas.1} parent=31 // pred_check
                _
              $region45: #{forward_pallas.1} parent=31 // pred_check_branch
                %229 = sbr.rel (0) target = $region47
              $region46: #{forward_pallas.1} parent=31 // pred_region
                loop: start=0, step=1, limit=1
                $region48: #{forward_pallas.1} parent=46 // loop_pre_header
                  _
                $region49: #{forward_pallas.1} parent=46 // loop_header
                  %s231 = sphi 0, %s235
                  %p232 = scmp.ge.s32.totalorder %s231, 1
                  %s236 = sphi %s192, %s192
                  %s237 = sphi %s190, %s190
                $region50: #{forward_pallas.1} parent=46 // loop_header_branch
                  %234 = sbr.rel (%p232) target = $region54
                $region51: #{forward_pallas.1} parent=46 // loop_body
                  %v238 = vld [vmem:[%s236] sm:$0xff]
                  %239 = vst [vmem:[%s237] sm:$0xff] %v238
                  %v240 = vld [vmem:[%s236 + $0x20] sm:$0xff]
                  %241 = vst [vmem:[%s237 + $0x8] sm:$0xff] %v240
                  %v242 = vld [vmem:[%s236 + $0x40] sm:$0xff]
                  %243 = vst [vmem:[%s237 + $0x10] sm:$0xff] %v242
                  %v244 = vld [vmem:[%s236 + $0x60] sm:$0xff]
                  %245 = vst [vmem:[%s237 + $0x18] sm:$0xff] %v244
                  %v246 = vld [vmem:[%s236 + $0x80] sm:$0xff]
                  %247 = vst [vmem:[%s237 + $0x20] sm:$0xff] %v246
                  %v248 = vld [vmem:[%s236 + $0xa0] sm:$0xff]
                  %249 = vst [vmem:[%s237 + $0x28] sm:$0xff] %v248
                  %v250 = vld [vmem:[%s236 + $0xc0] sm:$0xff]
                  %251 = vst [vmem:[%s237 + $0x30] sm:$0xff] %v250
                  %v252 = vld [vmem:[%s236 + $0xe0] sm:$0xff]
                  %253 = vst [vmem:[%s237 + $0x38] sm:$0xff] %v252
                  %v254 = vld [vmem:[%s236 + $0x100] sm:$0xff]
                  %255 = vst [vmem:[%s237 + $0x40] sm:$0xff] %v254
                  %v256 = vld [vmem:[%s236 + $0x120] sm:$0xff]
                  %257 = vst [vmem:[%s237 + $0x48] sm:$0xff] %v256
                $region52: #{forward_pallas.1} parent=46 // loop_footer
                  %s235 = sadd.s32 1, %s231
                $region53: #{forward_pallas.1} parent=46 // loop_footer_branch
                  %230 = sbr.rel target = $region49
                $region54: #{forward_pallas.1} parent=46 // loop_exit
                  _
              $region47: #{forward_pallas.1} parent=31 // pred_fallthru
                _
              // Predicated region
              $region55: #{forward_pallas.1} parent=31 // pred_check
                _
              $region56: #{forward_pallas.1} parent=31 // pred_check_branch
                %259 = sbr.rel target = $region58
              $region57: #{forward_pallas.1} parent=31 // pred_region
                _
              $region58: #{forward_pallas.1} parent=31 // pred_fallthru
                _
            $region32: #{forward_pallas.1} parent=27 // pred_fallthru
              _
            // Predicated region
            $region33: #{forward_pallas.1} parent=27 // pred_check
              _
            $region34: #{forward_pallas.1} parent=27 // pred_check_branch
              %198 = sbr.rel target = $region36
            $region35: #{forward_pallas.1} parent=27 // pred_region
              loop: start=0, step=1, limit=1
              $region37: #{forward_pallas.1} parent=35 // loop_pre_header
                _
              $region38: #{forward_pallas.1} parent=35 // loop_header
                %s201 = sphi 0, %s205
                %p202 = scmp.ge.s32.totalorder %s201, 1
                %s206 = sphi %s192, %s192
                %s207 = sphi %s190, %s190
              $region39: #{forward_pallas.1} parent=35 // loop_header_branch
                %204 = sbr.rel (%p202) target = $region43
              $region40: #{forward_pallas.1} parent=35 // loop_body
                %v208 = vld [vmem:[%s206] sm:$0xff]
                %209 = vst [vmem:[%s207] sm:$0xff] %v208
                %v210 = vld [vmem:[%s206 + $0x20] sm:$0xff]
                %211 = vst [vmem:[%s207 + $0x8] sm:$0xff] %v210
                %v212 = vld [vmem:[%s206 + $0x40] sm:$0xff]
                %213 = vst [vmem:[%s207 + $0x10] sm:$0xff] %v212
                %v214 = vld [vmem:[%s206 + $0x60] sm:$0xff]
                %215 = vst [vmem:[%s207 + $0x18] sm:$0xff] %v214
                %v216 = vld [vmem:[%s206 + $0x80] sm:$0xff]
                %217 = vst [vmem:[%s207 + $0x20] sm:$0xff] %v216
                %v218 = vld [vmem:[%s206 + $0xa0] sm:$0xff]
                %219 = vst [vmem:[%s207 + $0x28] sm:$0xff] %v218
                %v220 = vld [vmem:[%s206 + $0xc0] sm:$0xff]
                %221 = vst [vmem:[%s207 + $0x30] sm:$0xff] %v220
                %v222 = vld [vmem:[%s206 + $0xe0] sm:$0xff]
                %223 = vst [vmem:[%s207 + $0x38] sm:$0xff] %v222
                %v224 = vld [vmem:[%s206 + $0x100] sm:$0xff]
                %225 = vst [vmem:[%s207 + $0x40] sm:$0xff] %v224
                %v226 = vld [vmem:[%s206 + $0x120] sm:$0xff]
                %227 = vst [vmem:[%s207 + $0x48] sm:$0xff] %v226
              $region41: #{forward_pallas.1} parent=35 // loop_footer
                %s205 = sadd.s32 1, %s201
              $region42: #{forward_pallas.1} parent=35 // loop_footer_branch
                %200 = sbr.rel target = $region38
              $region43: #{forward_pallas.1} parent=35 // loop_exit
                _
            $region36: #{forward_pallas.1} parent=27 // pred_fallthru
              _
          $region28: #{forward_pallas.1} parent=23 // pred_fallthru
            _
          %260 = vnop
        $region24: #{forward_pallas.1} parent=19 // pred_fallthru
          _
        // Predicated region
        $region59: #{forward_pallas.1} parent=19 // pred_check
          %p261 = pneg %p78
        $region60: #{forward_pallas.1} parent=19 // pred_check_branch
          %263 = sbr.rel (%p261) target = $region62
        $region61: #{forward_pallas.1} parent=19 // pred_region
          %p264 = scmp.lt.s32.totalorder %s11, 3
          %s265 = scalar_select %p264, %s11, 3
          %s266 = scalar_lea.vmem %s2, %s265
        $region62: #{forward_pallas.1} parent=19 // pred_fallthru
          _
        // Predicated region
        $region63: #{forward_pallas.1} parent=19 // pred_check
          %p267 = pneg %p104
        $region64: #{forward_pallas.1} parent=19 // pred_check_branch
          %269 = sbr.rel (%p267) target = $region66
        $region65: #{forward_pallas.1} parent=19 // pred_region
          %p270 = scmp.lt.s32.totalorder %s11, 3
          %s271 = scalar_select %p270, %s11, 3
          %s272 = scalar_lea.vmem %s3, %s271
        $region66: #{forward_pallas.1} parent=19 // pred_fallthru
          _
        // Predicated region
        $region67: #{forward_pallas.1} parent=19 // pred_check
          %p273 = pneg %p130
        $region68: #{forward_pallas.1} parent=19 // pred_check_branch
          %275 = sbr.rel (%p273) target = $region70
        $region69: #{forward_pallas.1} parent=19 // pred_region
          %s276 = sand.u32 %s120, 1
          %s277 = sand.u32 %s120, 1
          %s278 = smul.addr %s277, 32
          %s279 = scalar_lea.vmem [#allocation4], %s278
          %s280 = smul.addr %s11, 8
          %s281 = scalar_lea.vmem %s4, %s280
          // Predicated region
          $region71: #{forward_pallas.1} parent=69 // pred_check
            _
          $region72: #{forward_pallas.1} parent=69 // pred_check_branch
            %283 = sbr.rel (0) target = $region74
          $region73: #{forward_pallas.1} parent=69 // pred_region
            // Predicated region
            $region75: #{forward_pallas.1} parent=73 // pred_check
              _
            $region76: #{forward_pallas.1} parent=73 // pred_check_branch
              %285 = sbr.rel (0) target = $region78
            $region77: #{forward_pallas.1} parent=73 // pred_region
              // Predicated region
              $region90: #{forward_pallas.1} parent=77 // pred_check
                _
              $region91: #{forward_pallas.1} parent=77 // pred_check_branch
                %306 = sbr.rel (0) target = $region93
              $region92: #{forward_pallas.1} parent=77 // pred_region
                loop: start=0, step=1, limit=1
                $region94: #{forward_pallas.1} parent=92 // loop_pre_header
                  _
                $region95: #{forward_pallas.1} parent=92 // loop_header
                  %s308 = sphi 0, %s312
                  %p309 = scmp.ge.s32.totalorder %s308, 1
                  %s313 = sphi %s281, %s281
                  %s314 = sphi %s279, %s279
                $region96: #{forward_pallas.1} parent=92 // loop_header_branch
                  %311 = sbr.rel (%p309) target = $region100
                $region97: #{forward_pallas.1} parent=92 // loop_body
                  %v315 = vld [vmem:[%s313] sm:$0xff]
                  %316 = vst [vmem:[%s314] sm:$0xff] %v315
                  %v317 = vld [vmem:[%s313 + $0x20] sm:$0xff]
                  %318 = vst [vmem:[%s314 + $0x8] sm:$0xff] %v317
                  %v319 = vld [vmem:[%s313 + $0x40] sm:$0xff]
                  %320 = vst [vmem:[%s314 + $0x10] sm:$0xff] %v319
                  %v321 = vld [vmem:[%s313 + $0x60] sm:$0xff]
                  %322 = vst [vmem:[%s314 + $0x18] sm:$0xff] %v321
                $region98: #{forward_pallas.1} parent=92 // loop_footer
                  %s312 = sadd.s32 1, %s308
                $region99: #{forward_pallas.1} parent=92 // loop_footer_branch
                  %307 = sbr.rel target = $region95
                $region100: #{forward_pallas.1} parent=92 // loop_exit
                  _
              $region93: #{forward_pallas.1} parent=77 // pred_fallthru
                _
              // Predicated region
              $region101: #{forward_pallas.1} parent=77 // pred_check
                _
              $region102: #{forward_pallas.1} parent=77 // pred_check_branch
                %324 = sbr.rel target = $region104
              $region103: #{forward_pallas.1} parent=77 // pred_region
                _
              $region104: #{forward_pallas.1} parent=77 // pred_fallthru
                _
            $region78: #{forward_pallas.1} parent=73 // pred_fallthru
              _
            // Predicated region
            $region79: #{forward_pallas.1} parent=73 // pred_check
              _
            $region80: #{forward_pallas.1} parent=73 // pred_check_branch
              %287 = sbr.rel target = $region82
            $region81: #{forward_pallas.1} parent=73 // pred_region
              loop: start=0, step=1, limit=1
              $region83: #{forward_pallas.1} parent=81 // loop_pre_header
                _
              $region84: #{forward_pallas.1} parent=81 // loop_header
                %s290 = sphi 0, %s294
                %p291 = scmp.ge.s32.totalorder %s290, 1
                %s295 = sphi %s281, %s281
                %s296 = sphi %s279, %s279
              $region85: #{forward_pallas.1} parent=81 // loop_header_branch
                %293 = sbr.rel (%p291) target = $region89
              $region86: #{forward_pallas.1} parent=81 // loop_body
                %v297 = vld [vmem:[%s295] sm:$0xff]
                %298 = vst [vmem:[%s296] sm:$0xff] %v297
                %v299 = vld [vmem:[%s295 + $0x20] sm:$0xff]
                %300 = vst [vmem:[%s296 + $0x8] sm:$0xff] %v299
                %v301 = vld [vmem:[%s295 + $0x40] sm:$0xff]
                %302 = vst [vmem:[%s296 + $0x10] sm:$0xff] %v301
                %v303 = vld [vmem:[%s295 + $0x60] sm:$0xff]
                %304 = vst [vmem:[%s296 + $0x18] sm:$0xff] %v303
              $region87: #{forward_pallas.1} parent=81 // loop_footer
                %s294 = sadd.s32 1, %s290
              $region88: #{forward_pallas.1} parent=81 // loop_footer_branch
                %289 = sbr.rel target = $region84
              $region89: #{forward_pallas.1} parent=81 // loop_exit
                _
            $region82: #{forward_pallas.1} parent=73 // pred_fallthru
              _
          $region74: #{forward_pallas.1} parent=69 // pred_fallthru
            _
          %325 = vnop
        $region70: #{forward_pallas.1} parent=19 // pred_fallthru
          _
      $region20: #{forward_pallas.1} parent=5 // pred_fallthru
        _
      %p326 = scmp.le.s32.totalorder 1, %s11
      %p327 = scmp.lt.s32.totalorder %s11, 5
      %p328 = pnand %p326, %p327
      %p329 = pneg %p328
      // Predicated region
      $region105: #{forward_pallas.1} parent=5 // pred_check
        _
      $region106: #{forward_pallas.1} parent=5 // pred_check_branch
        %331 = sbr.rel (%p328) target = $region108
      $region107: #{forward_pallas.1} parent=5 // pred_region
        %s332 = ssub.s32 %s11, 1
        %s333 = sand.u32 %s45, 1
        %s334 = sand.u32 %s45, 1
        %s335 = smul.addr %s334, 80
        %s336 = scalar_lea.vmem [#allocation3], %s335
        // Predicated region
        $region109: #{forward_pallas.1} parent=107 // pred_check
          %p337 = pneg %p58
        $region110: #{forward_pallas.1} parent=107 // pred_check_branch
          %339 = sbr.rel (%p337) target = $region112
        $region111: #{forward_pallas.1} parent=107 // pred_region
          _
        $region112: #{forward_pallas.1} parent=107 // pred_fallthru
          _
        %s340 = sand.u32 %s123, 1
        %s341 = sand.u32 %s123, 1
        %s342 = smul.addr %s341, 32
        %s343 = scalar_lea.vmem [#allocation4], %s342
        // Predicated region
        $region113: #{forward_pallas.1} parent=107 // pred_check
          %p344 = pneg %p136
        $region114: #{forward_pallas.1} parent=107 // pred_check_branch
          %346 = sbr.rel (%p344) target = $region116
        $region115: #{forward_pallas.1} parent=107 // pred_region
          _
        $region116: #{forward_pallas.1} parent=107 // pred_fallthru
          _
        %p347 = pneg %p32
        %p348 = pneg %p29
        %s349 = sand.u32 %s45, 1
        %s350 = sand.u32 %s45, 1
        %s351 = smul.addr %s350, 80
        %s352 = scalar_lea.vmem [#allocation3], %s351
        %p353 = pneg %p58
        %p354 = pneg %p55
        %p355 = scmp.lt.s32.totalorder %s16, 3
        %s356 = scalar_select %p355, %s16, 3
        %s357 = scalar_lea.vmem %s2, %s356
        %p358 = pneg %p84
        %p359 = pneg %p81
        %p360 = scmp.lt.s32.totalorder %s16, 3
        %s361 = scalar_select %p360, %s16, 3
        %s362 = scalar_lea.vmem %s3, %s361
        %p363 = pneg %p110
        %p364 = pneg %p107
        %s365 = sand.u32 %s123, 1
        %s366 = sand.u32 %s123, 1
        %s367 = smul.addr %s366, 32
        %s368 = scalar_lea.vmem [#allocation4], %s367
        %p369 = pneg %p136
        %p370 = pneg %p133
        %p371 = pneg %p162
        %p372 = pneg %p159
        %s373 = sand.u32 %s149, 1
        %s374 = sand.u32 %s149, 1
        %s375 = smul.addr %s374, 224
        %s376 = scalar_lea.vmem [#allocation5], %s375
        %p377 = scmp.lt.s32.totalorder %s16, 3
        %s378 = scalar_select %p377, %s16, 3
        %s379 = scalar_lea.vmem %s2, %s378
        %p380 = scmp.lt.s32.totalorder %s16, 3
        %s381 = scalar_select %p380, %s16, 3
        %s382 = scalar_lea.vmem %s3, %s381
        %v383 = vld [vmem:[%s0] sm:$0xff]
        %v384 = vld [vmem:[%s0 + $0x8] sm:$0xff]
        %v385 = vld [vmem:[%s0 + $0x10] sm:$0xff]
        %v386 = vld [vmem:[%s0 + $0x18] sm:$0xff]
        %v387 = vld [vmem:[%s0 + $0x20] sm:$0xff]
        %v388 = vld [vmem:[%s0 + $0x28] sm:$0xff]
        %v389 = vld [vmem:[%s0 + $0x30] sm:$0xff]
        %v390 = vld [vmem:[%s0 + $0x38] sm:$0xff]
        %v391 = vld [vmem:[%s0 + $0x40] sm:$0xff]
        %v392 = vld [vmem:[%s0 + $0x48] sm:$0xff]
        %v393 = vld [vmem:[%s0 + $0x50] sm:$0xff]
        %v394 = vld [vmem:[%s0 + $0x58] sm:$0xff]
        %v395 = vld [vmem:[%s0 + $0x60] sm:$0xff]
        %v396 = vld [vmem:[%s0 + $0x68] sm:$0xff]
        %v397 = vld [vmem:[%s0 + $0x70] sm:$0xff]
        %v398 = vld [vmem:[%s0 + $0x78] sm:$0xff]
        %v399 = vld [vmem:[%s0 + $0x80] sm:$0xff]
        %v400 = vld [vmem:[%s0 + $0x88] sm:$0xff]
        %v401 = vld [vmem:[%s0 + $0x90] sm:$0xff]
        %v402 = vld [vmem:[%s0 + $0x98] sm:$0xff]
        %v403 = vld [vmem:[%s336] sm:$0xff]
        %v404 = vld [vmem:[%s336 + $0x8] sm:$0xff]
        %v405 = vld [vmem:[%s336 + $0x10] sm:$0xff]
        %v406 = vld [vmem:[%s336 + $0x18] sm:$0xff]
        %v407 = vld [vmem:[%s336 + $0x20] sm:$0xff]
        %v408 = vld [vmem:[%s336 + $0x28] sm:$0xff]
        %v409 = vld [vmem:[%s336 + $0x30] sm:$0xff]
        %v410 = vld [vmem:[%s336 + $0x38] sm:$0xff]
        %v411 = vld [vmem:[%s336 + $0x40] sm:$0xff]
        %v412 = vld [vmem:[%s336 + $0x48] sm:$0xff]
        %413 = vxpose.xlu0.b32.start [1/16] %v383, 128
        %414 = vxpose.xlu0.b32.cont [2/16] %v385, 128
        %415 = vxpose.xlu0.b32.cont [3/16] %v387, 128
        %416 = vxpose.xlu0.b32.cont [4/16] %v389, 128
        %417 = vxpose.xlu0.b32.cont [5/16] %v391, 128
        %418 = vxpose.xlu0.b32.cont [6/16] %v393, 128
        %419 = vxpose.xlu0.b32.cont [7/16] %v395, 128
        %420 = vxpose.xlu0.b32.cont [8/16] %v397, 128
        %421 = vxpose.xlu0.b32.cont [9/16] %v399, 128
        %422 = vxpose.xlu0.b32.cont [10/16] %v401, 128
        %423 = vxpose.xlu0.b32.cont [11/16] 0.0, 128
        %424 = vxpose.xlu0.b32.cont [12/16] 0.0, 128
        %425 = vxpose.xlu0.b32.cont [13/16] 0.0, 128
        %426 = vxpose.xlu0.b32.cont [14/16] 0.0, 128
        %427 = vxpose.xlu0.b32.cont [15/16] 0.0, 128
        %428 = vxpose.xlu0.b32.end [16/16] 0.0, 128
        %v429 = vpop.trf.xlu0
        %v430 = vpop.trf.xlu0
        %v431 = vpop.trf.xlu0
        %v432 = vpop.trf.xlu0
        %v433 = vpop.trf.xlu0
        %v434 = vpop.trf.xlu0
        %v435 = vpop.trf.xlu0
        %v436 = vpop.trf.xlu0
        %v437 = vpop.trf.xlu0
        %v438 = vpop.trf.xlu0
        %v439 = vpop.trf.xlu0
        %v440 = vpop.trf.xlu0
        %v441 = vpop.trf.xlu0
        %v442 = vpop.trf.xlu0
        %v443 = vpop.trf.xlu0
        %v444 = vpop.trf.xlu0
        %445 = vxpose.xlu0.b32.start [1/16] %v384, 128
        %446 = vxpose.xlu0.b32.cont [2/16] %v386, 128
        %447 = vxpose.xlu0.b32.cont [3/16] %v388, 128
        %448 = vxpose.xlu0.b32.cont [4/16] %v390, 128
        %449 = vxpose.xlu0.b32.cont [5/16] %v392, 128
        %450 = vxpose.xlu0.b32.cont [6/16] %v394, 128
        %451 = vxpose.xlu0.b32.cont [7/16] %v396, 128
        %452 = vxpose.xlu0.b32.cont [8/16] %v398, 128
        %453 = vxpose.xlu0.b32.cont [9/16] %v400, 128
        %454 = vxpose.xlu0.b32.cont [10/16] %v402, 128
        %455 = vxpose.xlu0.b32.cont [11/16] 0.0, 128
        %456 = vxpose.xlu0.b32.cont [12/16] 0.0, 128
        %457 = vxpose.xlu0.b32.cont [13/16] 0.0, 128
        %458 = vxpose.xlu0.b32.cont [14/16] 0.0, 128
        %459 = vxpose.xlu0.b32.cont [15/16] 0.0, 128
        %460 = vxpose.xlu0.b32.end [16/16] 0.0, 128
        %v461 = vpop.trf.xlu0
        %v462 = vpop.trf.xlu0
        %v463 = vpop.trf.xlu0
        %v464 = vpop.trf.xlu0
        %v465 = vpop.trf.xlu0
        %v466 = vpop.trf.xlu0
        %v467 = vpop.trf.xlu0
        %v468 = vpop.trf.xlu0
        %v469 = vpop.trf.xlu0
        %v470 = vpop.trf.xlu0
        %v471 = vpop.trf.xlu0
        %v472 = vpop.trf.xlu0
        %v473 = vpop.trf.xlu0
        %v474 = vpop.trf.xlu0
        %v475 = vpop.trf.xlu0
        %v476 = vpop.trf.xlu0
        %vm477 = vcmask 654336
        %v479 = vsel %vm477, %v429, 0
        %v482 = vsel %vm477, %v430, 0
        %v485 = vsel %vm477, %v431, 0
        %v488 = vsel %vm477, %v432, 0
        %v491 = vsel %vm477, %v433, 0
        %v494 = vsel %vm477, %v434, 0
        %v497 = vsel %vm477, %v435, 0
        %v500 = vsel %vm477, %v436, 0
        %v503 = vsel %vm477, %v437, 0
        %v506 = vsel %vm477, %v438, 0
        %v509 = vsel %vm477, %v439, 0
        %v512 = vsel %vm477, %v440, 0
        %v515 = vsel %vm477, %v441, 0
        %v518 = vsel %vm477, %v442, 0
        %v521 = vsel %vm477, %v443, 0
        %v524 = vsel %vm477, %v444, 0
        %v527 = vsel %vm477, %v461, 0
        %v530 = vsel %vm477, %v462, 0
        %v533 = vsel %vm477, %v463, 0
        %v536 = vsel %vm477, %v464, 0
        %v539 = vsel %vm477, %v465, 0
        %v542 = vsel %vm477, %v466, 0
        %v545 = vsel %vm477, %v467, 0
        %v548 = vsel %vm477, %v468, 0
        %v551 = vsel %vm477, %v469, 0
        %v554 = vsel %vm477, %v470, 0
        %v557 = vsel %vm477, %v471, 0
        %v560 = vsel %vm477, %v472, 0
        %562 = vmatprep.subr.mxu0 0.0
        %563 = vmatpush1.msra.mxu0 %v403
        %564 = vmatprep.subr.mxu0 0.0
        %565 = vmatpush1.msra.mxu0 %v404
        %566 = vmatprep.subr.mxu0 0.0
        %567 = vmatpush1.msra.mxu0 %v405
        %568 = vmatprep.subr.mxu0 0.0
        %569 = vmatpush1.msra.mxu0 %v406
        %570 = vmatprep.subr.mxu0 0.0
        %571 = vmatpush1.msra.mxu0 %v407
        %572 = vmatprep.subr.mxu0 0.0
        %573 = vmatpush1.msra.mxu0 %v408
        %574 = vmatprep.subr.mxu0 0.0
        %575 = vmatpush1.msra.mxu0 %v409
        %576 = vmatprep.subr.mxu0 0.0
        %577 = vmatpush1.msra.mxu0 %v410
        %578 = vmatprep.subr.mxu0 0.0
        %579 = vmatpush1.msra.mxu0 %v411
        %580 = vmatprep.subr.mxu0 0.0
        %581 = vmatpush1.msra.mxu0 %v412
        %582 = vmatprep.subr.mxu0 0.0
        %583 = vmatpush1.msra.mxu0 0.0
        %584 = vmatprep.subr.mxu0 0.0
        %585 = vmatpush1.msra.mxu0 0.0
        %586 = vmatprep.subr.mxu0 0.0
        %587 = vmatpush1.msra.mxu0 0.0
        %588 = vmatprep.subr.mxu0 0.0
        %589 = vmatpush1.msra.mxu0 0.0
        %590 = vmatprep.subr.mxu0 0.0
        %591 = vmatpush1.msra.mxu0 0.0
        %592 = vmatprep.subr.mxu0 0.0
        %593 = vmatpush1.msra.mxu0 0.0
        %594 = vmatprep.subr.mxu0 0.0
        %595 = vmatpush1.msra.mxu0 0.0
        %596 = vmatprep.subr.mxu0 0.0
        %597 = vmatpush1.msra.mxu0 0.0
        %598 = vmatprep.subr.mxu0 0.0
        %599 = vmatpush1.msra.mxu0 0.0
        %600 = vmatprep.subr.mxu0 0.0
        %601 = vmatpush1.msra.mxu0 0.0
        %602 = vmatprep.subr.mxu0 0.0
        %603 = vmatpush1.msra.mxu0 0.0
        %604 = vmatprep.subr.mxu0 0.0
        %605 = vmatpush1.msra.mxu0 0.0
        %606 = vmatprep.subr.mxu0 0.0
        %607 = vmatpush1.msra.mxu0 0.0
        %608 = vmatprep.subr.mxu0 0.0
        %609 = vmatpush1.msra.mxu0 0.0
        %610 = vmatprep.subr.mxu0 0.0
        %611 = vmatpush1.msra.mxu0 0.0
        %612 = vmatprep.subr.mxu0 0.0
        %613 = vmatpush1.msra.mxu0 0.0
        %614 = vmatprep.subr.mxu0 0.0
        %615 = vmatpush1.msra.mxu0 0.0
        %616 = vmatprep.subr.mxu0 0.0
        %617 = vmatpush1.msra.mxu0 0.0
        %618 = vmatprep.subr.mxu0 0.0
        %619 = vmatpush1.msra.mxu0 0.0
        %620 = vmatprep.subr.mxu0 0.0
        %621 = vmatpush1.msra.mxu0 0.0
        %622 = vmatprep.subr.mxu0 0.0
        %623 = vmatpush1.msra.mxu0 0.0
        %624 = vmatprep.subr.mxu0 0.0
        %625 = vmatpush1.msra.mxu0 0.0
        %626 = vmatprep.mubr.f32.mxu0 0.0
        %627 = vmatmul.mubr.f32.gmra.mrb[0].mxu0 %v479
        %v628 = vpop.f32.mrb[0].mxu0
        %v629 = vadd.f32 0.0, %v628
        %v630 = vpop.f32.mrb[0].mxu0
        %631 = vmatprep.mubr.f32.mxu0 0.0
        %632 = vmatmul.mubr.f32.gmra.mrb[0].mxu0 %v482
        %v633 = vpop.f32.mrb[0].mxu0
        %v634 = vadd.f32 0.0, %v633
        %v635 = vpop.f32.mrb[0].mxu0
        %636 = vmatprep.mubr.f32.mxu0 0.0
        %637 = vmatmul.mubr.f32.gmra.mrb[0].mxu0 %v485
        %v638 = vpop.f32.mrb[0].mxu0
        %v639 = vadd.f32 0.0, %v638
        %v640 = vpop.f32.mrb[0].mxu0
        %641 = vmatprep.mubr.f32.mxu0 0.0
        %642 = vmatmul.mubr.f32.gmra.mrb[0].mxu0 %v488
        %v643 = vpop.f32.mrb[0].mxu0
        %v644 = vadd.f32 0.0, %v643
        %v645 = vpop.f32.mrb[0].mxu0
        %646 = vmatprep.mubr.f32.mxu0 0.0
        %647 = vmatmul.mubr.f32.gmra.mrb[0].mxu0 %v491
        %v648 = vpop.f32.mrb[0].mxu0
        %v649 = vadd.f32 0.0, %v648
        %v650 = vpop.f32.mrb[0].mxu0
        %651 = vmatprep.mubr.f32.mxu0 0.0
        %652 = vmatmul.mubr.f32.gmra.mrb[0].mxu0 %v494
        %v653 = vpop.f32.mrb[0].mxu0
        %v654 = vadd.f32 0.0, %v653
        %v655 = vpop.f32.mrb[0].mxu0
        %656 = vmatprep.mubr.f32.mxu0 0.0
        %657 = vmatmul.mubr.f32.gmra.mrb[0].mxu0 %v497
        %v658 = vpop.f32.mrb[0].mxu0
        %v659 = vadd.f32 0.0, %v658
        %v660 = vpop.f32.mrb[0].mxu0
        %661 = vmatprep.mubr.f32.mxu0 0.0
        %662 = vmatmul.mubr.f32.gmra.mrb[0].mxu0 %v500
        %v663 = vpop.f32.mrb[0].mxu0
        %v664 = vadd.f32 0.0, %v663
        %v665 = vpop.f32.mrb[0].mxu0
        %666 = vmatprep.mubr.f32.mxu0 0.0
        %667 = vmatmul.mubr.f32.gmra.mrb[0].mxu0 %v503
        %v668 = vpop.f32.mrb[0].mxu0
        %v669 = vadd.f32 0.0, %v668
        %v670 = vpop.f32.mrb[0].mxu0
        %671 = vmatprep.mubr.f32.mxu0 0.0
        %672 = vmatmul.mubr.f32.gmra.mrb[0].mxu0 %v506
        %v673 = vpop.f32.mrb[0].mxu0
        %v674 = vadd.f32 0.0, %v673
        %v675 = vpop.f32.mrb[0].mxu0
        %676 = vmatprep.mubr.f32.mxu0 0.0
        %677 = vmatmul.mubr.f32.gmra.mrb[0].mxu0 %v509
        %v678 = vpop.f32.mrb[0].mxu0
        %v679 = vadd.f32 0.0, %v678
        %v680 = vpop.f32.mrb[0].mxu0
        %681 = vmatprep.mubr.f32.mxu0 0.0
        %682 = vmatmul.mubr.f32.gmra.mrb[0].mxu0 %v512
        %v683 = vpop.f32.mrb[0].mxu0
        %v684 = vadd.f32 0.0, %v683
        %v685 = vpop.f32.mrb[0].mxu0
        %686 = vmatprep.mubr.f32.mxu0 0.0
        %687 = vmatmul.mubr.f32.gmra.mrb[0].mxu0 %v515
        %v688 = vpop.f32.mrb[0].mxu0
        %v689 = vadd.f32 0.0, %v688
        %v690 = vpop.f32.mrb[0].mxu0
        %691 = vmatprep.mubr.f32.mxu0 0.0
        %692 = vmatmul.mubr.f32.gmra.mrb[0].mxu0 %v518
        %v693 = vpop.f32.mrb[0].mxu0
        %v694 = vadd.f32 0.0, %v693
        %v695 = vpop.f32.mrb[0].mxu0
        %696 = vmatprep.mubr.f32.mxu0 0.0
        %697 = vmatmul.mubr.f32.gmra.mrb[0].mxu0 %v521
        %v698 = vpop.f32.mrb[0].mxu0
        %v699 = vadd.f32 0.0, %v698
        %v700 = vpop.f32.mrb[0].mxu0
        %701 = vmatprep.mubr.f32.mxu0 0.0
        %702 = vmatmul.mubr.f32.gmra.mrb[0].mxu0 %v524
        %v703 = vpop.f32.mrb[0].mxu0
        %v704 = vadd.f32 0.0, %v703
        %v705 = vpop.f32.mrb[0].mxu0
        %706 = vmatprep.mubr.f32.mxu0 0.0
        %707 = vmatmul.mubr.f32.gmra.mrb[0].mxu0 %v527
        %v708 = vpop.f32.mrb[0].mxu0
        %v709 = vadd.f32 0.0, %v708
        %v710 = vpop.f32.mrb[0].mxu0
        %711 = vmatprep.mubr.f32.mxu0 0.0
        %712 = vmatmul.mubr.f32.gmra.mrb[0].mxu0 %v530
        %v713 = vpop.f32.mrb[0].mxu0
        %v714 = vadd.f32 0.0, %v713
        %v715 = vpop.f32.mrb[0].mxu0
        %716 = vmatprep.mubr.f32.mxu0 0.0
        %717 = vmatmul.mubr.f32.gmra.mrb[0].mxu0 %v533
        %v718 = vpop.f32.mrb[0].mxu0
        %v719 = vadd.f32 0.0, %v718
        %v720 = vpop.f32.mrb[0].mxu0
        %721 = vmatprep.mubr.f32.mxu0 0.0
        %722 = vmatmul.mubr.f32.gmra.mrb[0].mxu0 %v536
        %v723 = vpop.f32.mrb[0].mxu0
        %v724 = vadd.f32 0.0, %v723
        %v725 = vpop.f32.mrb[0].mxu0
        %726 = vmatprep.mubr.f32.mxu0 0.0
        %727 = vmatmul.mubr.f32.gmra.mrb[0].mxu0 %v539
        %v728 = vpop.f32.mrb[0].mxu0
        %v729 = vadd.f32 0.0, %v728
        %v730 = vpop.f32.mrb[0].mxu0
        %731 = vmatprep.mubr.f32.mxu0 0.0
        %732 = vmatmul.mubr.f32.gmra.mrb[0].mxu0 %v542
        %v733 = vpop.f32.mrb[0].mxu0
        %v734 = vadd.f32 0.0, %v733
        %v735 = vpop.f32.mrb[0].mxu0
        %736 = vmatprep.mubr.f32.mxu0 0.0
        %737 = vmatmul.mubr.f32.gmra.mrb[0].mxu0 %v545
        %v738 = vpop.f32.mrb[0].mxu0
        %v739 = vadd.f32 0.0, %v738
        %v740 = vpop.f32.mrb[0].mxu0
        %741 = vmatprep.mubr.f32.mxu0 0.0
        %742 = vmatmul.mubr.f32.gmra.mrb[0].mxu0 %v548
        %v743 = vpop.f32.mrb[0].mxu0
        %v744 = vadd.f32 0.0, %v743
        %v745 = vpop.f32.mrb[0].mxu0
        %746 = vmatprep.mubr.f32.mxu0 0.0
        %747 = vmatmul.mubr.f32.gmra.mrb[0].mxu0 %v551
        %v748 = vpop.f32.mrb[0].mxu0
        %v749 = vadd.f32 0.0, %v748
        %v750 = vpop.f32.mrb[0].mxu0
        %751 = vmatprep.mubr.f32.mxu0 0.0
        %752 = vmatmul.mubr.f32.gmra.mrb[0].mxu0 %v554
        %v753 = vpop.f32.mrb[0].mxu0
        %v754 = vadd.f32 0.0, %v753
        %v755 = vpop.f32.mrb[0].mxu0
        %756 = vmatprep.mubr.f32.mxu0 0.0
        %757 = vmatmul.mubr.f32.gmra.mrb[0].mxu0 %v557
        %v758 = vpop.f32.mrb[0].mxu0
        %v759 = vadd.f32 0.0, %v758
        %v760 = vpop.f32.mrb[0].mxu0
        %761 = vmatprep.mubr.f32.mxu0 0.0
        %762 = vmatmul.mubr.f32.gmra.mrb[0].mxu0 %v560
        %v763 = vpop.f32.mrb[0].mxu0
        %v764 = vadd.f32 0.0, %v763
        %v765 = vpop.f32.mrb[0].mxu0
        %766 = vdwg.mxu0
        %v767 = vlaneseq
        %v768 = vshrl.u32 %v767, 7
        %v769 = vadd.s32 %v768, 8
        %v770 = vadd.s32 %v768, 16
        %v771 = vadd.s32 %v768, 24
        %v772 = vadd.s32 %v768, 32
        %v773 = vadd.s32 %v768, 40
        %v774 = vadd.s32 %v768, 48
        %v775 = vadd.s32 %v768, 56
        %v776 = vadd.s32 %v768, 64
        %v777 = vadd.s32 %v768, 72
        %v778 = vadd.s32 %v768, 80
        %v779 = vadd.s32 %v768, 88
        %v780 = vadd.s32 %v768, 96
        %v781 = vadd.s32 %v768, 104
        %v782 = vadd.s32 %v768, 112
        %v783 = vadd.s32 %v768, 120
        %v784 = vadd.s32 %v768, 128
        %v785 = vadd.s32 %v768, 136
        %v786 = vadd.s32 %v768, 144
        %v787 = vadd.s32 %v768, 152
        %v788 = vadd.s32 %v768, 160
        %v789 = vadd.s32 %v768, 168
        %v790 = vadd.s32 %v768, 176
        %v791 = vadd.s32 %v768, 184
        %v792 = vadd.s32 %v768, 192
        %v793 = vadd.s32 %v768, 200
        %v794 = vadd.s32 %v768, 208
        %v795 = vadd.s32 %v768, 216
        %vm796 = vcmp.lt.s32.totalorder %v768, 0
        %v797 = vsub.s32 0, %v768
        %v798 = vsel %vm796, %v797, %v768
        %v799 = vshrl.u32 %v798, 4
        %v800 = vand.u32 %v798, 15
        %v801 = vsub.s32 0, %v800
        %v802 = vsel %vm796, %v801, %v800
        %vm803 = vcmp.lt.s32.totalorder %v769, 0
        %v804 = vsub.s32 0, %v769
        %v805 = vsel %vm803, %v804, %v769
        %v806 = vshrl.u32 %v805, 4
        %v807 = vand.u32 %v805, 15
        %v808 = vsub.s32 0, %v807
        %v809 = vsel %vm803, %v808, %v807
        %vm810 = vcmp.lt.s32.totalorder %v770, 0
        %v811 = vsub.s32 0, %v770
        %v812 = vsel %vm810, %v811, %v770
        %v813 = vshrl.u32 %v812, 4
        %v814 = vand.u32 %v812, 15
        %v815 = vsub.s32 0, %v814
        %v816 = vsel %vm810, %v815, %v814
        %vm817 = vcmp.lt.s32.totalorder %v771, 0
        %v818 = vsub.s32 0, %v771
        %v819 = vsel %vm817, %v818, %v771
        %v820 = vshrl.u32 %v819, 4
        %v821 = vand.u32 %v819, 15
        %v822 = vsub.s32 0, %v821
        %v823 = vsel %vm817, %v822, %v821
        %vm824 = vcmp.lt.s32.totalorder %v772, 0
        %v825 = vsub.s32 0, %v772
        %v826 = vsel %vm824, %v825, %v772
        %v827 = vshrl.u32 %v826, 4
        %v828 = vand.u32 %v826, 15
        %v829 = vsub.s32 0, %v828
        %v830 = vsel %vm824, %v829, %v828
        %vm831 = vcmp.lt.s32.totalorder %v773, 0
        %v832 = vsub.s32 0, %v773
        %v833 = vsel %vm831, %v832, %v773
        %v834 = vshrl.u32 %v833, 4
        %v835 = vand.u32 %v833, 15
        %v836 = vsub.s32 0, %v835
        %v837 = vsel %vm831, %v836, %v835
        %vm838 = vcmp.lt.s32.totalorder %v774, 0
        %v839 = vsub.s32 0, %v774
        %v840 = vsel %vm838, %v839, %v774
        %v841 = vshrl.u32 %v840, 4
        %v842 = vand.u32 %v840, 15
        %v843 = vsub.s32 0, %v842
        %v844 = vsel %vm838, %v843, %v842
        %vm845 = vcmp.lt.s32.totalorder %v775, 0
        %v846 = vsub.s32 0, %v775
        %v847 = vsel %vm845, %v846, %v775
        %v848 = vshrl.u32 %v847, 4
        %v849 = vand.u32 %v847, 15
        %v850 = vsub.s32 0, %v849
        %v851 = vsel %vm845, %v850, %v849
        %vm852 = vcmp.lt.s32.totalorder %v776, 0
        %v853 = vsub.s32 0, %v776
        %v854 = vsel %vm852, %v853, %v776
        %v855 = vshrl.u32 %v854, 4
        %v856 = vand.u32 %v854, 15
        %v857 = vsub.s32 0, %v856
        %v858 = vsel %vm852, %v857, %v856
        %vm859 = vcmp.lt.s32.totalorder %v777, 0
        %v860 = vsub.s32 0, %v777
        %v861 = vsel %vm859, %v860, %v777
        %v862 = vshrl.u32 %v861, 4
        %v863 = vand.u32 %v861, 15
        %v864 = vsub.s32 0, %v863
        %v865 = vsel %vm859, %v864, %v863
        %vm866 = vcmp.lt.s32.totalorder %v778, 0
        %v867 = vsub.s32 0, %v778
        %v868 = vsel %vm866, %v867, %v778
        %v869 = vshrl.u32 %v868, 4
        %v870 = vand.u32 %v868, 15
        %v871 = vsub.s32 0, %v870
        %v872 = vsel %vm866, %v871, %v870
        %vm873 = vcmp.lt.s32.totalorder %v779, 0
        %v874 = vsub.s32 0, %v779
        %v875 = vsel %vm873, %v874, %v779
        %v876 = vshrl.u32 %v875, 4
        %v877 = vand.u32 %v875, 15
        %v878 = vsub.s32 0, %v877
        %v879 = vsel %vm873, %v878, %v877
        %vm880 = vcmp.lt.s32.totalorder %v780, 0
        %v881 = vsub.s32 0, %v780
        %v882 = vsel %vm880, %v881, %v780
        %v883 = vshrl.u32 %v882, 4
        %v884 = vand.u32 %v882, 15
        %v885 = vsub.s32 0, %v884
        %v886 = vsel %vm880, %v885, %v884
        %vm887 = vcmp.lt.s32.totalorder %v781, 0
        %v888 = vsub.s32 0, %v781
        %v889 = vsel %vm887, %v888, %v781
        %v890 = vshrl.u32 %v889, 4
        %v891 = vand.u32 %v889, 15
        %v892 = vsub.s32 0, %v891
        %v893 = vsel %vm887, %v892, %v891
        %vm894 = vcmp.lt.s32.totalorder %v782, 0
        %v895 = vsub.s32 0, %v782
        %v896 = vsel %vm894, %v895, %v782
        %v897 = vshrl.u32 %v896, 4
        %v898 = vand.u32 %v896, 15
        %v899 = vsub.s32 0, %v898
        %v900 = vsel %vm894, %v899, %v898
        %vm901 = vcmp.lt.s32.totalorder %v783, 0
        %v902 = vsub.s32 0, %v783
        %v903 = vsel %vm901, %v902, %v783
        %v904 = vshrl.u32 %v903, 4
        %v905 = vand.u32 %v903, 15
        %v906 = vsub.s32 0, %v905
        %v907 = vsel %vm901, %v906, %v905
        %vm908 = vcmp.lt.s32.totalorder %v784, 0
        %v909 = vsub.s32 0, %v784
        %v910 = vsel %vm908, %v909, %v784
        %v911 = vshrl.u32 %v910, 4
        %v912 = vand.u32 %v910, 15
        %v913 = vsub.s32 0, %v912
        %v914 = vsel %vm908, %v913, %v912
        %vm915 = vcmp.lt.s32.totalorder %v785, 0
        %v916 = vsub.s32 0, %v785
        %v917 = vsel %vm915, %v916, %v785
        %v918 = vshrl.u32 %v917, 4
        %v919 = vand.u32 %v917, 15
        %v920 = vsub.s32 0, %v919
        %v921 = vsel %vm915, %v920, %v919
        %vm922 = vcmp.lt.s32.totalorder %v786, 0
        %v923 = vsub.s32 0, %v786
        %v924 = vsel %vm922, %v923, %v786
        %v925 = vshrl.u32 %v924, 4
        %v926 = vand.u32 %v924, 15
        %v927 = vsub.s32 0, %v926
        %v928 = vsel %vm922, %v927, %v926
        %vm929 = vcmp.lt.s32.totalorder %v787, 0
        %v930 = vsub.s32 0, %v787
        %v931 = vsel %vm929, %v930, %v787
        %v932 = vshrl.u32 %v931, 4
        %v933 = vand.u32 %v931, 15
        %v934 = vsub.s32 0, %v933
        %v935 = vsel %vm929, %v934, %v933
        %vm936 = vcmp.lt.s32.totalorder %v788, 0
        %v937 = vsub.s32 0, %v788
        %v938 = vsel %vm936, %v937, %v788
        %v939 = vshrl.u32 %v938, 4
        %v940 = vand.u32 %v938, 15
        %v941 = vsub.s32 0, %v940
        %v942 = vsel %vm936, %v941, %v940
        %vm943 = vcmp.lt.s32.totalorder %v789, 0
        %v944 = vsub.s32 0, %v789
        %v945 = vsel %vm943, %v944, %v789
        %v946 = vshrl.u32 %v945, 4
        %v947 = vand.u32 %v945, 15
        %v948 = vsub.s32 0, %v947
        %v949 = vsel %vm943, %v948, %v947
        %vm950 = vcmp.lt.s32.totalorder %v790, 0
        %v951 = vsub.s32 0, %v790
        %v952 = vsel %vm950, %v951, %v790
        %v953 = vshrl.u32 %v952, 4
        %v954 = vand.u32 %v952, 15
        %v955 = vsub.s32 0, %v954
        %v956 = vsel %vm950, %v955, %v954
        %vm957 = vcmp.lt.s32.totalorder %v791, 0
        %v958 = vsub.s32 0, %v791
        %v959 = vsel %vm957, %v958, %v791
        %v960 = vshrl.u32 %v959, 4
        %v961 = vand.u32 %v959, 15
        %v962 = vsub.s32 0, %v961
        %v963 = vsel %vm957, %v962, %v961
        %vm964 = vcmp.lt.s32.totalorder %v792, 0
        %v965 = vsub.s32 0, %v792
        %v966 = vsel %vm964, %v965, %v792
        %v967 = vshrl.u32 %v966, 4
        %v968 = vand.u32 %v966, 15
        %v969 = vsub.s32 0, %v968
        %v970 = vsel %vm964, %v969, %v968
        %vm971 = vcmp.lt.s32.totalorder %v793, 0
        %v972 = vsub.s32 0, %v793
        %v973 = vsel %vm971, %v972, %v793
        %v974 = vshrl.u32 %v973, 4
        %v975 = vand.u32 %v973, 15
        %v976 = vsub.s32 0, %v975
        %v977 = vsel %vm971, %v976, %v975
        %vm978 = vcmp.lt.s32.totalorder %v794, 0
        %v979 = vsub.s32 0, %v794
        %v980 = vsel %vm978, %v979, %v794
        %v981 = vshrl.u32 %v980, 4
        %v982 = vand.u32 %v980, 15
        %v983 = vsub.s32 0, %v982
        %v984 = vsel %vm978, %v983, %v982
        %vm985 = vcmp.lt.s32.totalorder %v795, 0
        %v986 = vsub.s32 0, %v795
        %v987 = vsel %vm985, %v986, %v795
        %v988 = vshrl.u32 %v987, 4
        %v989 = vand.u32 %v987, 15
        %v990 = vsub.s32 0, %v989
        %v991 = vsel %vm985, %v990, %v989
        %vm992 = vcmp.ne.s32.totalorder %v802, 0
        %vm993 = vcmp.ne.s32.totalorder %v809, 0
        %vm994 = vcmp.ne.s32.totalorder %v816, 0
        %vm995 = vcmp.ne.s32.totalorder %v823, 0
        %vm996 = vcmp.ne.s32.totalorder %v830, 0
        %vm997 = vcmp.ne.s32.totalorder %v837, 0
        %vm998 = vcmp.ne.s32.totalorder %v844, 0
        %vm999 = vcmp.ne.s32.totalorder %v851, 0
        %vm1000 = vcmp.ne.s32.totalorder %v858, 0
        %vm1001 = vcmp.ne.s32.totalorder %v865, 0
        %vm1002 = vcmp.ne.s32.totalorder %v872, 0
        %vm1003 = vcmp.ne.s32.totalorder %v879, 0
        %vm1004 = vcmp.ne.s32.totalorder %v886, 0
        %vm1005 = vcmp.ne.s32.totalorder %v893, 0
        %vm1006 = vcmp.ne.s32.totalorder %v900, 0
        %vm1007 = vcmp.ne.s32.totalorder %v907, 0
        %vm1008 = vcmp.ne.s32.totalorder %v914, 0
        %vm1009 = vcmp.ne.s32.totalorder %v921, 0
        %vm1010 = vcmp.ne.s32.totalorder %v928, 0
        %vm1011 = vcmp.ne.s32.totalorder %v935, 0
        %vm1012 = vcmp.ne.s32.totalorder %v942, 0
        %vm1013 = vcmp.ne.s32.totalorder %v949, 0
        %vm1014 = vcmp.ne.s32.totalorder %v956, 0
        %vm1015 = vcmp.ne.s32.totalorder %v963, 0
        %vm1016 = vcmp.ne.s32.totalorder %v970, 0
        %vm1017 = vcmp.ne.s32.totalorder %v977, 0
        %vm1018 = vcmp.ne.s32.totalorder %v984, 0
        %vm1019 = vcmp.ne.s32.totalorder %v991, 0
        %vm1020 = vcmp.lt.s32.totalorder %v802, 0
        %vm1021 = vcmp.lt.s32.totalorder %v809, 0
        %vm1022 = vcmp.lt.s32.totalorder %v816, 0
        %vm1023 = vcmp.lt.s32.totalorder %v823, 0
        %vm1024 = vcmp.lt.s32.totalorder %v830, 0
        %vm1025 = vcmp.lt.s32.totalorder %v837, 0
        %vm1026 = vcmp.lt.s32.totalorder %v844, 0
        %vm1027 = vcmp.lt.s32.totalorder %v851, 0
        %vm1028 = vcmp.lt.s32.totalorder %v858, 0
        %vm1029 = vcmp.lt.s32.totalorder %v865, 0
        %vm1030 = vcmp.lt.s32.totalorder %v872, 0
        %vm1031 = vcmp.lt.s32.totalorder %v879, 0
        %vm1032 = vcmp.lt.s32.totalorder %v886, 0
        %vm1033 = vcmp.lt.s32.totalorder %v893, 0
        %vm1034 = vcmp.lt.s32.totalorder %v900, 0
        %vm1035 = vcmp.lt.s32.totalorder %v907, 0
        %vm1036 = vcmp.lt.s32.totalorder %v914, 0
        %vm1037 = vcmp.lt.s32.totalorder %v921, 0
        %vm1038 = vcmp.lt.s32.totalorder %v928, 0
        %vm1039 = vcmp.lt.s32.totalorder %v935, 0
        %vm1040 = vcmp.lt.s32.totalorder %v942, 0
        %vm1041 = vcmp.lt.s32.totalorder %v949, 0
        %vm1042 = vcmp.lt.s32.totalorder %v956, 0
        %vm1043 = vcmp.lt.s32.totalorder %v963, 0
        %vm1044 = vcmp.lt.s32.totalorder %v970, 0
        %vm1045 = vcmp.lt.s32.totalorder %v977, 0
        %vm1046 = vcmp.lt.s32.totalorder %v984, 0
        %vm1047 = vcmp.lt.s32.totalorder %v991, 0
        %vm1048 = vmand %vm1020, %vm992
        %vm1049 = vmand %vm1021, %vm993
        %vm1050 = vmand %vm1022, %vm994
        %vm1051 = vmand %vm1023, %vm995
        %vm1052 = vmand %vm1024, %vm996
        %vm1053 = vmand %vm1025, %vm997
        %vm1054 = vmand %vm1026, %vm998
        %vm1055 = vmand %vm1027, %vm999
        %vm1056 = vmand %vm1028, %vm1000
        %vm1057 = vmand %vm1029, %vm1001
        %vm1058 = vmand %vm1030, %vm1002
        %vm1059 = vmand %vm1031, %vm1003
        %vm1060 = vmand %vm1032, %vm1004
        %vm1061 = vmand %vm1033, %vm1005
        %vm1062 = vmand %vm1034, %vm1006
        %vm1063 = vmand %vm1035, %vm1007
        %vm1064 = vmand %vm1036, %vm1008
        %vm1065 = vmand %vm1037, %vm1009
        %vm1066 = vmand %vm1038, %vm1010
        %vm1067 = vmand %vm1039, %vm1011
        %vm1068 = vmand %vm1040, %vm1012
        %vm1069 = vmand %vm1041, %vm1013
        %vm1070 = vmand %vm1042, %vm1014
        %vm1071 = vmand %vm1043, %vm1015
        %vm1072 = vmand %vm1044, %vm1016
        %vm1073 = vmand %vm1045, %vm1017
        %vm1074 = vmand %vm1046, %vm1018
        %vm1075 = vmand %vm1047, %vm1019
        %v1076 = vadd.s32 %v802, 16
        %v1077 = vadd.s32 %v809, 16
        %v1078 = vadd.s32 %v816, 16
        %v1079 = vadd.s32 %v823, 16
        %v1080 = vadd.s32 %v830, 16
        %v1081 = vadd.s32 %v837, 16
        %v1082 = vadd.s32 %v844, 16
        %v1083 = vadd.s32 %v851, 16
        %v1084 = vadd.s32 %v858, 16
        %v1085 = vadd.s32 %v865, 16
        %v1086 = vadd.s32 %v872, 16
        %v1087 = vadd.s32 %v879, 16
        %v1088 = vadd.s32 %v886, 16
        %v1089 = vadd.s32 %v893, 16
        %v1090 = vadd.s32 %v900, 16
        %v1091 = vadd.s32 %v907, 16
        %v1092 = vadd.s32 %v914, 16
        %v1093 = vadd.s32 %v921, 16
        %v1094 = vadd.s32 %v928, 16
        %v1095 = vadd.s32 %v935, 16
        %v1096 = vadd.s32 %v942, 16
        %v1097 = vadd.s32 %v949, 16
        %v1098 = vadd.s32 %v956, 16
        %v1099 = vadd.s32 %v963, 16
        %v1100 = vadd.s32 %v970, 16
        %v1101 = vadd.s32 %v977, 16
        %v1102 = vadd.s32 %v984, 16
        %v1103 = vadd.s32 %v991, 16
        %v1104 = vsel %vm1048, %v1076, %v802
        %v1105 = vsel %vm1049, %v1077, %v809
        %v1106 = vsel %vm1050, %v1078, %v816
        %v1107 = vsel %vm1051, %v1079, %v823
        %v1108 = vsel %vm1052, %v1080, %v830
        %v1109 = vsel %vm1053, %v1081, %v837
        %v1110 = vsel %vm1054, %v1082, %v844
        %v1111 = vsel %vm1055, %v1083, %v851
        %v1112 = vsel %vm1056, %v1084, %v858
        %v1113 = vsel %vm1057, %v1085, %v865
        %v1114 = vsel %vm1058, %v1086, %v872
        %v1115 = vsel %vm1059, %v1087, %v879
        %v1116 = vsel %vm1060, %v1088, %v886
        %v1117 = vsel %vm1061, %v1089, %v893
        %v1118 = vsel %vm1062, %v1090, %v900
        %v1119 = vsel %vm1063, %v1091, %v907
        %v1120 = vsel %vm1064, %v1092, %v914
        %v1121 = vsel %vm1065, %v1093, %v921
        %v1122 = vsel %vm1066, %v1094, %v928
        %v1123 = vsel %vm1067, %v1095, %v935
        %v1124 = vsel %vm1068, %v1096, %v942
        %v1125 = vsel %vm1069, %v1097, %v949
        %v1126 = vsel %vm1070, %v1098, %v956
        %v1127 = vsel %vm1071, %v1099, %v963
        %v1128 = vsel %vm1072, %v1100, %v970
        %v1129 = vsel %vm1073, %v1101, %v977
        %v1130 = vsel %vm1074, %v1102, %v984
        %v1131 = vsel %vm1075, %v1103, %v991
        %vm1132 = vcmp.lt.s32.totalorder %v1104, 14
        %vm1133 = vcmp.lt.s32.totalorder %v1105, 14
        %vm1134 = vcmp.lt.s32.totalorder %v1106, 14
        %vm1135 = vcmp.lt.s32.totalorder %v1107, 14
        %vm1136 = vcmp.lt.s32.totalorder %v1108, 14
        %vm1137 = vcmp.lt.s32.totalorder %v1109, 14
        %vm1138 = vcmp.lt.s32.totalorder %v1110, 14
        %vm1139 = vcmp.lt.s32.totalorder %v1111, 14
        %vm1140 = vcmp.lt.s32.totalorder %v1112, 14
        %vm1141 = vcmp.lt.s32.totalorder %v1113, 14
        %vm1142 = vcmp.lt.s32.totalorder %v1114, 14
        %vm1143 = vcmp.lt.s32.totalorder %v1115, 14
        %vm1144 = vcmp.lt.s32.totalorder %v1116, 14
        %vm1145 = vcmp.lt.s32.totalorder %v1117, 14
        %vm1146 = vcmp.lt.s32.totalorder %v1118, 14
        %vm1147 = vcmp.lt.s32.totalorder %v1119, 14
        %vm1148 = vcmp.lt.s32.totalorder %v1120, 14
        %vm1149 = vcmp.lt.s32.totalorder %v1121, 14
        %vm1150 = vcmp.lt.s32.totalorder %v1122, 14
        %vm1151 = vcmp.lt.s32.totalorder %v1123, 14
        %vm1152 = vcmp.lt.s32.totalorder %v1124, 14
        %vm1153 = vcmp.lt.s32.totalorder %v1125, 14
        %vm1154 = vcmp.lt.s32.totalorder %v1126, 14
        %vm1155 = vcmp.lt.s32.totalorder %v1127, 14
        %vm1156 = vcmp.lt.s32.totalorder %v1128, 14
        %vm1157 = vcmp.lt.s32.totalorder %v1129, 14
        %vm1158 = vcmp.lt.s32.totalorder %v1130, 14
        %vm1159 = vcmp.lt.s32.totalorder %v1131, 14
        %v1160 = vadd.f32 %v629, %v634
        %v1161 = vadd.f32 %v1160, %v639
        %v1162 = vadd.f32 %v1161, %v644
        %v1163 = vadd.f32 %v1162, %v649
        %v1164 = vadd.f32 %v1163, %v654
        %v1165 = vadd.f32 %v1164, %v659
        %v1166 = vadd.f32 %v1165, %v664
        %v1167 = vadd.f32 %v1166, %v669
        %v1168 = vadd.f32 %v1167, %v674
        %v1169 = vadd.f32 %v1168, %v679
        %v1170 = vadd.f32 %v1169, %v684
        %v1171 = vadd.f32 %v1170, %v689
        %v1172 = vadd.f32 %v1171, %v694
        %v1173 = vadd.f32 %v1172, %v699
        %v1174 = vadd.f32 %v1173, %v704
        %v1175 = vadd.f32 %v1174, %v709
        %v1176 = vadd.f32 %v1175, %v714
        %v1177 = vadd.f32 %v1176, %v719
        %v1178 = vadd.f32 %v1177, %v724
        %v1179 = vadd.f32 %v1178, %v729
        %v1180 = vadd.f32 %v1179, %v734
        %v1181 = vadd.f32 %v1180, %v739
        %v1182 = vadd.f32 %v1181, %v744
        %v1183 = vadd.f32 %v1182, %v749
        %v1184 = vadd.f32 %v1183, %v754
        %v1185 = vadd.f32 %v1184, %v759
        %v1186 = vadd.f32 %v1185, %v764
        %v1187 = vrot.slane %v1186, 4
        %v1188 = vadd.f32 %v1186, %v1187
        %v1189 = vrot.slane %v1188, 2
        %v1190 = vadd.f32 %v1188, %v1189
        %v1191 = vrot.slane %v1190, 1
        %v1192 = vadd.f32 %v1190, %v1191
        %v1193 = vmul.f32 %v1192, 0.0051020407
        %v1194 = vsub.f32 %v629, %v1193
        %v1195 = vsub.f32 %v634, %v1193
        %v1196 = vsub.f32 %v639, %v1193
        %v1197 = vsub.f32 %v644, %v1193
        %v1198 = vsub.f32 %v649, %v1193
        %v1199 = vsub.f32 %v654, %v1193
        %v1200 = vsub.f32 %v659, %v1193
        %v1201 = vsub.f32 %v664, %v1193
        %v1202 = vsub.f32 %v669, %v1193
        %v1203 = vsub.f32 %v674, %v1193
        %v1204 = vsub.f32 %v679, %v1193
        %v1205 = vsub.f32 %v684, %v1193
        %v1206 = vsub.f32 %v689, %v1193
        %v1207 = vsub.f32 %v694, %v1193
        %v1208 = vsub.f32 %v699, %v1193
        %v1209 = vsub.f32 %v704, %v1193
        %v1210 = vsub.f32 %v709, %v1193
        %v1211 = vsub.f32 %v714, %v1193
        %v1212 = vsub.f32 %v719, %v1193
        %v1213 = vsub.f32 %v724, %v1193
        %v1214 = vsub.f32 %v729, %v1193
        %v1215 = vsub.f32 %v734, %v1193
        %v1216 = vsub.f32 %v739, %v1193
        %v1217 = vsub.f32 %v744, %v1193
        %v1218 = vsub.f32 %v749, %v1193
        %v1219 = vsub.f32 %v754, %v1193
        %v1220 = vsub.f32 %v759, %v1193
        %v1221 = vsub.f32 %v764, %v1193
        %v1222 = vsel %vm1132, 1, 0
        %v1223 = vsel %vm1133, 1, 0
        %v1224 = vsel %vm1134, 1, 0
        %v1225 = vsel %vm1135, 1, 0
        %v1226 = vsel %vm1136, 1, 0
        %v1227 = vsel %vm1137, 1, 0
        %v1228 = vsel %vm1138, 1, 0
        %v1229 = vsel %vm1139, 1, 0
        %v1230 = vsel %vm1140, 1, 0
        %v1231 = vsel %vm1141, 1, 0
        %v1232 = vsel %vm1142, 1, 0
        %v1233 = vsel %vm1143, 1, 0
        %v1234 = vsel %vm1144, 1, 0
        %v1235 = vsel %vm1145, 1, 0
        %v1236 = vsel %vm1146, 1, 0
        %v1237 = vsel %vm1147, 1, 0
        %v1238 = vsel %vm1148, 1, 0
        %v1239 = vsel %vm1149, 1, 0
        %v1240 = vsel %vm1150, 1, 0
        %v1241 = vsel %vm1151, 1, 0
        %v1242 = vsel %vm1152, 1, 0
        %v1243 = vsel %vm1153, 1, 0
        %v1244 = vsel %vm1154, 1, 0
        %v1245 = vsel %vm1155, 1, 0
        %v1246 = vsel %vm1156, 1, 0
        %v1247 = vsel %vm1157, 1, 0
        %v1248 = vsel %vm1158, 1, 0
        %v1249 = vsel %vm1159, 1, 0
        %vm1250 = vcmp.eq.s32.totalorder %v1222, 1
        %vm1251 = vcmp.eq.s32.totalorder %v1223, 1
        %vm1252 = vcmp.eq.s32.totalorder %v1224, 1
        %vm1253 = vcmp.eq.s32.totalorder %v1225, 1
        %vm1254 = vcmp.eq.s32.totalorder %v1226, 1
        %vm1255 = vcmp.eq.s32.totalorder %v1227, 1
        %vm1256 = vcmp.eq.s32.totalorder %v1228, 1
        %vm1257 = vcmp.eq.s32.totalorder %v1229, 1
        %vm1258 = vcmp.eq.s32.totalorder %v1230, 1
        %vm1259 = vcmp.eq.s32.totalorder %v1231, 1
        %vm1260 = vcmp.eq.s32.totalorder %v1232, 1
        %vm1261 = vcmp.eq.s32.totalorder %v1233, 1
        %vm1262 = vcmp.eq.s32.totalorder %v1234, 1
        %vm1263 = vcmp.eq.s32.totalorder %v1235, 1
        %vm1264 = vcmp.eq.s32.totalorder %v1236, 1
        %vm1265 = vcmp.eq.s32.totalorder %v1237, 1
        %vm1266 = vcmp.eq.s32.totalorder %v1238, 1
        %vm1267 = vcmp.eq.s32.totalorder %v1239, 1
        %vm1268 = vcmp.eq.s32.totalorder %v1240, 1
        %vm1269 = vcmp.eq.s32.totalorder %v1241, 1
        %vm1270 = vcmp.eq.s32.totalorder %v1242, 1
        %vm1271 = vcmp.eq.s32.totalorder %v1243, 1
        %vm1272 = vcmp.eq.s32.totalorder %v1244, 1
        %vm1273 = vcmp.eq.s32.totalorder %v1245, 1
        %vm1274 = vcmp.eq.s32.totalorder %v1246, 1
        %vm1275 = vcmp.eq.s32.totalorder %v1247, 1
        %vm1276 = vcmp.eq.s32.totalorder %v1248, 1
        %vm1277 = vcmp.eq.s32.totalorder %v1249, 1
        %v1278 = vsel %vm1250, %v1194, 0.0
        %v1279 = vsel %vm1251, %v1195, 0.0
        %v1280 = vsel %vm1252, %v1196, 0.0
        %v1281 = vsel %vm1253, %v1197, 0.0
        %v1282 = vsel %vm1254, %v1198, 0.0
        %v1283 = vsel %vm1255, %v1199, 0.0
        %v1284 = vsel %vm1256, %v1200, 0.0
        %v1285 = vsel %vm1257, %v1201, 0.0
        %v1286 = vsel %vm1258, %v1202, 0.0
        %v1287 = vsel %vm1259, %v1203, 0.0
        %v1288 = vsel %vm1260, %v1204, 0.0
        %v1289 = vsel %vm1261, %v1205, 0.0
        %v1290 = vsel %vm1262, %v1206, 0.0
        %v1291 = vsel %vm1263, %v1207, 0.0
        %v1292 = vsel %vm1264, %v1208, 0.0
        %v1293 = vsel %vm1265, %v1209, 0.0
        %v1294 = vsel %vm1266, %v1210, 0.0
        %v1295 = vsel %vm1267, %v1211, 0.0
        %v1296 = vsel %vm1268, %v1212, 0.0
        %v1297 = vsel %vm1269, %v1213, 0.0
        %v1298 = vsel %vm1270, %v1214, 0.0
        %v1299 = vsel %vm1271, %v1215, 0.0
        %v1300 = vsel %vm1272, %v1216, 0.0
        %v1301 = vsel %vm1273, %v1217, 0.0
        %v1302 = vsel %vm1274, %v1218, 0.0
        %v1303 = vsel %vm1275, %v1219, 0.0
        %v1304 = vsel %vm1276, %v1220, 0.0
        %v1305 = vsel %vm1277, %v1221, 0.0
        %v1306 = vmul.f32 %v1278, %v1278
        %v1307 = vmul.f32 %v1279, %v1279
        %v1308 = vmul.f32 %v1280, %v1280
        %v1309 = vmul.f32 %v1281, %v1281
        %v1310 = vmul.f32 %v1282, %v1282
        %v1311 = vmul.f32 %v1283, %v1283
        %v1312 = vmul.f32 %v1284, %v1284
        %v1313 = vmul.f32 %v1285, %v1285
        %v1314 = vmul.f32 %v1286, %v1286
        %v1315 = vmul.f32 %v1287, %v1287
        %v1316 = vmul.f32 %v1288, %v1288
        %v1317 = vmul.f32 %v1289, %v1289
        %v1318 = vmul.f32 %v1290, %v1290
        %v1319 = vmul.f32 %v1291, %v1291
        %v1320 = vmul.f32 %v1292, %v1292
        %v1321 = vmul.f32 %v1293, %v1293
        %v1322 = vmul.f32 %v1294, %v1294
        %v1323 = vmul.f32 %v1295, %v1295
        %v1324 = vmul.f32 %v1296, %v1296
        %v1325 = vmul.f32 %v1297, %v1297
        %v1326 = vmul.f32 %v1298, %v1298
        %v1327 = vmul.f32 %v1299, %v1299
        %v1328 = vmul.f32 %v1300, %v1300
        %v1329 = vmul.f32 %v1301, %v1301
        %v1330 = vmul.f32 %v1302, %v1302
        %v1331 = vmul.f32 %v1303, %v1303
        %v1332 = vmul.f32 %v1304, %v1304
        %v1333 = vmul.f32 %v1305, %v1305
        %v1334 = vadd.f32 %v1306, %v1307
        %v1335 = vadd.f32 %v1334, %v1308
        %v1336 = vadd.f32 %v1335, %v1309
        %v1337 = vadd.f32 %v1336, %v1310
        %v1338 = vadd.f32 %v1337, %v1311
        %v1339 = vadd.f32 %v1338, %v1312
        %v1340 = vadd.f32 %v1339, %v1313
        %v1341 = vadd.f32 %v1340, %v1314
        %v1342 = vadd.f32 %v1341, %v1315
        %v1343 = vadd.f32 %v1342, %v1316
        %v1344 = vadd.f32 %v1343, %v1317
        %v1345 = vadd.f32 %v1344, %v1318
        %v1346 = vadd.f32 %v1345, %v1319
        %v1347 = vadd.f32 %v1346, %v1320
        %v1348 = vadd.f32 %v1347, %v1321
        %v1349 = vadd.f32 %v1348, %v1322
        %v1350 = vadd.f32 %v1349, %v1323
        %v1351 = vadd.f32 %v1350, %v1324
        %v1352 = vadd.f32 %v1351, %v1325
        %v1353 = vadd.f32 %v1352, %v1326
        %v1354 = vadd.f32 %v1353, %v1327
        %v1355 = vadd.f32 %v1354, %v1328
        %v1356 = vadd.f32 %v1355, %v1329
        %v1357 = vadd.f32 %v1356, %v1330
        %v1358 = vadd.f32 %v1357, %v1331
        %v1359 = vadd.f32 %v1358, %v1332
        %v1360 = vadd.f32 %v1359, %v1333
        %v1361 = vrot.slane %v1360, 4
        %v1362 = vadd.f32 %v1360, %v1361
        %v1363 = vrot.slane %v1362, 2
        %v1364 = vadd.f32 %v1362, %v1363
        %v1365 = vrot.slane %v1364, 1
        %v1366 = vadd.f32 %v1364, %v1365
        %v1367 = vmul.f32 %v1366, 0.0051020407
        %v1368 = vld [vmem:[%s379] sm:$0x1]
        %v1369 = vadd.f32 %v1367, 1e-05
        %v1370 = vrsqrt.pop %v1369
        %v1371 = vmul.f32 %v1368, %v1370
        %v1373 = vlaneseq
        %v1374 = vshrl.u32 %v1373, 7
        %v1375 = vsub.s32 0, %v1374
        %v1376 = vrot.slane %v1371, %v1375
        %v1378 = vmul.f32 %v1194, %v1376
        %v1379 = vmul.f32 %v1195, %v1376
        %v1380 = vmul.f32 %v1196, %v1376
        %v1381 = vmul.f32 %v1197, %v1376
        %v1382 = vmul.f32 %v1198, %v1376
        %v1383 = vmul.f32 %v1199, %v1376
        %v1384 = vmul.f32 %v1200, %v1376
        %v1385 = vmul.f32 %v1201, %v1376
        %v1386 = vmul.f32 %v1202, %v1376
        %v1387 = vmul.f32 %v1203, %v1376
        %v1388 = vmul.f32 %v1204, %v1376
        %v1389 = vmul.f32 %v1205, %v1376
        %v1390 = vmul.f32 %v1206, %v1376
        %v1391 = vmul.f32 %v1207, %v1376
        %v1392 = vmul.f32 %v1208, %v1376
        %v1393 = vmul.f32 %v1209, %v1376
        %v1394 = vmul.f32 %v1210, %v1376
        %v1395 = vmul.f32 %v1211, %v1376
        %v1396 = vmul.f32 %v1212, %v1376
        %v1397 = vmul.f32 %v1213, %v1376
        %v1398 = vmul.f32 %v1214, %v1376
        %v1399 = vmul.f32 %v1215, %v1376
        %v1400 = vmul.f32 %v1216, %v1376
        %v1401 = vmul.f32 %v1217, %v1376
        %v1402 = vmul.f32 %v1218, %v1376
        %v1403 = vmul.f32 %v1219, %v1376
        %v1404 = vmul.f32 %v1220, %v1376
        %v1405 = vmul.f32 %v1221, %v1376
        %v1406 = vld [vmem:[%s382] sm:$0x1]
        %v1408 = vlaneseq
        %v1409 = vshrl.u32 %v1408, 7
        %v1410 = vsub.s32 0, %v1409
        %v1411 = vrot.slane %v1406, %v1410
        %v1413 = vadd.f32 %v1378, %v1411
        %v1414 = vadd.f32 %v1379, %v1411
        %v1415 = vadd.f32 %v1380, %v1411
        %v1416 = vadd.f32 %v1381, %v1411
        %v1417 = vadd.f32 %v1382, %v1411
        %v1418 = vadd.f32 %v1383, %v1411
        %v1419 = vadd.f32 %v1384, %v1411
        %v1420 = vadd.f32 %v1385, %v1411
        %v1421 = vadd.f32 %v1386, %v1411
        %v1422 = vadd.f32 %v1387, %v1411
        %v1423 = vadd.f32 %v1388, %v1411
        %v1424 = vadd.f32 %v1389, %v1411
        %v1425 = vadd.f32 %v1390, %v1411
        %v1426 = vadd.f32 %v1391, %v1411
        %v1427 = vadd.f32 %v1392, %v1411
        %v1428 = vadd.f32 %v1393, %v1411
        %v1429 = vadd.f32 %v1394, %v1411
        %v1430 = vadd.f32 %v1395, %v1411
        %v1431 = vadd.f32 %v1396, %v1411
        %v1432 = vadd.f32 %v1397, %v1411
        %v1433 = vadd.f32 %v1398, %v1411
        %v1434 = vadd.f32 %v1399, %v1411
        %v1435 = vadd.f32 %v1400, %v1411
        %v1436 = vadd.f32 %v1401, %v1411
        %v1437 = vadd.f32 %v1402, %v1411
        %v1438 = vadd.f32 %v1403, %v1411
        %v1439 = vadd.f32 %v1404, %v1411
        %v1440 = vadd.f32 %v1405, %v1411
        %v1441 = vmax.f32 %v1413, 0.0
        %v1442 = vmax.f32 %v1414, 0.0
        %v1443 = vmax.f32 %v1415, 0.0
        %v1444 = vmax.f32 %v1416, 0.0
        %v1445 = vmax.f32 %v1417, 0.0
        %v1446 = vmax.f32 %v1418, 0.0
        %v1447 = vmax.f32 %v1419, 0.0
        %v1448 = vmax.f32 %v1420, 0.0
        %v1449 = vmax.f32 %v1421, 0.0
        %v1450 = vmax.f32 %v1422, 0.0
        %v1451 = vmax.f32 %v1423, 0.0
        %v1452 = vmax.f32 %v1424, 0.0
        %v1453 = vmax.f32 %v1425, 0.0
        %v1454 = vmax.f32 %v1426, 0.0
        %v1455 = vmax.f32 %v1427, 0.0
        %v1456 = vmax.f32 %v1428, 0.0
        %v1457 = vmax.f32 %v1429, 0.0
        %v1458 = vmax.f32 %v1430, 0.0
        %v1459 = vmax.f32 %v1431, 0.0
        %v1460 = vmax.f32 %v1432, 0.0
        %v1461 = vmax.f32 %v1433, 0.0
        %v1462 = vmax.f32 %v1434, 0.0
        %v1463 = vmax.f32 %v1435, 0.0
        %v1464 = vmax.f32 %v1436, 0.0
        %v1465 = vmax.f32 %v1437, 0.0
        %v1466 = vmax.f32 %v1438, 0.0
        %v1467 = vmax.f32 %v1439, 0.0
        %v1468 = vmax.f32 %v1440, 0.0
        %v1469 = vsel %vm1250, %v1441, 0.0
        %v1470 = vsel %vm1251, %v1442, 0.0
        %v1471 = vsel %vm1252, %v1443, 0.0
        %v1472 = vsel %vm1253, %v1444, 0.0
        %v1473 = vsel %vm1254, %v1445, 0.0
        %v1474 = vsel %vm1255, %v1446, 0.0
        %v1475 = vsel %vm1256, %v1447, 0.0
        %v1476 = vsel %vm1257, %v1448, 0.0
        %v1477 = vsel %vm1258, %v1449, 0.0
        %v1478 = vsel %vm1259, %v1450, 0.0
        %v1479 = vsel %vm1260, %v1451, 0.0
        %v1480 = vsel %vm1261, %v1452, 0.0
        %v1481 = vsel %vm1262, %v1453, 0.0
        %v1482 = vsel %vm1263, %v1454, 0.0
        %v1483 = vsel %vm1264, %v1455, 0.0
        %v1484 = vsel %vm1265, %v1456, 0.0
        %v1485 = vsel %vm1266, %v1457, 0.0
        %v1486 = vsel %vm1267, %v1458, 0.0
        %v1487 = vsel %vm1268, %v1459, 0.0
        %v1488 = vsel %vm1269, %v1460, 0.0
        %v1489 = vsel %vm1270, %v1461, 0.0
        %v1490 = vsel %vm1271, %v1462, 0.0
        %v1491 = vsel %vm1272, %v1463, 0.0
        %v1492 = vsel %vm1273, %v1464, 0.0
        %v1493 = vsel %vm1274, %v1465, 0.0
        %v1494 = vsel %vm1275, %v1466, 0.0
        %v1495 = vsel %vm1276, %v1467, 0.0
        %v1496 = vsel %vm1277, %v1468, 0.0
        %1497 = vst [vmem:[#allocation2] sm:$0xff] %v1469
        %1498 = vst [vmem:[#allocation2 + $0x8] sm:$0xff] %v1470
        %1499 = vst [vmem:[#allocation2 + $0x10] sm:$0xff] %v1471
        %1500 = vst [vmem:[#allocation2 + $0x18] sm:$0xff] %v1472
        %1501 = vst [vmem:[#allocation2 + $0x20] sm:$0xff] %v1473
        %1502 = vst [vmem:[#allocation2 + $0x28] sm:$0xff] %v1474
        %1503 = vst [vmem:[#allocation2 + $0x30] sm:$0xff] %v1475
        %1504 = vst [vmem:[#allocation2 + $0x38] sm:$0xff] %v1476
        %1505 = vst [vmem:[#allocation2 + $0x40] sm:$0xff] %v1477
        %1506 = vst [vmem:[#allocation2 + $0x48] sm:$0xff] %v1478
        %1507 = vst [vmem:[#allocation2 + $0x50] sm:$0xff] %v1479
        %1508 = vst [vmem:[#allocation2 + $0x58] sm:$0xff] %v1480
        %1509 = vst [vmem:[#allocation2 + $0x60] sm:$0xff] %v1481
        %1510 = vst [vmem:[#allocation2 + $0x68] sm:$0xff] %v1482
        %1511 = vst [vmem:[#allocation2 + $0x70] sm:$0xff] %v1483
        %1512 = vst [vmem:[#allocation2 + $0x78] sm:$0xff] %v1484
        %1513 = vst [vmem:[#allocation2 + $0x80] sm:$0xff] %v1485
        %1514 = vst [vmem:[#allocation2 + $0x88] sm:$0xff] %v1486
        %1515 = vst [vmem:[#allocation2 + $0x90] sm:$0xff] %v1487
        %1516 = vst [vmem:[#allocation2 + $0x98] sm:$0xff] %v1488
        %1517 = vst [vmem:[#allocation2 + $0xa0] sm:$0xff] %v1489
        %1518 = vst [vmem:[#allocation2 + $0xa8] sm:$0xff] %v1490
        %1519 = vst [vmem:[#allocation2 + $0xb0] sm:$0xff] %v1491
        %1520 = vst [vmem:[#allocation2 + $0xb8] sm:$0xff] %v1492
        %1521 = vst [vmem:[#allocation2 + $0xc0] sm:$0xff] %v1493
        %1522 = vst [vmem:[#allocation2 + $0xc8] sm:$0xff] %v1494
        %1523 = vst [vmem:[#allocation2 + $0xd0] sm:$0xff] %v1495
        %1524 = vst [vmem:[#allocation2 + $0xd8] sm:$0xff] %v1496
        %v1525 = vld [vmem:[%s343] sm:$0xff]
        %v1526 = vld [vmem:[%s343 + $0x8] sm:$0xff]
        %v1527 = vld [vmem:[%s343 + $0x10] sm:$0xff]
        %v1528 = vld [vmem:[%s343 + $0x18] sm:$0x1]
        %v1529 = vld [vmem:[#allocation2] sm:$0xff]
        %v1530 = vld [vmem:[#allocation2 + $0x8] sm:$0xff]
        %v1531 = vld [vmem:[#allocation2 + $0x10] sm:$0xff]
        %v1532 = vld [vmem:[#allocation2 + $0x18] sm:$0xff]
        %v1533 = vld [vmem:[#allocation2 + $0x20] sm:$0xff]
        %v1534 = vld [vmem:[#allocation2 + $0x28] sm:$0xff]
        %v1535 = vlaneseq
        %v1536 = vshrl.u32 %v1535, 7
        %v1537 = vsub.s32 2, %v1536
        %v1538 = vrot.slane %v1526, %v1537
        %v1539 = vmul.f32 %v1529, %v1538
        %v1540 = vmul.f32 %v1530, %v1538
        %v1541 = vlaneseq
        %v1542 = vshrl.u32 %v1541, 7
        %v1543 = vsub.s32 7, %v1542
        %v1544 = vrot.slane %v1526, %v1543
        %v1545 = vmul.f32 %v1531, %v1544
        %v1546 = vmul.f32 %v1532, %v1544
        %v1547 = vadd.f32 %v1539, %v1545
        %v1548 = vadd.f32 %v1540, %v1546
        %v1549 = vlaneseq
        %v1550 = vshrl.u32 %v1549, 7
        %v1551 = vsub.s32 4, %v1550
        %v1552 = vrot.slane %v1527, %v1551
        %v1553 = vmul.f32 %v1533, %v1552
        %v1554 = vmul.f32 %v1534, %v1552
        %v1555 = vadd.f32 %v1547, %v1553
        %v1556 = vadd.f32 %v1548, %v1554
        %v1557 = vrot.slane %v1555, 6
        %v1558 = vrot.slane %v1556, 6
        %vm1559 = vcmp.lt.s32.totalorder %v768, 2
        %v1560 = vsel %vm1559, %v1557, %v1558
        %v1561 = vsel %vm1559, %v1558, %v1557
        %v1562 = vlaneseq
        %v1563 = vshrl.u32 %v1562, 7
        %v1564 = vsub.s32 3, %v1563
        %v1565 = vrot.slane %v1526, %v1564
        %v1566 = vmul.f32 %v1529, %v1565
        %v1567 = vmul.f32 %v1530, %v1565
        %v1568 = vlaneseq
        %v1569 = vshrl.u32 %v1568, 7
        %v1570 = vsub.s32 0, %v1569
        %v1571 = vrot.slane %v1527, %v1570
        %v1572 = vmul.f32 %v1531, %v1571
        %v1573 = vmul.f32 %v1532, %v1571
        %v1574 = vadd.f32 %v1566, %v1572
        %v1575 = vadd.f32 %v1567, %v1573
        %v1576 = vlaneseq
        %v1577 = vshrl.u32 %v1576, 7
        %v1578 = vsub.s32 5, %v1577
        %v1579 = vrot.slane %v1527, %v1578
        %v1580 = vmul.f32 %v1533, %v1579
        %v1581 = vmul.f32 %v1534, %v1579
        %v1582 = vadd.f32 %v1574, %v1580
        %v1583 = vadd.f32 %v1575, %v1581
        %v1584 = vrot.slane %v1582, 7
        %v1585 = vrot.slane %v1583, 7
        %vm1586 = vcmp.lt.s32.totalorder %v768, 1
        %v1587 = vsel %vm1586, %v1584, %v1585
        %v1588 = vsel %vm1586, %v1585, %v1584
        %v1589 = vadd.f32 %v1561, %v1588
        %v1590 = vadd.f32 %v1560, %v1587
        %v1591 = vlaneseq
        %v1592 = vshrl.u32 %v1591, 7
        %v1593 = vsub.s32 4, %v1592
        %v1594 = vrot.slane %v1526, %v1593
        %v1595 = vmul.f32 %v1529, %v1594
        %v1596 = vmul.f32 %v1530, %v1594
        %v1597 = vlaneseq
        %v1598 = vshrl.u32 %v1597, 7
        %v1599 = vsub.s32 1, %v1598
        %v1600 = vrot.slane %v1527, %v1599
        %v1601 = vmul.f32 %v1531, %v1600
        %v1602 = vmul.f32 %v1532, %v1600
        %v1603 = vadd.f32 %v1595, %v1601
        %v1604 = vadd.f32 %v1596, %v1602
        %v1605 = vlaneseq
        %v1606 = vshrl.u32 %v1605, 7
        %v1607 = vsub.s32 6, %v1606
        %v1608 = vrot.slane %v1527, %v1607
        %v1609 = vmul.f32 %v1533, %v1608
        %v1610 = vmul.f32 %v1534, %v1608
        %v1611 = vadd.f32 %v1603, %v1609
        %v1612 = vadd.f32 %v1604, %v1610
        %v1613 = vadd.f32 %v1589, %v1611
        %v1614 = vadd.f32 %v1590, %v1612
        %v1615 = vlaneseq
        %v1616 = vshrl.u32 %v1615, 7
        %v1617 = vsub.s32 5, %v1616
        %v1618 = vrot.slane %v1526, %v1617
        %v1619 = vmul.f32 %v1529, %v1618
        %v1620 = vmul.f32 %v1530, %v1618
        %v1621 = vlaneseq
        %v1622 = vshrl.u32 %v1621, 7
        %v1623 = vsub.s32 2, %v1622
        %v1624 = vrot.slane %v1527, %v1623
        %v1625 = vmul.f32 %v1531, %v1624
        %v1626 = vmul.f32 %v1532, %v1624
        %v1627 = vadd.f32 %v1619, %v1625
        %v1628 = vadd.f32 %v1620, %v1626
        %v1629 = vlaneseq
        %v1630 = vshrl.u32 %v1629, 7
        %v1631 = vsub.s32 7, %v1630
        %v1632 = vrot.slane %v1527, %v1631
        %v1633 = vmul.f32 %v1533, %v1632
        %v1634 = vmul.f32 %v1534, %v1632
        %v1635 = vadd.f32 %v1627, %v1633
        %v1636 = vadd.f32 %v1628, %v1634
        %v1637 = vrot.slane %v1635, 1
        %v1638 = vrot.slane %v1636, 1
        %vm1639 = vcmp.lt.s32.totalorder %v768, 7
        %v1640 = vsel %vm1639, %v1637, %v1638
        %v1641 = vsel %vm1639, %v1638, %v1637
        %v1642 = vadd.f32 %v1613, %v1640
        %v1643 = vadd.f32 %v1614, %v1641
        %v1644 = vlaneseq
        %v1645 = vshrl.u32 %v1644, 7
        %v1646 = vsub.s32 6, %v1645
        %v1647 = vrot.slane %v1526, %v1646
        %v1648 = vmul.f32 %v1529, %v1647
        %v1649 = vmul.f32 %v1530, %v1647
        %v1650 = vlaneseq
        %v1651 = vshrl.u32 %v1650, 7
        %v1652 = vsub.s32 3, %v1651
        %v1653 = vrot.slane %v1527, %v1652
        %v1654 = vmul.f32 %v1531, %v1653
        %v1655 = vmul.f32 %v1532, %v1653
        %v1656 = vadd.f32 %v1648, %v1654
        %v1657 = vadd.f32 %v1649, %v1655
        %v1658 = vlaneseq
        %v1659 = vshrl.u32 %v1658, 7
        %v1660 = vsub.s32 0, %v1659
        %v1661 = vrot.slane %v1528, %v1660
        %v1662 = vmul.f32 %v1533, %v1661
        %v1663 = vmul.f32 %v1534, %v1661
        %v1664 = vadd.f32 %v1656, %v1662
        %v1665 = vadd.f32 %v1657, %v1663
        %v1666 = vrot.slane %v1664, 2
        %v1667 = vrot.slane %v1665, 2
        %vm1668 = vcmp.lt.s32.totalorder %v768, 6
        %v1669 = vsel %vm1668, %v1666, %v1667
        %v1670 = vsel %vm1668, %v1667, %v1666
        %v1671 = vadd.f32 %v1642, %v1669
        %v1672 = vadd.f32 %v1643, %v1670
        %1673 = vst [vmem:[%s376] sm:$0xff] %v1671
        %1674 = vst [vmem:[%s376 + $0x8] sm:$0x3f] %v1672
        %v1675 = vld [vmem:[#allocation2] sm:$0xff]
        %v1676 = vld [vmem:[#allocation2 + $0x8] sm:$0xff]
        %v1677 = vld [vmem:[#allocation2 + $0x10] sm:$0xff]
        %v1678 = vld [vmem:[#allocation2 + $0x18] sm:$0xff]
        %v1679 = vld [vmem:[#allocation2 + $0x20] sm:$0xff]
        %v1680 = vld [vmem:[#allocation2 + $0x28] sm:$0xff]
        %v1681 = vld [vmem:[#allocation2 + $0x30] sm:$0xff]
        %v1682 = vld [vmem:[#allocation2 + $0x38] sm:$0xff]
        %v1683 = vlaneseq
        %v1684 = vshrl.u32 %v1683, 7
        %v1685 = vsub.s32 5, %v1684
        %v1686 = vrot.slane %v1525, %v1685
        %v1687 = vmul.f32 %v1675, %v1686
        %v1688 = vmul.f32 %v1676, %v1686
        %v1689 = vmul.f32 %v1677, %v1538
        %v1690 = vmul.f32 %v1678, %v1538
        %v1691 = vadd.f32 %v1687, %v1689
        %v1692 = vadd.f32 %v1688, %v1690
        %v1693 = vmul.f32 %v1679, %v1544
        %v1694 = vmul.f32 %v1680, %v1544
        %v1695 = vadd.f32 %v1691, %v1693
        %v1696 = vadd.f32 %v1692, %v1694
        %v1697 = vmul.f32 %v1681, %v1552
        %v1698 = vmul.f32 %v1682, %v1552
        %v1699 = vadd.f32 %v1695, %v1697
        %v1700 = vadd.f32 %v1696, %v1698
        %v1701 = vrot.slane %v1699, 6
        %v1702 = vrot.slane %v1700, 6
        %v1703 = vsel %vm1559, %v1701, %v1702
        %v1704 = vsel %vm1559, %v1702, %v1701
        %v1705 = vlaneseq
        %v1706 = vshrl.u32 %v1705, 7
        %v1707 = vsub.s32 6, %v1706
        %v1708 = vrot.slane %v1525, %v1707
        %v1709 = vmul.f32 %v1675, %v1708
        %v1710 = vmul.f32 %v1676, %v1708
        %v1711 = vmul.f32 %v1677, %v1565
        %v1712 = vmul.f32 %v1678, %v1565
        %v1713 = vadd.f32 %v1709, %v1711
        %v1714 = vadd.f32 %v1710, %v1712
        %v1715 = vmul.f32 %v1679, %v1571
        %v1716 = vmul.f32 %v1680, %v1571
        %v1717 = vadd.f32 %v1713, %v1715
        %v1718 = vadd.f32 %v1714, %v1716
        %v1719 = vmul.f32 %v1681, %v1579
        %v1720 = vmul.f32 %v1682, %v1579
        %v1721 = vadd.f32 %v1717, %v1719
        %v1722 = vadd.f32 %v1718, %v1720
        %v1723 = vrot.slane %v1721, 7
        %v1724 = vrot.slane %v1722, 7
        %v1725 = vsel %vm1586, %v1723, %v1724
        %v1726 = vsel %vm1586, %v1724, %v1723
        %v1727 = vadd.f32 %v1704, %v1726
        %v1728 = vadd.f32 %v1703, %v1725
        %v1729 = vlaneseq
        %v1730 = vshrl.u32 %v1729, 7
        %v1731 = vsub.s32 7, %v1730
        %v1732 = vrot.slane %v1525, %v1731
        %v1733 = vmul.f32 %v1675, %v1732
        %v1734 = vmul.f32 %v1676, %v1732
        %v1735 = vmul.f32 %v1677, %v1594
        %v1736 = vmul.f32 %v1678, %v1594
        %v1737 = vadd.f32 %v1733, %v1735
        %v1738 = vadd.f32 %v1734, %v1736
        %v1739 = vmul.f32 %v1679, %v1600
        %v1740 = vmul.f32 %v1680, %v1600
        %v1741 = vadd.f32 %v1737, %v1739
        %v1742 = vadd.f32 %v1738, %v1740
        %v1743 = vmul.f32 %v1681, %v1608
        %v1744 = vmul.f32 %v1682, %v1608
        %v1745 = vadd.f32 %v1741, %v1743
        %v1746 = vadd.f32 %v1742, %v1744
        %v1747 = vadd.f32 %v1727, %v1745
        %v1748 = vadd.f32 %v1728, %v1746
        %v1749 = vlaneseq
        %v1750 = vshrl.u32 %v1749, 7
        %v1751 = vsub.s32 0, %v1750
        %v1752 = vrot.slane %v1526, %v1751
        %v1753 = vmul.f32 %v1675, %v1752
        %v1754 = vmul.f32 %v1676, %v1752
        %v1755 = vmul.f32 %v1677, %v1618
        %v1756 = vmul.f32 %v1678, %v1618
        %v1757 = vadd.f32 %v1753, %v1755
        %v1758 = vadd.f32 %v1754, %v1756
        %v1759 = vmul.f32 %v1679, %v1624
        %v1760 = vmul.f32 %v1680, %v1624
        %v1761 = vadd.f32 %v1757, %v1759
        %v1762 = vadd.f32 %v1758, %v1760
        %v1763 = vmul.f32 %v1681, %v1632
        %v1764 = vmul.f32 %v1682, %v1632
        %v1765 = vadd.f32 %v1761, %v1763
        %v1766 = vadd.f32 %v1762, %v1764
        %v1767 = vrot.slane %v1765, 1
        %v1768 = vrot.slane %v1766, 1
        %v1769 = vsel %vm1639, %v1767, %v1768
        %v1770 = vsel %vm1639, %v1768, %v1767
        %v1771 = vadd.f32 %v1747, %v1769
        %v1772 = vadd.f32 %v1748, %v1770
        %v1773 = vlaneseq
        %v1774 = vshrl.u32 %v1773, 7
        %v1775 = vsub.s32 1, %v1774
        %v1776 = vrot.slane %v1526, %v1775
        %v1777 = vmul.f32 %v1675, %v1776
        %v1778 = vmul.f32 %v1676, %v1776
        %v1779 = vmul.f32 %v1677, %v1647
        %v1780 = vmul.f32 %v1678, %v1647
        %v1781 = vadd.f32 %v1777, %v1779
        %v1782 = vadd.f32 %v1778, %v1780
        %v1783 = vmul.f32 %v1679, %v1653
        %v1784 = vmul.f32 %v1680, %v1653
        %v1785 = vadd.f32 %v1781, %v1783
        %v1786 = vadd.f32 %v1782, %v1784
        %v1787 = vmul.f32 %v1681, %v1661
        %v1788 = vmul.f32 %v1682, %v1661
        %v1789 = vadd.f32 %v1785, %v1787
        %v1790 = vadd.f32 %v1786, %v1788
        %v1791 = vrot.slane %v1789, 2
        %v1792 = vrot.slane %v1790, 2
        %v1793 = vsel %vm1668, %v1791, %v1792
        %v1794 = vsel %vm1668, %v1792, %v1791
        %v1795 = vadd.f32 %v1771, %v1793
        %v1796 = vadd.f32 %v1772, %v1794
        %s1797 = scalar_lea.vmem %s376, 16 [#allocation5]
        %1798 = vst [vmem:[%s1797] sm:$0xff] %v1795
        %1799 = vst [vmem:[%s1797 + $0x8] sm:$0x3f] %v1796
        %v1800 = vld [vmem:[#allocation2] sm:$0xff]
        %v1801 = vld [vmem:[#allocation2 + $0x8] sm:$0xff]
        %v1802 = vld [vmem:[#allocation2 + $0x10] sm:$0xff]
        %v1803 = vld [vmem:[#allocation2 + $0x18] sm:$0xff]
        %v1804 = vld [vmem:[#allocation2 + $0x20] sm:$0xff]
        %v1805 = vld [vmem:[#allocation2 + $0x28] sm:$0xff]
        %v1806 = vld [vmem:[#allocation2 + $0x30] sm:$0xff]
        %v1807 = vld [vmem:[#allocation2 + $0x38] sm:$0xff]
        %v1808 = vld [vmem:[#allocation2 + $0x40] sm:$0xff]
        %v1809 = vld [vmem:[#allocation2 + $0x48] sm:$0xff]
        %v1810 = vlaneseq
        %v1811 = vshrl.u32 %v1810, 7
        %v1812 = vsub.s32 0, %v1811
        %v1813 = vrot.slane %v1525, %v1812
        %v1814 = vmul.f32 %v1800, %v1813
        %v1815 = vmul.f32 %v1801, %v1813
        %v1816 = vmul.f32 %v1802, %v1686
        %v1817 = vmul.f32 %v1803, %v1686
        %v1818 = vadd.f32 %v1814, %v1816
        %v1819 = vadd.f32 %v1815, %v1817
        %v1820 = vmul.f32 %v1804, %v1538
        %v1821 = vmul.f32 %v1805, %v1538
        %v1822 = vadd.f32 %v1818, %v1820
        %v1823 = vadd.f32 %v1819, %v1821
        %v1824 = vmul.f32 %v1806, %v1544
        %v1825 = vmul.f32 %v1807, %v1544
        %v1826 = vadd.f32 %v1822, %v1824
        %v1827 = vadd.f32 %v1823, %v1825
        %v1828 = vmul.f32 %v1808, %v1552
        %v1829 = vmul.f32 %v1809, %v1552
        %v1830 = vadd.f32 %v1826, %v1828
        %v1831 = vadd.f32 %v1827, %v1829
        %v1832 = vrot.slane %v1830, 6
        %v1833 = vrot.slane %v1831, 6
        %v1834 = vsel %vm1559, %v1832, %v1833
        %v1835 = vsel %vm1559, %v1833, %v1832
        %v1836 = vlaneseq
        %v1837 = vshrl.u32 %v1836, 7
        %v1838 = vsub.s32 1, %v1837
        %v1839 = vrot.slane %v1525, %v1838
        %v1840 = vmul.f32 %v1800, %v1839
        %v1841 = vmul.f32 %v1801, %v1839
        %v1842 = vmul.f32 %v1802, %v1708
        %v1843 = vmul.f32 %v1803, %v1708
        %v1844 = vadd.f32 %v1840, %v1842
        %v1845 = vadd.f32 %v1841, %v1843
        %v1846 = vmul.f32 %v1804, %v1565
        %v1847 = vmul.f32 %v1805, %v1565
        %v1848 = vadd.f32 %v1844, %v1846
        %v1849 = vadd.f32 %v1845, %v1847
        %v1850 = vmul.f32 %v1806, %v1571
        %v1851 = vmul.f32 %v1807, %v1571
        %v1852 = vadd.f32 %v1848, %v1850
        %v1853 = vadd.f32 %v1849, %v1851
        %v1854 = vmul.f32 %v1808, %v1579
        %v1855 = vmul.f32 %v1809, %v1579
        %v1856 = vadd.f32 %v1852, %v1854
        %v1857 = vadd.f32 %v1853, %v1855
        %v1858 = vrot.slane %v1856, 7
        %v1859 = vrot.slane %v1857, 7
        %v1860 = vsel %vm1586, %v1858, %v1859
        %v1861 = vsel %vm1586, %v1859, %v1858
        %v1862 = vadd.f32 %v1835, %v1861
        %v1863 = vadd.f32 %v1834, %v1860
        %v1864 = vlaneseq
        %v1865 = vshrl.u32 %v1864, 7
        %v1866 = vsub.s32 2, %v1865
        %v1867 = vrot.slane %v1525, %v1866
        %v1868 = vmul.f32 %v1800, %v1867
        %v1869 = vmul.f32 %v1801, %v1867
        %v1870 = vmul.f32 %v1802, %v1732
        %v1871 = vmul.f32 %v1803, %v1732
        %v1872 = vadd.f32 %v1868, %v1870
        %v1873 = vadd.f32 %v1869, %v1871
        %v1874 = vmul.f32 %v1804, %v1594
        %v1875 = vmul.f32 %v1805, %v1594
        %v1876 = vadd.f32 %v1872, %v1874
        %v1877 = vadd.f32 %v1873, %v1875
        %v1878 = vmul.f32 %v1806, %v1600
        %v1879 = vmul.f32 %v1807, %v1600
        %v1880 = vadd.f32 %v1876, %v1878
        %v1881 = vadd.f32 %v1877, %v1879
        %v1882 = vmul.f32 %v1808, %v1608
        %v1883 = vmul.f32 %v1809, %v1608
        %v1884 = vadd.f32 %v1880, %v1882
        %v1885 = vadd.f32 %v1881, %v1883
        %v1886 = vadd.f32 %v1862, %v1884
        %v1887 = vadd.f32 %v1863, %v1885
        %v1888 = vlaneseq
        %v1889 = vshrl.u32 %v1888, 7
        %v1890 = vsub.s32 3, %v1889
        %v1891 = vrot.slane %v1525, %v1890
        %v1892 = vmul.f32 %v1800, %v1891
        %v1893 = vmul.f32 %v1801, %v1891
        %v1894 = vmul.f32 %v1802, %v1752
        %v1895 = vmul.f32 %v1803, %v1752
        %v1896 = vadd.f32 %v1892, %v1894
        %v1897 = vadd.f32 %v1893, %v1895
        %v1898 = vmul.f32 %v1804, %v1618
        %v1899 = vmul.f32 %v1805, %v1618
        %v1900 = vadd.f32 %v1896, %v1898
        %v1901 = vadd.f32 %v1897, %v1899
        %v1902 = vmul.f32 %v1806, %v1624
        %v1903 = vmul.f32 %v1807, %v1624
        %v1904 = vadd.f32 %v1900, %v1902
        %v1905 = vadd.f32 %v1901, %v1903
        %v1906 = vmul.f32 %v1808, %v1632
        %v1907 = vmul.f32 %v1809, %v1632
        %v1908 = vadd.f32 %v1904, %v1906
        %v1909 = vadd.f32 %v1905, %v1907
        %v1910 = vrot.slane %v1908, 1
        %v1911 = vrot.slane %v1909, 1
        %v1912 = vsel %vm1639, %v1910, %v1911
        %v1913 = vsel %vm1639, %v1911, %v1910
        %v1914 = vadd.f32 %v1886, %v1912
        %v1915 = vadd.f32 %v1887, %v1913
        %v1916 = vlaneseq
        %v1917 = vshrl.u32 %v1916, 7
        %v1918 = vsub.s32 4, %v1917
        %v1919 = vrot.slane %v1525, %v1918
        %v1920 = vmul.f32 %v1800, %v1919
        %v1921 = vmul.f32 %v1801, %v1919
        %v1922 = vmul.f32 %v1802, %v1776
        %v1923 = vmul.f32 %v1803, %v1776
        %v1924 = vadd.f32 %v1920, %v1922
        %v1925 = vadd.f32 %v1921, %v1923
        %v1926 = vmul.f32 %v1804, %v1647
        %v1927 = vmul.f32 %v1805, %v1647
        %v1928 = vadd.f32 %v1924, %v1926
        %v1929 = vadd.f32 %v1925, %v1927
        %v1930 = vmul.f32 %v1806, %v1653
        %v1931 = vmul.f32 %v1807, %v1653
        %v1932 = vadd.f32 %v1928, %v1930
        %v1933 = vadd.f32 %v1929, %v1931
        %v1934 = vmul.f32 %v1808, %v1661
        %v1935 = vmul.f32 %v1809, %v1661
        %v1936 = vadd.f32 %v1932, %v1934
        %v1937 = vadd.f32 %v1933, %v1935
        %v1938 = vrot.slane %v1936, 2
        %v1939 = vrot.slane %v1937, 2
        %v1940 = vsel %vm1668, %v1938, %v1939
        %v1941 = vsel %vm1668, %v1939, %v1938
        %v1942 = vadd.f32 %v1914, %v1940
        %v1943 = vadd.f32 %v1915, %v1941
        %s1944 = scalar_lea.vmem %s376, 32 [#allocation5]
        %1945 = vst [vmem:[%s1944] sm:$0xff] %v1942
        %1946 = vst [vmem:[%s1944 + $0x8] sm:$0x3f] %v1943
        %v1947 = vld [vmem:[#allocation2 + $0x10] sm:$0xff]
        %v1948 = vld [vmem:[#allocation2 + $0x18] sm:$0xff]
        %v1949 = vld [vmem:[#allocation2 + $0x20] sm:$0xff]
        %v1950 = vld [vmem:[#allocation2 + $0x28] sm:$0xff]
        %v1951 = vld [vmem:[#allocation2 + $0x30] sm:$0xff]
        %v1952 = vld [vmem:[#allocation2 + $0x38] sm:$0xff]
        %v1953 = vld [vmem:[#allocation2 + $0x40] sm:$0xff]
        %v1954 = vld [vmem:[#allocation2 + $0x48] sm:$0xff]
        %v1955 = vld [vmem:[#allocation2 + $0x50] sm:$0xff]
        %v1956 = vld [vmem:[#allocation2 + $0x58] sm:$0xff]
        %v1957 = vmul.f32 %v1947, %v1813
        %v1958 = vmul.f32 %v1948, %v1813
        %v1959 = vmul.f32 %v1949, %v1686
        %v1960 = vmul.f32 %v1950, %v1686
        %v1961 = vadd.f32 %v1957, %v1959
        %v1962 = vadd.f32 %v1958, %v1960
        %v1963 = vmul.f32 %v1951, %v1538
        %v1964 = vmul.f32 %v1952, %v1538
        %v1965 = vadd.f32 %v1961, %v1963
        %v1966 = vadd.f32 %v1962, %v1964
        %v1967 = vmul.f32 %v1953, %v1544
        %v1968 = vmul.f32 %v1954, %v1544
        %v1969 = vadd.f32 %v1965, %v1967
        %v1970 = vadd.f32 %v1966, %v1968
        %v1971 = vmul.f32 %v1955, %v1552
        %v1972 = vmul.f32 %v1956, %v1552
        %v1973 = vadd.f32 %v1969, %v1971
        %v1974 = vadd.f32 %v1970, %v1972
        %v1975 = vrot.slane %v1973, 6
        %v1976 = vrot.slane %v1974, 6
        %v1977 = vsel %vm1559, %v1975, %v1976
        %v1978 = vsel %vm1559, %v1976, %v1975
        %v1979 = vmul.f32 %v1947, %v1839
        %v1980 = vmul.f32 %v1948, %v1839
        %v1981 = vmul.f32 %v1949, %v1708
        %v1982 = vmul.f32 %v1950, %v1708
        %v1983 = vadd.f32 %v1979, %v1981
        %v1984 = vadd.f32 %v1980, %v1982
        %v1985 = vmul.f32 %v1951, %v1565
        %v1986 = vmul.f32 %v1952, %v1565
        %v1987 = vadd.f32 %v1983, %v1985
        %v1988 = vadd.f32 %v1984, %v1986
        %v1989 = vmul.f32 %v1953, %v1571
        %v1990 = vmul.f32 %v1954, %v1571
        %v1991 = vadd.f32 %v1987, %v1989
        %v1992 = vadd.f32 %v1988, %v1990
        %v1993 = vmul.f32 %v1955, %v1579
        %v1994 = vmul.f32 %v1956, %v1579
        %v1995 = vadd.f32 %v1991, %v1993
        %v1996 = vadd.f32 %v1992, %v1994
        %v1997 = vrot.slane %v1995, 7
        %v1998 = vrot.slane %v1996, 7
        %v1999 = vsel %vm1586, %v1997, %v1998
        %v2000 = vsel %vm1586, %v1998, %v1997
        %v2001 = vadd.f32 %v1978, %v2000
        %v2002 = vadd.f32 %v1977, %v1999
        %v2003 = vmul.f32 %v1947, %v1867
        %v2004 = vmul.f32 %v1948, %v1867
        %v2005 = vmul.f32 %v1949, %v1732
        %v2006 = vmul.f32 %v1950, %v1732
        %v2007 = vadd.f32 %v2003, %v2005
        %v2008 = vadd.f32 %v2004, %v2006
        %v2009 = vmul.f32 %v1951, %v1594
        %v2010 = vmul.f32 %v1952, %v1594
        %v2011 = vadd.f32 %v2007, %v2009
        %v2012 = vadd.f32 %v2008, %v2010
        %v2013 = vmul.f32 %v1953, %v1600
        %v2014 = vmul.f32 %v1954, %v1600
        %v2015 = vadd.f32 %v2011, %v2013
        %v2016 = vadd.f32 %v2012, %v2014
        %v2017 = vmul.f32 %v1955, %v1608
        %v2018 = vmul.f32 %v1956, %v1608
        %v2019 = vadd.f32 %v2015, %v2017
        %v2020 = vadd.f32 %v2016, %v2018
        %v2021 = vadd.f32 %v2001, %v2019
        %v2022 = vadd.f32 %v2002, %v2020
        %v2023 = vmul.f32 %v1947, %v1891
        %v2024 = vmul.f32 %v1948, %v1891
        %v2025 = vmul.f32 %v1949, %v1752
        %v2026 = vmul.f32 %v1950, %v1752
        %v2027 = vadd.f32 %v2023, %v2025
        %v2028 = vadd.f32 %v2024, %v2026
        %v2029 = vmul.f32 %v1951, %v1618
        %v2030 = vmul.f32 %v1952, %v1618
        %v2031 = vadd.f32 %v2027, %v2029
        %v2032 = vadd.f32 %v2028, %v2030
        %v2033 = vmul.f32 %v1953, %v1624
        %v2034 = vmul.f32 %v1954, %v1624
        %v2035 = vadd.f32 %v2031, %v2033
        %v2036 = vadd.f32 %v2032, %v2034
        %v2037 = vmul.f32 %v1955, %v1632
        %v2038 = vmul.f32 %v1956, %v1632
        %v2039 = vadd.f32 %v2035, %v2037
        %v2040 = vadd.f32 %v2036, %v2038
        %v2041 = vrot.slane %v2039, 1
        %v2042 = vrot.slane %v2040, 1
        %v2043 = vsel %vm1639, %v2041, %v2042
        %v2044 = vsel %vm1639, %v2042, %v2041
        %v2045 = vadd.f32 %v2021, %v2043
        %v2046 = vadd.f32 %v2022, %v2044
        %v2047 = vmul.f32 %v1947, %v1919
        %v2048 = vmul.f32 %v1948, %v1919
        %v2049 = vmul.f32 %v1949, %v1776
        %v2050 = vmul.f32 %v1950, %v1776
        %v2051 = vadd.f32 %v2047, %v2049
        %v2052 = vadd.f32 %v2048, %v2050
        %v2053 = vmul.f32 %v1951, %v1647
        %v2054 = vmul.f32 %v1952, %v1647
        %v2055 = vadd.f32 %v2051, %v2053
        %v2056 = vadd.f32 %v2052, %v2054
        %v2057 = vmul.f32 %v1953, %v1653
        %v2058 = vmul.f32 %v1954, %v1653
        %v2059 = vadd.f32 %v2055, %v2057
        %v2060 = vadd.f32 %v2056, %v2058
        %v2061 = vmul.f32 %v1955, %v1661
        %v2062 = vmul.f32 %v1956, %v1661
        %v2063 = vadd.f32 %v2059, %v2061
        %v2064 = vadd.f32 %v2060, %v2062
        %v2065 = vrot.slane %v2063, 2
        %v2066 = vrot.slane %v2064, 2
        %v2067 = vsel %vm1668, %v2065, %v2066
        %v2068 = vsel %vm1668, %v2066, %v2065
        %v2069 = vadd.f32 %v2045, %v2067
        %v2070 = vadd.f32 %v2046, %v2068
        %s2071 = scalar_lea.vmem %s376, 48 [#allocation5]
        %2072 = vst [vmem:[%s2071] sm:$0xff] %v2069
        %2073 = vst [vmem:[%s2071 + $0x8] sm:$0x3f] %v2070
        %v2074 = vld [vmem:[#allocation2 + $0x20] sm:$0xff]
        %v2075 = vld [vmem:[#allocation2 + $0x28] sm:$0xff]
        %v2076 = vld [vmem:[#allocation2 + $0x30] sm:$0xff]
        %v2077 = vld [vmem:[#allocation2 + $0x38] sm:$0xff]
        %v2078 = vld [vmem:[#allocation2 + $0x40] sm:$0xff]
        %v2079 = vld [vmem:[#allocation2 + $0x48] sm:$0xff]
        %v2080 = vld [vmem:[#allocation2 + $0x50] sm:$0xff]
        %v2081 = vld [vmem:[#allocation2 + $0x58] sm:$0xff]
        %v2082 = vld [vmem:[#allocation2 + $0x60] sm:$0xff]
        %v2083 = vld [vmem:[#allocation2 + $0x68] sm:$0xff]
        %v2084 = vmul.f32 %v2074, %v1813
        %v2085 = vmul.f32 %v2075, %v1813
        %v2086 = vmul.f32 %v2076, %v1686
        %v2087 = vmul.f32 %v2077, %v1686
        %v2088 = vadd.f32 %v2084, %v2086
        %v2089 = vadd.f32 %v2085, %v2087
        %v2090 = vmul.f32 %v2078, %v1538
        %v2091 = vmul.f32 %v2079, %v1538
        %v2092 = vadd.f32 %v2088, %v2090
        %v2093 = vadd.f32 %v2089, %v2091
        %v2094 = vmul.f32 %v2080, %v1544
        %v2095 = vmul.f32 %v2081, %v1544
        %v2096 = vadd.f32 %v2092, %v2094
        %v2097 = vadd.f32 %v2093, %v2095
        %v2098 = vmul.f32 %v2082, %v1552
        %v2099 = vmul.f32 %v2083, %v1552
        %v2100 = vadd.f32 %v2096, %v2098
        %v2101 = vadd.f32 %v2097, %v2099
        %v2102 = vrot.slane %v2100, 6
        %v2103 = vrot.slane %v2101, 6
        %v2104 = vsel %vm1559, %v2102, %v2103
        %v2105 = vsel %vm1559, %v2103, %v2102
        %v2106 = vmul.f32 %v2074, %v1839
        %v2107 = vmul.f32 %v2075, %v1839
        %v2108 = vmul.f32 %v2076, %v1708
        %v2109 = vmul.f32 %v2077, %v1708
        %v2110 = vadd.f32 %v2106, %v2108
        %v2111 = vadd.f32 %v2107, %v2109
        %v2112 = vmul.f32 %v2078, %v1565
        %v2113 = vmul.f32 %v2079, %v1565
        %v2114 = vadd.f32 %v2110, %v2112
        %v2115 = vadd.f32 %v2111, %v2113
        %v2116 = vmul.f32 %v2080, %v1571
        %v2117 = vmul.f32 %v2081, %v1571
        %v2118 = vadd.f32 %v2114, %v2116
        %v2119 = vadd.f32 %v2115, %v2117
        %v2120 = vmul.f32 %v2082, %v1579
        %v2121 = vmul.f32 %v2083, %v1579
        %v2122 = vadd.f32 %v2118, %v2120
        %v2123 = vadd.f32 %v2119, %v2121
        %v2124 = vrot.slane %v2122, 7
        %v2125 = vrot.slane %v2123, 7
        %v2126 = vsel %vm1586, %v2124, %v2125
        %v2127 = vsel %vm1586, %v2125, %v2124
        %v2128 = vadd.f32 %v2105, %v2127
        %v2129 = vadd.f32 %v2104, %v2126
        %v2130 = vmul.f32 %v2074, %v1867
        %v2131 = vmul.f32 %v2075, %v1867
        %v2132 = vmul.f32 %v2076, %v1732
        %v2133 = vmul.f32 %v2077, %v1732
        %v2134 = vadd.f32 %v2130, %v2132
        %v2135 = vadd.f32 %v2131, %v2133
        %v2136 = vmul.f32 %v2078, %v1594
        %v2137 = vmul.f32 %v2079, %v1594
        %v2138 = vadd.f32 %v2134, %v2136
        %v2139 = vadd.f32 %v2135, %v2137
        %v2140 = vmul.f32 %v2080, %v1600
        %v2141 = vmul.f32 %v2081, %v1600
        %v2142 = vadd.f32 %v2138, %v2140
        %v2143 = vadd.f32 %v2139, %v2141
        %v2144 = vmul.f32 %v2082, %v1608
        %v2145 = vmul.f32 %v2083, %v1608
        %v2146 = vadd.f32 %v2142, %v2144
        %v2147 = vadd.f32 %v2143, %v2145
        %v2148 = vadd.f32 %v2128, %v2146
        %v2149 = vadd.f32 %v2129, %v2147
        %v2150 = vmul.f32 %v2074, %v1891
        %v2151 = vmul.f32 %v2075, %v1891
        %v2152 = vmul.f32 %v2076, %v1752
        %v2153 = vmul.f32 %v2077, %v1752
        %v2154 = vadd.f32 %v2150, %v2152
        %v2155 = vadd.f32 %v2151, %v2153
        %v2156 = vmul.f32 %v2078, %v1618
        %v2157 = vmul.f32 %v2079, %v1618
        %v2158 = vadd.f32 %v2154, %v2156
        %v2159 = vadd.f32 %v2155, %v2157
        %v2160 = vmul.f32 %v2080, %v1624
        %v2161 = vmul.f32 %v2081, %v1624
        %v2162 = vadd.f32 %v2158, %v2160
        %v2163 = vadd.f32 %v2159, %v2161
        %v2164 = vmul.f32 %v2082, %v1632
        %v2165 = vmul.f32 %v2083, %v1632
        %v2166 = vadd.f32 %v2162, %v2164
        %v2167 = vadd.f32 %v2163, %v2165
        %v2168 = vrot.slane %v2166, 1
        %v2169 = vrot.slane %v2167, 1
        %v2170 = vsel %vm1639, %v2168, %v2169
        %v2171 = vsel %vm1639, %v2169, %v2168
        %v2172 = vadd.f32 %v2148, %v2170
        %v2173 = vadd.f32 %v2149, %v2171
        %v2174 = vmul.f32 %v2074, %v1919
        %v2175 = vmul.f32 %v2075, %v1919
        %v2176 = vmul.f32 %v2076, %v1776
        %v2177 = vmul.f32 %v2077, %v1776
        %v2178 = vadd.f32 %v2174, %v2176
        %v2179 = vadd.f32 %v2175, %v2177
        %v2180 = vmul.f32 %v2078, %v1647
        %v2181 = vmul.f32 %v2079, %v1647
        %v2182 = vadd.f32 %v2178, %v2180
        %v2183 = vadd.f32 %v2179, %v2181
        %v2184 = vmul.f32 %v2080, %v1653
        %v2185 = vmul.f32 %v2081, %v1653
        %v2186 = vadd.f32 %v2182, %v2184
        %v2187 = vadd.f32 %v2183, %v2185
        %v2188 = vmul.f32 %v2082, %v1661
        %v2189 = vmul.f32 %v2083, %v1661
        %v2190 = vadd.f32 %v2186, %v2188
        %v2191 = vadd.f32 %v2187, %v2189
        %v2192 = vrot.slane %v2190, 2
        %v2193 = vrot.slane %v2191, 2
        %v2194 = vsel %vm1668, %v2192, %v2193
        %v2195 = vsel %vm1668, %v2193, %v2192
        %v2196 = vadd.f32 %v2172, %v2194
        %v2197 = vadd.f32 %v2173, %v2195
        %s2198 = scalar_lea.vmem %s376, 64 [#allocation5]
        %2199 = vst [vmem:[%s2198] sm:$0xff] %v2196
        %2200 = vst [vmem:[%s2198 + $0x8] sm:$0x3f] %v2197
        %v2201 = vld [vmem:[#allocation2 + $0x30] sm:$0xff]
        %v2202 = vld [vmem:[#allocation2 + $0x38] sm:$0xff]
        %v2203 = vld [vmem:[#allocation2 + $0x40] sm:$0xff]
        %v2204 = vld [vmem:[#allocation2 + $0x48] sm:$0xff]
        %v2205 = vld [vmem:[#allocation2 + $0x50] sm:$0xff]
        %v2206 = vld [vmem:[#allocation2 + $0x58] sm:$0xff]
        %v2207 = vld [vmem:[#allocation2 + $0x60] sm:$0xff]
        %v2208 = vld [vmem:[#allocation2 + $0x68] sm:$0xff]
        %v2209 = vld [vmem:[#allocation2 + $0x70] sm:$0xff]
        %v2210 = vld [vmem:[#allocation2 + $0x78] sm:$0xff]
        %v2211 = vmul.f32 %v2201, %v1813
        %v2212 = vmul.f32 %v2202, %v1813
        %v2213 = vmul.f32 %v2203, %v1686
        %v2214 = vmul.f32 %v2204, %v1686
        %v2215 = vadd.f32 %v2211, %v2213
        %v2216 = vadd.f32 %v2212, %v2214
        %v2217 = vmul.f32 %v2205, %v1538
        %v2218 = vmul.f32 %v2206, %v1538
        %v2219 = vadd.f32 %v2215, %v2217
        %v2220 = vadd.f32 %v2216, %v2218
        %v2221 = vmul.f32 %v2207, %v1544
        %v2222 = vmul.f32 %v2208, %v1544
        %v2223 = vadd.f32 %v2219, %v2221
        %v2224 = vadd.f32 %v2220, %v2222
        %v2225 = vmul.f32 %v2209, %v1552
        %v2226 = vmul.f32 %v2210, %v1552
        %v2227 = vadd.f32 %v2223, %v2225
        %v2228 = vadd.f32 %v2224, %v2226
        %v2229 = vrot.slane %v2227, 6
        %v2230 = vrot.slane %v2228, 6
        %v2231 = vsel %vm1559, %v2229, %v2230
        %v2232 = vsel %vm1559, %v2230, %v2229
        %v2233 = vmul.f32 %v2201, %v1839
        %v2234 = vmul.f32 %v2202, %v1839
        %v2235 = vmul.f32 %v2203, %v1708
        %v2236 = vmul.f32 %v2204, %v1708
        %v2237 = vadd.f32 %v2233, %v2235
        %v2238 = vadd.f32 %v2234, %v2236
        %v2239 = vmul.f32 %v2205, %v1565
        %v2240 = vmul.f32 %v2206, %v1565
        %v2241 = vadd.f32 %v2237, %v2239
        %v2242 = vadd.f32 %v2238, %v2240
        %v2243 = vmul.f32 %v2207, %v1571
        %v2244 = vmul.f32 %v2208, %v1571
        %v2245 = vadd.f32 %v2241, %v2243
        %v2246 = vadd.f32 %v2242, %v2244
        %v2247 = vmul.f32 %v2209, %v1579
        %v2248 = vmul.f32 %v2210, %v1579
        %v2249 = vadd.f32 %v2245, %v2247
        %v2250 = vadd.f32 %v2246, %v2248
        %v2251 = vrot.slane %v2249, 7
        %v2252 = vrot.slane %v2250, 7
        %v2253 = vsel %vm1586, %v2251, %v2252
        %v2254 = vsel %vm1586, %v2252, %v2251
        %v2255 = vadd.f32 %v2232, %v2254
        %v2256 = vadd.f32 %v2231, %v2253
        %v2257 = vmul.f32 %v2201, %v1867
        %v2258 = vmul.f32 %v2202, %v1867
        %v2259 = vmul.f32 %v2203, %v1732
        %v2260 = vmul.f32 %v2204, %v1732
        %v2261 = vadd.f32 %v2257, %v2259
        %v2262 = vadd.f32 %v2258, %v2260
        %v2263 = vmul.f32 %v2205, %v1594
        %v2264 = vmul.f32 %v2206, %v1594
        %v2265 = vadd.f32 %v2261, %v2263
        %v2266 = vadd.f32 %v2262, %v2264
        %v2267 = vmul.f32 %v2207, %v1600
        %v2268 = vmul.f32 %v2208, %v1600
        %v2269 = vadd.f32 %v2265, %v2267
        %v2270 = vadd.f32 %v2266, %v2268
        %v2271 = vmul.f32 %v2209, %v1608
        %v2272 = vmul.f32 %v2210, %v1608
        %v2273 = vadd.f32 %v2269, %v2271
        %v2274 = vadd.f32 %v2270, %v2272
        %v2275 = vadd.f32 %v2255, %v2273
        %v2276 = vadd.f32 %v2256, %v2274
        %v2277 = vmul.f32 %v2201, %v1891
        %v2278 = vmul.f32 %v2202, %v1891
        %v2279 = vmul.f32 %v2203, %v1752
        %v2280 = vmul.f32 %v2204, %v1752
        %v2281 = vadd.f32 %v2277, %v2279
        %v2282 = vadd.f32 %v2278, %v2280
        %v2283 = vmul.f32 %v2205, %v1618
        %v2284 = vmul.f32 %v2206, %v1618
        %v2285 = vadd.f32 %v2281, %v2283
        %v2286 = vadd.f32 %v2282, %v2284
        %v2287 = vmul.f32 %v2207, %v1624
        %v2288 = vmul.f32 %v2208, %v1624
        %v2289 = vadd.f32 %v2285, %v2287
        %v2290 = vadd.f32 %v2286, %v2288
        %v2291 = vmul.f32 %v2209, %v1632
        %v2292 = vmul.f32 %v2210, %v1632
        %v2293 = vadd.f32 %v2289, %v2291
        %v2294 = vadd.f32 %v2290, %v2292
        %v2295 = vrot.slane %v2293, 1
        %v2296 = vrot.slane %v2294, 1
        %v2297 = vsel %vm1639, %v2295, %v2296
        %v2298 = vsel %vm1639, %v2296, %v2295
        %v2299 = vadd.f32 %v2275, %v2297
        %v2300 = vadd.f32 %v2276, %v2298
        %v2301 = vmul.f32 %v2201, %v1919
        %v2302 = vmul.f32 %v2202, %v1919
        %v2303 = vmul.f32 %v2203, %v1776
        %v2304 = vmul.f32 %v2204, %v1776
        %v2305 = vadd.f32 %v2301, %v2303
        %v2306 = vadd.f32 %v2302, %v2304
        %v2307 = vmul.f32 %v2205, %v1647
        %v2308 = vmul.f32 %v2206, %v1647
        %v2309 = vadd.f32 %v2305, %v2307
        %v2310 = vadd.f32 %v2306, %v2308
        %v2311 = vmul.f32 %v2207, %v1653
        %v2312 = vmul.f32 %v2208, %v1653
        %v2313 = vadd.f32 %v2309, %v2311
        %v2314 = vadd.f32 %v2310, %v2312
        %v2315 = vmul.f32 %v2209, %v1661
        %v2316 = vmul.f32 %v2210, %v1661
        %v2317 = vadd.f32 %v2313, %v2315
        %v2318 = vadd.f32 %v2314, %v2316
        %v2319 = vrot.slane %v2317, 2
        %v2320 = vrot.slane %v2318, 2
        %v2321 = vsel %vm1668, %v2319, %v2320
        %v2322 = vsel %vm1668, %v2320, %v2319
        %v2323 = vadd.f32 %v2299, %v2321
        %v2324 = vadd.f32 %v2300, %v2322
        %s2325 = scalar_lea.vmem %s376, 80 [#allocation5]
        %2326 = vst [vmem:[%s2325] sm:$0xff] %v2323
        %2327 = vst [vmem:[%s2325 + $0x8] sm:$0x3f] %v2324
        %v2328 = vld [vmem:[#allocation2 + $0x40] sm:$0xff]
        %v2329 = vld [vmem:[#allocation2 + $0x48] sm:$0xff]
        %v2330 = vld [vmem:[#allocation2 + $0x50] sm:$0xff]
        %v2331 = vld [vmem:[#allocation2 + $0x58] sm:$0xff]
        %v2332 = vld [vmem:[#allocation2 + $0x60] sm:$0xff]
        %v2333 = vld [vmem:[#allocation2 + $0x68] sm:$0xff]
        %v2334 = vld [vmem:[#allocation2 + $0x70] sm:$0xff]
        %v2335 = vld [vmem:[#allocation2 + $0x78] sm:$0xff]
        %v2336 = vld [vmem:[#allocation2 + $0x80] sm:$0xff]
        %v2337 = vld [vmem:[#allocation2 + $0x88] sm:$0xff]
        %v2338 = vmul.f32 %v2328, %v1813
        %v2339 = vmul.f32 %v2329, %v1813
        %v2340 = vmul.f32 %v2330, %v1686
        %v2341 = vmul.f32 %v2331, %v1686
        %v2342 = vadd.f32 %v2338, %v2340
        %v2343 = vadd.f32 %v2339, %v2341
        %v2344 = vmul.f32 %v2332, %v1538
        %v2345 = vmul.f32 %v2333, %v1538
        %v2346 = vadd.f32 %v2342, %v2344
        %v2347 = vadd.f32 %v2343, %v2345
        %v2348 = vmul.f32 %v2334, %v1544
        %v2349 = vmul.f32 %v2335, %v1544
        %v2350 = vadd.f32 %v2346, %v2348
        %v2351 = vadd.f32 %v2347, %v2349
        %v2352 = vmul.f32 %v2336, %v1552
        %v2353 = vmul.f32 %v2337, %v1552
        %v2354 = vadd.f32 %v2350, %v2352
        %v2355 = vadd.f32 %v2351, %v2353
        %v2356 = vrot.slane %v2354, 6
        %v2357 = vrot.slane %v2355, 6
        %v2358 = vsel %vm1559, %v2356, %v2357
        %v2359 = vsel %vm1559, %v2357, %v2356
        %v2360 = vmul.f32 %v2328, %v1839
        %v2361 = vmul.f32 %v2329, %v1839
        %v2362 = vmul.f32 %v2330, %v1708
        %v2363 = vmul.f32 %v2331, %v1708
        %v2364 = vadd.f32 %v2360, %v2362
        %v2365 = vadd.f32 %v2361, %v2363
        %v2366 = vmul.f32 %v2332, %v1565
        %v2367 = vmul.f32 %v2333, %v1565
        %v2368 = vadd.f32 %v2364, %v2366
        %v2369 = vadd.f32 %v2365, %v2367
        %v2370 = vmul.f32 %v2334, %v1571
        %v2371 = vmul.f32 %v2335, %v1571
        %v2372 = vadd.f32 %v2368, %v2370
        %v2373 = vadd.f32 %v2369, %v2371
        %v2374 = vmul.f32 %v2336, %v1579
        %v2375 = vmul.f32 %v2337, %v1579
        %v2376 = vadd.f32 %v2372, %v2374
        %v2377 = vadd.f32 %v2373, %v2375
        %v2378 = vrot.slane %v2376, 7
        %v2379 = vrot.slane %v2377, 7
        %v2380 = vsel %vm1586, %v2378, %v2379
        %v2381 = vsel %vm1586, %v2379, %v2378
        %v2382 = vadd.f32 %v2359, %v2381
        %v2383 = vadd.f32 %v2358, %v2380
        %v2384 = vmul.f32 %v2328, %v1867
        %v2385 = vmul.f32 %v2329, %v1867
        %v2386 = vmul.f32 %v2330, %v1732
        %v2387 = vmul.f32 %v2331, %v1732
        %v2388 = vadd.f32 %v2384, %v2386
        %v2389 = vadd.f32 %v2385, %v2387
        %v2390 = vmul.f32 %v2332, %v1594
        %v2391 = vmul.f32 %v2333, %v1594
        %v2392 = vadd.f32 %v2388, %v2390
        %v2393 = vadd.f32 %v2389, %v2391
        %v2394 = vmul.f32 %v2334, %v1600
        %v2395 = vmul.f32 %v2335, %v1600
        %v2396 = vadd.f32 %v2392, %v2394
        %v2397 = vadd.f32 %v2393, %v2395
        %v2398 = vmul.f32 %v2336, %v1608
        %v2399 = vmul.f32 %v2337, %v1608
        %v2400 = vadd.f32 %v2396, %v2398
        %v2401 = vadd.f32 %v2397, %v2399
        %v2402 = vadd.f32 %v2382, %v2400
        %v2403 = vadd.f32 %v2383, %v2401
        %v2404 = vmul.f32 %v2328, %v1891
        %v2405 = vmul.f32 %v2329, %v1891
        %v2406 = vmul.f32 %v2330, %v1752
        %v2407 = vmul.f32 %v2331, %v1752
        %v2408 = vadd.f32 %v2404, %v2406
        %v2409 = vadd.f32 %v2405, %v2407
        %v2410 = vmul.f32 %v2332, %v1618
        %v2411 = vmul.f32 %v2333, %v1618
        %v2412 = vadd.f32 %v2408, %v2410
        %v2413 = vadd.f32 %v2409, %v2411
        %v2414 = vmul.f32 %v2334, %v1624
        %v2415 = vmul.f32 %v2335, %v1624
        %v2416 = vadd.f32 %v2412, %v2414
        %v2417 = vadd.f32 %v2413, %v2415
        %v2418 = vmul.f32 %v2336, %v1632
        %v2419 = vmul.f32 %v2337, %v1632
        %v2420 = vadd.f32 %v2416, %v2418
        %v2421 = vadd.f32 %v2417, %v2419
        %v2422 = vrot.slane %v2420, 1
        %v2423 = vrot.slane %v2421, 1
        %v2424 = vsel %vm1639, %v2422, %v2423
        %v2425 = vsel %vm1639, %v2423, %v2422
        %v2426 = vadd.f32 %v2402, %v2424
        %v2427 = vadd.f32 %v2403, %v2425
        %v2428 = vmul.f32 %v2328, %v1919
        %v2429 = vmul.f32 %v2329, %v1919
        %v2430 = vmul.f32 %v2330, %v1776
        %v2431 = vmul.f32 %v2331, %v1776
        %v2432 = vadd.f32 %v2428, %v2430
        %v2433 = vadd.f32 %v2429, %v2431
        %v2434 = vmul.f32 %v2332, %v1647
        %v2435 = vmul.f32 %v2333, %v1647
        %v2436 = vadd.f32 %v2432, %v2434
        %v2437 = vadd.f32 %v2433, %v2435
        %v2438 = vmul.f32 %v2334, %v1653
        %v2439 = vmul.f32 %v2335, %v1653
        %v2440 = vadd.f32 %v2436, %v2438
        %v2441 = vadd.f32 %v2437, %v2439
        %v2442 = vmul.f32 %v2336, %v1661
        %v2443 = vmul.f32 %v2337, %v1661
        %v2444 = vadd.f32 %v2440, %v2442
        %v2445 = vadd.f32 %v2441, %v2443
        %v2446 = vrot.slane %v2444, 2
        %v2447 = vrot.slane %v2445, 2
        %v2448 = vsel %vm1668, %v2446, %v2447
        %v2449 = vsel %vm1668, %v2447, %v2446
        %v2450 = vadd.f32 %v2426, %v2448
        %v2451 = vadd.f32 %v2427, %v2449
        %s2452 = scalar_lea.vmem %s376, 96 [#allocation5]
        %2453 = vst [vmem:[%s2452] sm:$0xff] %v2450
        %2454 = vst [vmem:[%s2452 + $0x8] sm:$0x3f] %v2451
        %v2455 = vld [vmem:[#allocation2 + $0x50] sm:$0xff]
        %v2456 = vld [vmem:[#allocation2 + $0x58] sm:$0xff]
        %v2457 = vld [vmem:[#allocation2 + $0x60] sm:$0xff]
        %v2458 = vld [vmem:[#allocation2 + $0x68] sm:$0xff]
        %v2459 = vld [vmem:[#allocation2 + $0x70] sm:$0xff]
        %v2460 = vld [vmem:[#allocation2 + $0x78] sm:$0xff]
        %v2461 = vld [vmem:[#allocation2 + $0x80] sm:$0xff]
        %v2462 = vld [vmem:[#allocation2 + $0x88] sm:$0xff]
        %v2463 = vld [vmem:[#allocation2 + $0x90] sm:$0xff]
        %v2464 = vld [vmem:[#allocation2 + $0x98] sm:$0xff]
        %v2465 = vmul.f32 %v2455, %v1813
        %v2466 = vmul.f32 %v2456, %v1813
        %v2467 = vmul.f32 %v2457, %v1686
        %v2468 = vmul.f32 %v2458, %v1686
        %v2469 = vadd.f32 %v2465, %v2467
        %v2470 = vadd.f32 %v2466, %v2468
        %v2471 = vmul.f32 %v2459, %v1538
        %v2472 = vmul.f32 %v2460, %v1538
        %v2473 = vadd.f32 %v2469, %v2471
        %v2474 = vadd.f32 %v2470, %v2472
        %v2475 = vmul.f32 %v2461, %v1544
        %v2476 = vmul.f32 %v2462, %v1544
        %v2477 = vadd.f32 %v2473, %v2475
        %v2478 = vadd.f32 %v2474, %v2476
        %v2479 = vmul.f32 %v2463, %v1552
        %v2480 = vmul.f32 %v2464, %v1552
        %v2481 = vadd.f32 %v2477, %v2479
        %v2482 = vadd.f32 %v2478, %v2480
        %v2483 = vrot.slane %v2481, 6
        %v2484 = vrot.slane %v2482, 6
        %v2485 = vsel %vm1559, %v2483, %v2484
        %v2486 = vsel %vm1559, %v2484, %v2483
        %v2487 = vmul.f32 %v2455, %v1839
        %v2488 = vmul.f32 %v2456, %v1839
        %v2489 = vmul.f32 %v2457, %v1708
        %v2490 = vmul.f32 %v2458, %v1708
        %v2491 = vadd.f32 %v2487, %v2489
        %v2492 = vadd.f32 %v2488, %v2490
        %v2493 = vmul.f32 %v2459, %v1565
        %v2494 = vmul.f32 %v2460, %v1565
        %v2495 = vadd.f32 %v2491, %v2493
        %v2496 = vadd.f32 %v2492, %v2494
        %v2497 = vmul.f32 %v2461, %v1571
        %v2498 = vmul.f32 %v2462, %v1571
        %v2499 = vadd.f32 %v2495, %v2497
        %v2500 = vadd.f32 %v2496, %v2498
        %v2501 = vmul.f32 %v2463, %v1579
        %v2502 = vmul.f32 %v2464, %v1579
        %v2503 = vadd.f32 %v2499, %v2501
        %v2504 = vadd.f32 %v2500, %v2502
        %v2505 = vrot.slane %v2503, 7
        %v2506 = vrot.slane %v2504, 7
        %v2507 = vsel %vm1586, %v2505, %v2506
        %v2508 = vsel %vm1586, %v2506, %v2505
        %v2509 = vadd.f32 %v2486, %v2508
        %v2510 = vadd.f32 %v2485, %v2507
        %v2511 = vmul.f32 %v2455, %v1867
        %v2512 = vmul.f32 %v2456, %v1867
        %v2513 = vmul.f32 %v2457, %v1732
        %v2514 = vmul.f32 %v2458, %v1732
        %v2515 = vadd.f32 %v2511, %v2513
        %v2516 = vadd.f32 %v2512, %v2514
        %v2517 = vmul.f32 %v2459, %v1594
        %v2518 = vmul.f32 %v2460, %v1594
        %v2519 = vadd.f32 %v2515, %v2517
        %v2520 = vadd.f32 %v2516, %v2518
        %v2521 = vmul.f32 %v2461, %v1600
        %v2522 = vmul.f32 %v2462, %v1600
        %v2523 = vadd.f32 %v2519, %v2521
        %v2524 = vadd.f32 %v2520, %v2522
        %v2525 = vmul.f32 %v2463, %v1608
        %v2526 = vmul.f32 %v2464, %v1608
        %v2527 = vadd.f32 %v2523, %v2525
        %v2528 = vadd.f32 %v2524, %v2526
        %v2529 = vadd.f32 %v2509, %v2527
        %v2530 = vadd.f32 %v2510, %v2528
        %v2531 = vmul.f32 %v2455, %v1891
        %v2532 = vmul.f32 %v2456, %v1891
        %v2533 = vmul.f32 %v2457, %v1752
        %v2534 = vmul.f32 %v2458, %v1752
        %v2535 = vadd.f32 %v2531, %v2533
        %v2536 = vadd.f32 %v2532, %v2534
        %v2537 = vmul.f32 %v2459, %v1618
        %v2538 = vmul.f32 %v2460, %v1618
        %v2539 = vadd.f32 %v2535, %v2537
        %v2540 = vadd.f32 %v2536, %v2538
        %v2541 = vmul.f32 %v2461, %v1624
        %v2542 = vmul.f32 %v2462, %v1624
        %v2543 = vadd.f32 %v2539, %v2541
        %v2544 = vadd.f32 %v2540, %v2542
        %v2545 = vmul.f32 %v2463, %v1632
        %v2546 = vmul.f32 %v2464, %v1632
        %v2547 = vadd.f32 %v2543, %v2545
        %v2548 = vadd.f32 %v2544, %v2546
        %v2549 = vrot.slane %v2547, 1
        %v2550 = vrot.slane %v2548, 1
        %v2551 = vsel %vm1639, %v2549, %v2550
        %v2552 = vsel %vm1639, %v2550, %v2549
        %v2553 = vadd.f32 %v2529, %v2551
        %v2554 = vadd.f32 %v2530, %v2552
        %v2555 = vmul.f32 %v2455, %v1919
        %v2556 = vmul.f32 %v2456, %v1919
        %v2557 = vmul.f32 %v2457, %v1776
        %v2558 = vmul.f32 %v2458, %v1776
        %v2559 = vadd.f32 %v2555, %v2557
        %v2560 = vadd.f32 %v2556, %v2558
        %v2561 = vmul.f32 %v2459, %v1647
        %v2562 = vmul.f32 %v2460, %v1647
        %v2563 = vadd.f32 %v2559, %v2561
        %v2564 = vadd.f32 %v2560, %v2562
        %v2565 = vmul.f32 %v2461, %v1653
        %v2566 = vmul.f32 %v2462, %v1653
        %v2567 = vadd.f32 %v2563, %v2565
        %v2568 = vadd.f32 %v2564, %v2566
        %v2569 = vmul.f32 %v2463, %v1661
        %v2570 = vmul.f32 %v2464, %v1661
        %v2571 = vadd.f32 %v2567, %v2569
        %v2572 = vadd.f32 %v2568, %v2570
        %v2573 = vrot.slane %v2571, 2
        %v2574 = vrot.slane %v2572, 2
        %v2575 = vsel %vm1668, %v2573, %v2574
        %v2576 = vsel %vm1668, %v2574, %v2573
        %v2577 = vadd.f32 %v2553, %v2575
        %v2578 = vadd.f32 %v2554, %v2576
        %s2579 = scalar_lea.vmem %s376, 112 [#allocation5]
        %2580 = vst [vmem:[%s2579] sm:$0xff] %v2577
        %2581 = vst [vmem:[%s2579 + $0x8] sm:$0x3f] %v2578
        %v2582 = vld [vmem:[#allocation2 + $0x60] sm:$0xff]
        %v2583 = vld [vmem:[#allocation2 + $0x68] sm:$0xff]
        %v2584 = vld [vmem:[#allocation2 + $0x70] sm:$0xff]
        %v2585 = vld [vmem:[#allocation2 + $0x78] sm:$0xff]
        %v2586 = vld [vmem:[#allocation2 + $0x80] sm:$0xff]
        %v2587 = vld [vmem:[#allocation2 + $0x88] sm:$0xff]
        %v2588 = vld [vmem:[#allocation2 + $0x90] sm:$0xff]
        %v2589 = vld [vmem:[#allocation2 + $0x98] sm:$0xff]
        %v2590 = vld [vmem:[#allocation2 + $0xa0] sm:$0xff]
        %v2591 = vld [vmem:[#allocation2 + $0xa8] sm:$0xff]
        %v2592 = vmul.f32 %v2582, %v1813
        %v2593 = vmul.f32 %v2583, %v1813
        %v2594 = vmul.f32 %v2584, %v1686
        %v2595 = vmul.f32 %v2585, %v1686
        %v2596 = vadd.f32 %v2592, %v2594
        %v2597 = vadd.f32 %v2593, %v2595
        %v2598 = vmul.f32 %v2586, %v1538
        %v2599 = vmul.f32 %v2587, %v1538
        %v2600 = vadd.f32 %v2596, %v2598
        %v2601 = vadd.f32 %v2597, %v2599
        %v2602 = vmul.f32 %v2588, %v1544
        %v2603 = vmul.f32 %v2589, %v1544
        %v2604 = vadd.f32 %v2600, %v2602
        %v2605 = vadd.f32 %v2601, %v2603
        %v2606 = vmul.f32 %v2590, %v1552
        %v2607 = vmul.f32 %v2591, %v1552
        %v2608 = vadd.f32 %v2604, %v2606
        %v2609 = vadd.f32 %v2605, %v2607
        %v2610 = vrot.slane %v2608, 6
        %v2611 = vrot.slane %v2609, 6
        %v2612 = vsel %vm1559, %v2610, %v2611
        %v2613 = vsel %vm1559, %v2611, %v2610
        %v2614 = vmul.f32 %v2582, %v1839
        %v2615 = vmul.f32 %v2583, %v1839
        %v2616 = vmul.f32 %v2584, %v1708
        %v2617 = vmul.f32 %v2585, %v1708
        %v2618 = vadd.f32 %v2614, %v2616
        %v2619 = vadd.f32 %v2615, %v2617
        %v2620 = vmul.f32 %v2586, %v1565
        %v2621 = vmul.f32 %v2587, %v1565
        %v2622 = vadd.f32 %v2618, %v2620
        %v2623 = vadd.f32 %v2619, %v2621
        %v2624 = vmul.f32 %v2588, %v1571
        %v2625 = vmul.f32 %v2589, %v1571
        %v2626 = vadd.f32 %v2622, %v2624
        %v2627 = vadd.f32 %v2623, %v2625
        %v2628 = vmul.f32 %v2590, %v1579
        %v2629 = vmul.f32 %v2591, %v1579
        %v2630 = vadd.f32 %v2626, %v2628
        %v2631 = vadd.f32 %v2627, %v2629
        %v2632 = vrot.slane %v2630, 7
        %v2633 = vrot.slane %v2631, 7
        %v2634 = vsel %vm1586, %v2632, %v2633
        %v2635 = vsel %vm1586, %v2633, %v2632
        %v2636 = vadd.f32 %v2613, %v2635
        %v2637 = vadd.f32 %v2612, %v2634
        %v2638 = vmul.f32 %v2582, %v1867
        %v2639 = vmul.f32 %v2583, %v1867
        %v2640 = vmul.f32 %v2584, %v1732
        %v2641 = vmul.f32 %v2585, %v1732
        %v2642 = vadd.f32 %v2638, %v2640
        %v2643 = vadd.f32 %v2639, %v2641
        %v2644 = vmul.f32 %v2586, %v1594
        %v2645 = vmul.f32 %v2587, %v1594
        %v2646 = vadd.f32 %v2642, %v2644
        %v2647 = vadd.f32 %v2643, %v2645
        %v2648 = vmul.f32 %v2588, %v1600
        %v2649 = vmul.f32 %v2589, %v1600
        %v2650 = vadd.f32 %v2646, %v2648
        %v2651 = vadd.f32 %v2647, %v2649
        %v2652 = vmul.f32 %v2590, %v1608
        %v2653 = vmul.f32 %v2591, %v1608
        %v2654 = vadd.f32 %v2650, %v2652
        %v2655 = vadd.f32 %v2651, %v2653
        %v2656 = vadd.f32 %v2636, %v2654
        %v2657 = vadd.f32 %v2637, %v2655
        %v2658 = vmul.f32 %v2582, %v1891
        %v2659 = vmul.f32 %v2583, %v1891
        %v2660 = vmul.f32 %v2584, %v1752
        %v2661 = vmul.f32 %v2585, %v1752
        %v2662 = vadd.f32 %v2658, %v2660
        %v2663 = vadd.f32 %v2659, %v2661
        %v2664 = vmul.f32 %v2586, %v1618
        %v2665 = vmul.f32 %v2587, %v1618
        %v2666 = vadd.f32 %v2662, %v2664
        %v2667 = vadd.f32 %v2663, %v2665
        %v2668 = vmul.f32 %v2588, %v1624
        %v2669 = vmul.f32 %v2589, %v1624
        %v2670 = vadd.f32 %v2666, %v2668
        %v2671 = vadd.f32 %v2667, %v2669
        %v2672 = vmul.f32 %v2590, %v1632
        %v2673 = vmul.f32 %v2591, %v1632
        %v2674 = vadd.f32 %v2670, %v2672
        %v2675 = vadd.f32 %v2671, %v2673
        %v2676 = vrot.slane %v2674, 1
        %v2677 = vrot.slane %v2675, 1
        %v2678 = vsel %vm1639, %v2676, %v2677
        %v2679 = vsel %vm1639, %v2677, %v2676
        %v2680 = vadd.f32 %v2656, %v2678
        %v2681 = vadd.f32 %v2657, %v2679
        %v2682 = vmul.f32 %v2582, %v1919
        %v2683 = vmul.f32 %v2583, %v1919
        %v2684 = vmul.f32 %v2584, %v1776
        %v2685 = vmul.f32 %v2585, %v1776
        %v2686 = vadd.f32 %v2682, %v2684
        %v2687 = vadd.f32 %v2683, %v2685
        %v2688 = vmul.f32 %v2586, %v1647
        %v2689 = vmul.f32 %v2587, %v1647
        %v2690 = vadd.f32 %v2686, %v2688
        %v2691 = vadd.f32 %v2687, %v2689
        %v2692 = vmul.f32 %v2588, %v1653
        %v2693 = vmul.f32 %v2589, %v1653
        %v2694 = vadd.f32 %v2690, %v2692
        %v2695 = vadd.f32 %v2691, %v2693
        %v2696 = vmul.f32 %v2590, %v1661
        %v2697 = vmul.f32 %v2591, %v1661
        %v2698 = vadd.f32 %v2694, %v2696
        %v2699 = vadd.f32 %v2695, %v2697
        %v2700 = vrot.slane %v2698, 2
        %v2701 = vrot.slane %v2699, 2
        %v2702 = vsel %vm1668, %v2700, %v2701
        %v2703 = vsel %vm1668, %v2701, %v2700
        %v2704 = vadd.f32 %v2680, %v2702
        %v2705 = vadd.f32 %v2681, %v2703
        %s2706 = scalar_lea.vmem %s376, 128 [#allocation5]
        %2707 = vst [vmem:[%s2706] sm:$0xff] %v2704
        %2708 = vst [vmem:[%s2706 + $0x8] sm:$0x3f] %v2705
        %v2709 = vld [vmem:[#allocation2 + $0x70] sm:$0xff]
        %v2710 = vld [vmem:[#allocation2 + $0x78] sm:$0xff]
        %v2711 = vld [vmem:[#allocation2 + $0x80] sm:$0xff]
        %v2712 = vld [vmem:[#allocation2 + $0x88] sm:$0xff]
        %v2713 = vld [vmem:[#allocation2 + $0x90] sm:$0xff]
        %v2714 = vld [vmem:[#allocation2 + $0x98] sm:$0xff]
        %v2715 = vld [vmem:[#allocation2 + $0xa0] sm:$0xff]
        %v2716 = vld [vmem:[#allocation2 + $0xa8] sm:$0xff]
        %v2717 = vld [vmem:[#allocation2 + $0xb0] sm:$0xff]
        %v2718 = vld [vmem:[#allocation2 + $0xb8] sm:$0xff]
        %v2719 = vmul.f32 %v2709, %v1813
        %v2720 = vmul.f32 %v2710, %v1813
        %v2721 = vmul.f32 %v2711, %v1686
        %v2722 = vmul.f32 %v2712, %v1686
        %v2723 = vadd.f32 %v2719, %v2721
        %v2724 = vadd.f32 %v2720, %v2722
        %v2725 = vmul.f32 %v2713, %v1538
        %v2726 = vmul.f32 %v2714, %v1538
        %v2727 = vadd.f32 %v2723, %v2725
        %v2728 = vadd.f32 %v2724, %v2726
        %v2729 = vmul.f32 %v2715, %v1544
        %v2730 = vmul.f32 %v2716, %v1544
        %v2731 = vadd.f32 %v2727, %v2729
        %v2732 = vadd.f32 %v2728, %v2730
        %v2733 = vmul.f32 %v2717, %v1552
        %v2734 = vmul.f32 %v2718, %v1552
        %v2735 = vadd.f32 %v2731, %v2733
        %v2736 = vadd.f32 %v2732, %v2734
        %v2737 = vrot.slane %v2735, 6
        %v2738 = vrot.slane %v2736, 6
        %v2739 = vsel %vm1559, %v2737, %v2738
        %v2740 = vsel %vm1559, %v2738, %v2737
        %v2741 = vmul.f32 %v2709, %v1839
        %v2742 = vmul.f32 %v2710, %v1839
        %v2743 = vmul.f32 %v2711, %v1708
        %v2744 = vmul.f32 %v2712, %v1708
        %v2745 = vadd.f32 %v2741, %v2743
        %v2746 = vadd.f32 %v2742, %v2744
        %v2747 = vmul.f32 %v2713, %v1565
        %v2748 = vmul.f32 %v2714, %v1565
        %v2749 = vadd.f32 %v2745, %v2747
        %v2750 = vadd.f32 %v2746, %v2748
        %v2751 = vmul.f32 %v2715, %v1571
        %v2752 = vmul.f32 %v2716, %v1571
        %v2753 = vadd.f32 %v2749, %v2751
        %v2754 = vadd.f32 %v2750, %v2752
        %v2755 = vmul.f32 %v2717, %v1579
        %v2756 = vmul.f32 %v2718, %v1579
        %v2757 = vadd.f32 %v2753, %v2755
        %v2758 = vadd.f32 %v2754, %v2756
        %v2759 = vrot.slane %v2757, 7
        %v2760 = vrot.slane %v2758, 7
        %v2761 = vsel %vm1586, %v2759, %v2760
        %v2762 = vsel %vm1586, %v2760, %v2759
        %v2763 = vadd.f32 %v2740, %v2762
        %v2764 = vadd.f32 %v2739, %v2761
        %v2765 = vmul.f32 %v2709, %v1867
        %v2766 = vmul.f32 %v2710, %v1867
        %v2767 = vmul.f32 %v2711, %v1732
        %v2768 = vmul.f32 %v2712, %v1732
        %v2769 = vadd.f32 %v2765, %v2767
        %v2770 = vadd.f32 %v2766, %v2768
        %v2771 = vmul.f32 %v2713, %v1594
        %v2772 = vmul.f32 %v2714, %v1594
        %v2773 = vadd.f32 %v2769, %v2771
        %v2774 = vadd.f32 %v2770, %v2772
        %v2775 = vmul.f32 %v2715, %v1600
        %v2776 = vmul.f32 %v2716, %v1600
        %v2777 = vadd.f32 %v2773, %v2775
        %v2778 = vadd.f32 %v2774, %v2776
        %v2779 = vmul.f32 %v2717, %v1608
        %v2780 = vmul.f32 %v2718, %v1608
        %v2781 = vadd.f32 %v2777, %v2779
        %v2782 = vadd.f32 %v2778, %v2780
        %v2783 = vadd.f32 %v2763, %v2781
        %v2784 = vadd.f32 %v2764, %v2782
        %v2785 = vmul.f32 %v2709, %v1891
        %v2786 = vmul.f32 %v2710, %v1891
        %v2787 = vmul.f32 %v2711, %v1752
        %v2788 = vmul.f32 %v2712, %v1752
        %v2789 = vadd.f32 %v2785, %v2787
        %v2790 = vadd.f32 %v2786, %v2788
        %v2791 = vmul.f32 %v2713, %v1618
        %v2792 = vmul.f32 %v2714, %v1618
        %v2793 = vadd.f32 %v2789, %v2791
        %v2794 = vadd.f32 %v2790, %v2792
        %v2795 = vmul.f32 %v2715, %v1624
        %v2796 = vmul.f32 %v2716, %v1624
        %v2797 = vadd.f32 %v2793, %v2795
        %v2798 = vadd.f32 %v2794, %v2796
        %v2799 = vmul.f32 %v2717, %v1632
        %v2800 = vmul.f32 %v2718, %v1632
        %v2801 = vadd.f32 %v2797, %v2799
        %v2802 = vadd.f32 %v2798, %v2800
        %v2803 = vrot.slane %v2801, 1
        %v2804 = vrot.slane %v2802, 1
        %v2805 = vsel %vm1639, %v2803, %v2804
        %v2806 = vsel %vm1639, %v2804, %v2803
        %v2807 = vadd.f32 %v2783, %v2805
        %v2808 = vadd.f32 %v2784, %v2806
        %v2809 = vmul.f32 %v2709, %v1919
        %v2810 = vmul.f32 %v2710, %v1919
        %v2811 = vmul.f32 %v2711, %v1776
        %v2812 = vmul.f32 %v2712, %v1776
        %v2813 = vadd.f32 %v2809, %v2811
        %v2814 = vadd.f32 %v2810, %v2812
        %v2815 = vmul.f32 %v2713, %v1647
        %v2816 = vmul.f32 %v2714, %v1647
        %v2817 = vadd.f32 %v2813, %v2815
        %v2818 = vadd.f32 %v2814, %v2816
        %v2819 = vmul.f32 %v2715, %v1653
        %v2820 = vmul.f32 %v2716, %v1653
        %v2821 = vadd.f32 %v2817, %v2819
        %v2822 = vadd.f32 %v2818, %v2820
        %v2823 = vmul.f32 %v2717, %v1661
        %v2824 = vmul.f32 %v2718, %v1661
        %v2825 = vadd.f32 %v2821, %v2823
        %v2826 = vadd.f32 %v2822, %v2824
        %v2827 = vrot.slane %v2825, 2
        %v2828 = vrot.slane %v2826, 2
        %v2829 = vsel %vm1668, %v2827, %v2828
        %v2830 = vsel %vm1668, %v2828, %v2827
        %v2831 = vadd.f32 %v2807, %v2829
        %v2832 = vadd.f32 %v2808, %v2830
        %s2833 = scalar_lea.vmem %s376, 144 [#allocation5]
        %2834 = vst [vmem:[%s2833] sm:$0xff] %v2831
        %2835 = vst [vmem:[%s2833 + $0x8] sm:$0x3f] %v2832
        %v2836 = vld [vmem:[#allocation2 + $0x80] sm:$0xff]
        %v2837 = vld [vmem:[#allocation2 + $0x88] sm:$0xff]
        %v2838 = vld [vmem:[#allocation2 + $0x90] sm:$0xff]
        %v2839 = vld [vmem:[#allocation2 + $0x98] sm:$0xff]
        %v2840 = vld [vmem:[#allocation2 + $0xa0] sm:$0xff]
        %v2841 = vld [vmem:[#allocation2 + $0xa8] sm:$0xff]
        %v2842 = vld [vmem:[#allocation2 + $0xb0] sm:$0xff]
        %v2843 = vld [vmem:[#allocation2 + $0xb8] sm:$0xff]
        %v2844 = vld [vmem:[#allocation2 + $0xc0] sm:$0xff]
        %v2845 = vld [vmem:[#allocation2 + $0xc8] sm:$0xff]
        %v2846 = vmul.f32 %v2836, %v1813
        %v2847 = vmul.f32 %v2837, %v1813
        %v2848 = vmul.f32 %v2838, %v1686
        %v2849 = vmul.f32 %v2839, %v1686
        %v2850 = vadd.f32 %v2846, %v2848
        %v2851 = vadd.f32 %v2847, %v2849
        %v2852 = vmul.f32 %v2840, %v1538
        %v2853 = vmul.f32 %v2841, %v1538
        %v2854 = vadd.f32 %v2850, %v2852
        %v2855 = vadd.f32 %v2851, %v2853
        %v2856 = vmul.f32 %v2842, %v1544
        %v2857 = vmul.f32 %v2843, %v1544
        %v2858 = vadd.f32 %v2854, %v2856
        %v2859 = vadd.f32 %v2855, %v2857
        %v2860 = vmul.f32 %v2844, %v1552
        %v2861 = vmul.f32 %v2845, %v1552
        %v2862 = vadd.f32 %v2858, %v2860
        %v2863 = vadd.f32 %v2859, %v2861
        %v2864 = vrot.slane %v2862, 6
        %v2865 = vrot.slane %v2863, 6
        %v2866 = vsel %vm1559, %v2864, %v2865
        %v2867 = vsel %vm1559, %v2865, %v2864
        %v2868 = vmul.f32 %v2836, %v1839
        %v2869 = vmul.f32 %v2837, %v1839
        %v2870 = vmul.f32 %v2838, %v1708
        %v2871 = vmul.f32 %v2839, %v1708
        %v2872 = vadd.f32 %v2868, %v2870
        %v2873 = vadd.f32 %v2869, %v2871
        %v2874 = vmul.f32 %v2840, %v1565
        %v2875 = vmul.f32 %v2841, %v1565
        %v2876 = vadd.f32 %v2872, %v2874
        %v2877 = vadd.f32 %v2873, %v2875
        %v2878 = vmul.f32 %v2842, %v1571
        %v2879 = vmul.f32 %v2843, %v1571
        %v2880 = vadd.f32 %v2876, %v2878
        %v2881 = vadd.f32 %v2877, %v2879
        %v2882 = vmul.f32 %v2844, %v1579
        %v2883 = vmul.f32 %v2845, %v1579
        %v2884 = vadd.f32 %v2880, %v2882
        %v2885 = vadd.f32 %v2881, %v2883
        %v2886 = vrot.slane %v2884, 7
        %v2887 = vrot.slane %v2885, 7
        %v2888 = vsel %vm1586, %v2886, %v2887
        %v2889 = vsel %vm1586, %v2887, %v2886
        %v2890 = vadd.f32 %v2867, %v2889
        %v2891 = vadd.f32 %v2866, %v2888
        %v2892 = vmul.f32 %v2836, %v1867
        %v2893 = vmul.f32 %v2837, %v1867
        %v2894 = vmul.f32 %v2838, %v1732
        %v2895 = vmul.f32 %v2839, %v1732
        %v2896 = vadd.f32 %v2892, %v2894
        %v2897 = vadd.f32 %v2893, %v2895
        %v2898 = vmul.f32 %v2840, %v1594
        %v2899 = vmul.f32 %v2841, %v1594
        %v2900 = vadd.f32 %v2896, %v2898
        %v2901 = vadd.f32 %v2897, %v2899
        %v2902 = vmul.f32 %v2842, %v1600
        %v2903 = vmul.f32 %v2843, %v1600
        %v2904 = vadd.f32 %v2900, %v2902
        %v2905 = vadd.f32 %v2901, %v2903
        %v2906 = vmul.f32 %v2844, %v1608
        %v2907 = vmul.f32 %v2845, %v1608
        %v2908 = vadd.f32 %v2904, %v2906
        %v2909 = vadd.f32 %v2905, %v2907
        %v2910 = vadd.f32 %v2890, %v2908
        %v2911 = vadd.f32 %v2891, %v2909
        %v2912 = vmul.f32 %v2836, %v1891
        %v2913 = vmul.f32 %v2837, %v1891
        %v2914 = vmul.f32 %v2838, %v1752
        %v2915 = vmul.f32 %v2839, %v1752
        %v2916 = vadd.f32 %v2912, %v2914
        %v2917 = vadd.f32 %v2913, %v2915
        %v2918 = vmul.f32 %v2840, %v1618
        %v2919 = vmul.f32 %v2841, %v1618
        %v2920 = vadd.f32 %v2916, %v2918
        %v2921 = vadd.f32 %v2917, %v2919
        %v2922 = vmul.f32 %v2842, %v1624
        %v2923 = vmul.f32 %v2843, %v1624
        %v2924 = vadd.f32 %v2920, %v2922
        %v2925 = vadd.f32 %v2921, %v2923
        %v2926 = vmul.f32 %v2844, %v1632
        %v2927 = vmul.f32 %v2845, %v1632
        %v2928 = vadd.f32 %v2924, %v2926
        %v2929 = vadd.f32 %v2925, %v2927
        %v2930 = vrot.slane %v2928, 1
        %v2931 = vrot.slane %v2929, 1
        %v2932 = vsel %vm1639, %v2930, %v2931
        %v2933 = vsel %vm1639, %v2931, %v2930
        %v2934 = vadd.f32 %v2910, %v2932
        %v2935 = vadd.f32 %v2911, %v2933
        %v2936 = vmul.f32 %v2836, %v1919
        %v2937 = vmul.f32 %v2837, %v1919
        %v2938 = vmul.f32 %v2838, %v1776
        %v2939 = vmul.f32 %v2839, %v1776
        %v2940 = vadd.f32 %v2936, %v2938
        %v2941 = vadd.f32 %v2937, %v2939
        %v2942 = vmul.f32 %v2840, %v1647
        %v2943 = vmul.f32 %v2841, %v1647
        %v2944 = vadd.f32 %v2940, %v2942
        %v2945 = vadd.f32 %v2941, %v2943
        %v2946 = vmul.f32 %v2842, %v1653
        %v2947 = vmul.f32 %v2843, %v1653
        %v2948 = vadd.f32 %v2944, %v2946
        %v2949 = vadd.f32 %v2945, %v2947
        %v2950 = vmul.f32 %v2844, %v1661
        %v2951 = vmul.f32 %v2845, %v1661
        %v2952 = vadd.f32 %v2948, %v2950
        %v2953 = vadd.f32 %v2949, %v2951
        %v2954 = vrot.slane %v2952, 2
        %v2955 = vrot.slane %v2953, 2
        %v2956 = vsel %vm1668, %v2954, %v2955
        %v2957 = vsel %vm1668, %v2955, %v2954
        %v2958 = vadd.f32 %v2934, %v2956
        %v2959 = vadd.f32 %v2935, %v2957
        %s2960 = scalar_lea.vmem %s376, 160 [#allocation5]
        %2961 = vst [vmem:[%s2960] sm:$0xff] %v2958
        %2962 = vst [vmem:[%s2960 + $0x8] sm:$0x3f] %v2959
        %v2963 = vld [vmem:[#allocation2 + $0x90] sm:$0xff]
        %v2964 = vld [vmem:[#allocation2 + $0x98] sm:$0xff]
        %v2965 = vld [vmem:[#allocation2 + $0xa0] sm:$0xff]
        %v2966 = vld [vmem:[#allocation2 + $0xa8] sm:$0xff]
        %v2967 = vld [vmem:[#allocation2 + $0xb0] sm:$0xff]
        %v2968 = vld [vmem:[#allocation2 + $0xb8] sm:$0xff]
        %v2969 = vld [vmem:[#allocation2 + $0xc0] sm:$0xff]
        %v2970 = vld [vmem:[#allocation2 + $0xc8] sm:$0xff]
        %v2971 = vld [vmem:[#allocation2 + $0xd0] sm:$0xff]
        %v2972 = vld [vmem:[#allocation2 + $0xd8] sm:$0xff]
        %v2973 = vmul.f32 %v2963, %v1813
        %v2974 = vmul.f32 %v2964, %v1813
        %v2975 = vmul.f32 %v2965, %v1686
        %v2976 = vmul.f32 %v2966, %v1686
        %v2977 = vadd.f32 %v2973, %v2975
        %v2978 = vadd.f32 %v2974, %v2976
        %v2979 = vmul.f32 %v2967, %v1538
        %v2980 = vmul.f32 %v2968, %v1538
        %v2981 = vadd.f32 %v2977, %v2979
        %v2982 = vadd.f32 %v2978, %v2980
        %v2983 = vmul.f32 %v2969, %v1544
        %v2984 = vmul.f32 %v2970, %v1544
        %v2985 = vadd.f32 %v2981, %v2983
        %v2986 = vadd.f32 %v2982, %v2984
        %v2987 = vmul.f32 %v2971, %v1552
        %v2988 = vmul.f32 %v2972, %v1552
        %v2989 = vadd.f32 %v2985, %v2987
        %v2990 = vadd.f32 %v2986, %v2988
        %v2991 = vrot.slane %v2989, 6
        %v2992 = vrot.slane %v2990, 6
        %v2993 = vsel %vm1559, %v2991, %v2992
        %v2994 = vsel %vm1559, %v2992, %v2991
        %v2995 = vmul.f32 %v2963, %v1839
        %v2996 = vmul.f32 %v2964, %v1839
        %v2997 = vmul.f32 %v2965, %v1708
        %v2998 = vmul.f32 %v2966, %v1708
        %v2999 = vadd.f32 %v2995, %v2997
        %v3000 = vadd.f32 %v2996, %v2998
        %v3001 = vmul.f32 %v2967, %v1565
        %v3002 = vmul.f32 %v2968, %v1565
        %v3003 = vadd.f32 %v2999, %v3001
        %v3004 = vadd.f32 %v3000, %v3002
        %v3005 = vmul.f32 %v2969, %v1571
        %v3006 = vmul.f32 %v2970, %v1571
        %v3007 = vadd.f32 %v3003, %v3005
        %v3008 = vadd.f32 %v3004, %v3006
        %v3009 = vmul.f32 %v2971, %v1579
        %v3010 = vmul.f32 %v2972, %v1579
        %v3011 = vadd.f32 %v3007, %v3009
        %v3012 = vadd.f32 %v3008, %v3010
        %v3013 = vrot.slane %v3011, 7
        %v3014 = vrot.slane %v3012, 7
        %v3015 = vsel %vm1586, %v3013, %v3014
        %v3016 = vsel %vm1586, %v3014, %v3013
        %v3017 = vadd.f32 %v2994, %v3016
        %v3018 = vadd.f32 %v2993, %v3015
        %v3019 = vmul.f32 %v2963, %v1867
        %v3020 = vmul.f32 %v2964, %v1867
        %v3021 = vmul.f32 %v2965, %v1732
        %v3022 = vmul.f32 %v2966, %v1732
        %v3023 = vadd.f32 %v3019, %v3021
        %v3024 = vadd.f32 %v3020, %v3022
        %v3025 = vmul.f32 %v2967, %v1594
        %v3026 = vmul.f32 %v2968, %v1594
        %v3027 = vadd.f32 %v3023, %v3025
        %v3028 = vadd.f32 %v3024, %v3026
        %v3029 = vmul.f32 %v2969, %v1600
        %v3030 = vmul.f32 %v2970, %v1600
        %v3031 = vadd.f32 %v3027, %v3029
        %v3032 = vadd.f32 %v3028, %v3030
        %v3033 = vmul.f32 %v2971, %v1608
        %v3034 = vmul.f32 %v2972, %v1608
        %v3035 = vadd.f32 %v3031, %v3033
        %v3036 = vadd.f32 %v3032, %v3034
        %v3037 = vadd.f32 %v3017, %v3035
        %v3038 = vadd.f32 %v3018, %v3036
        %v3039 = vmul.f32 %v2963, %v1891
        %v3040 = vmul.f32 %v2964, %v1891
        %v3041 = vmul.f32 %v2965, %v1752
        %v3042 = vmul.f32 %v2966, %v1752
        %v3043 = vadd.f32 %v3039, %v3041
        %v3044 = vadd.f32 %v3040, %v3042
        %v3045 = vmul.f32 %v2967, %v1618
        %v3046 = vmul.f32 %v2968, %v1618
        %v3047 = vadd.f32 %v3043, %v3045
        %v3048 = vadd.f32 %v3044, %v3046
        %v3049 = vmul.f32 %v2969, %v1624
        %v3050 = vmul.f32 %v2970, %v1624
        %v3051 = vadd.f32 %v3047, %v3049
        %v3052 = vadd.f32 %v3048, %v3050
        %v3053 = vmul.f32 %v2971, %v1632
        %v3054 = vmul.f32 %v2972, %v1632
        %v3055 = vadd.f32 %v3051, %v3053
        %v3056 = vadd.f32 %v3052, %v3054
        %v3057 = vrot.slane %v3055, 1
        %v3058 = vrot.slane %v3056, 1
        %v3059 = vsel %vm1639, %v3057, %v3058
        %v3060 = vsel %vm1639, %v3058, %v3057
        %v3061 = vadd.f32 %v3037, %v3059
        %v3062 = vadd.f32 %v3038, %v3060
        %v3063 = vmul.f32 %v2963, %v1919
        %v3064 = vmul.f32 %v2964, %v1919
        %v3065 = vmul.f32 %v2965, %v1776
        %v3066 = vmul.f32 %v2966, %v1776
        %v3067 = vadd.f32 %v3063, %v3065
        %v3068 = vadd.f32 %v3064, %v3066
        %v3069 = vmul.f32 %v2967, %v1647
        %v3070 = vmul.f32 %v2968, %v1647
        %v3071 = vadd.f32 %v3067, %v3069
        %v3072 = vadd.f32 %v3068, %v3070
        %v3073 = vmul.f32 %v2969, %v1653
        %v3074 = vmul.f32 %v2970, %v1653
        %v3075 = vadd.f32 %v3071, %v3073
        %v3076 = vadd.f32 %v3072, %v3074
        %v3077 = vmul.f32 %v2971, %v1661
        %v3078 = vmul.f32 %v2972, %v1661
        %v3079 = vadd.f32 %v3075, %v3077
        %v3080 = vadd.f32 %v3076, %v3078
        %v3081 = vrot.slane %v3079, 2
        %v3082 = vrot.slane %v3080, 2
        %v3083 = vsel %vm1668, %v3081, %v3082
        %v3084 = vsel %vm1668, %v3082, %v3081
        %v3085 = vadd.f32 %v3061, %v3083
        %v3086 = vadd.f32 %v3062, %v3084
        %s3087 = scalar_lea.vmem %s376, 176 [#allocation5]
        %3088 = vst [vmem:[%s3087] sm:$0xff] %v3085
        %3089 = vst [vmem:[%s3087 + $0x8] sm:$0x3f] %v3086
        %v3090 = vld [vmem:[#allocation2 + $0xa0] sm:$0xff]
        %v3091 = vld [vmem:[#allocation2 + $0xa8] sm:$0xff]
        %v3092 = vld [vmem:[#allocation2 + $0xb0] sm:$0xff]
        %v3093 = vld [vmem:[#allocation2 + $0xb8] sm:$0xff]
        %v3094 = vld [vmem:[#allocation2 + $0xc0] sm:$0xff]
        %v3095 = vld [vmem:[#allocation2 + $0xc8] sm:$0xff]
        %v3096 = vld [vmem:[#allocation2 + $0xd0] sm:$0xff]
        %v3097 = vld [vmem:[#allocation2 + $0xd8] sm:$0xff]
        %v3098 = vmul.f32 %v3090, %v1813
        %v3099 = vmul.f32 %v3091, %v1813
        %v3100 = vmul.f32 %v3092, %v1686
        %v3101 = vmul.f32 %v3093, %v1686
        %v3102 = vadd.f32 %v3098, %v3100
        %v3103 = vadd.f32 %v3099, %v3101
        %v3104 = vmul.f32 %v3094, %v1538
        %v3105 = vmul.f32 %v3095, %v1538
        %v3106 = vadd.f32 %v3102, %v3104
        %v3107 = vadd.f32 %v3103, %v3105
        %v3108 = vmul.f32 %v3096, %v1544
        %v3109 = vmul.f32 %v3097, %v1544
        %v3110 = vadd.f32 %v3106, %v3108
        %v3111 = vadd.f32 %v3107, %v3109
        %v3112 = vrot.slane %v3110, 6
        %v3113 = vrot.slane %v3111, 6
        %v3114 = vsel %vm1559, %v3112, %v3113
        %v3115 = vsel %vm1559, %v3113, %v3112
        %v3116 = vmul.f32 %v3090, %v1839
        %v3117 = vmul.f32 %v3091, %v1839
        %v3118 = vmul.f32 %v3092, %v1708
        %v3119 = vmul.f32 %v3093, %v1708
        %v3120 = vadd.f32 %v3116, %v3118
        %v3121 = vadd.f32 %v3117, %v3119
        %v3122 = vmul.f32 %v3094, %v1565
        %v3123 = vmul.f32 %v3095, %v1565
        %v3124 = vadd.f32 %v3120, %v3122
        %v3125 = vadd.f32 %v3121, %v3123
        %v3126 = vmul.f32 %v3096, %v1571
        %v3127 = vmul.f32 %v3097, %v1571
        %v3128 = vadd.f32 %v3124, %v3126
        %v3129 = vadd.f32 %v3125, %v3127
        %v3130 = vrot.slane %v3128, 7
        %v3131 = vrot.slane %v3129, 7
        %v3132 = vsel %vm1586, %v3130, %v3131
        %v3133 = vsel %vm1586, %v3131, %v3130
        %v3134 = vadd.f32 %v3115, %v3133
        %v3135 = vadd.f32 %v3114, %v3132
        %v3136 = vmul.f32 %v3090, %v1867
        %v3137 = vmul.f32 %v3091, %v1867
        %v3138 = vmul.f32 %v3092, %v1732
        %v3139 = vmul.f32 %v3093, %v1732
        %v3140 = vadd.f32 %v3136, %v3138
        %v3141 = vadd.f32 %v3137, %v3139
        %v3142 = vmul.f32 %v3094, %v1594
        %v3143 = vmul.f32 %v3095, %v1594
        %v3144 = vadd.f32 %v3140, %v3142
        %v3145 = vadd.f32 %v3141, %v3143
        %v3146 = vmul.f32 %v3096, %v1600
        %v3147 = vmul.f32 %v3097, %v1600
        %v3148 = vadd.f32 %v3144, %v3146
        %v3149 = vadd.f32 %v3145, %v3147
        %v3150 = vadd.f32 %v3134, %v3148
        %v3151 = vadd.f32 %v3135, %v3149
        %v3152 = vmul.f32 %v3090, %v1891
        %v3153 = vmul.f32 %v3091, %v1891
        %v3154 = vmul.f32 %v3092, %v1752
        %v3155 = vmul.f32 %v3093, %v1752
        %v3156 = vadd.f32 %v3152, %v3154
        %v3157 = vadd.f32 %v3153, %v3155
        %v3158 = vmul.f32 %v3094, %v1618
        %v3159 = vmul.f32 %v3095, %v1618
        %v3160 = vadd.f32 %v3156, %v3158
        %v3161 = vadd.f32 %v3157, %v3159
        %v3162 = vmul.f32 %v3096, %v1624
        %v3163 = vmul.f32 %v3097, %v1624
        %v3164 = vadd.f32 %v3160, %v3162
        %v3165 = vadd.f32 %v3161, %v3163
        %v3166 = vrot.slane %v3164, 1
        %v3167 = vrot.slane %v3165, 1
        %v3168 = vsel %vm1639, %v3166, %v3167
        %v3169 = vsel %vm1639, %v3167, %v3166
        %v3170 = vadd.f32 %v3150, %v3168
        %v3171 = vadd.f32 %v3151, %v3169
        %v3172 = vmul.f32 %v3090, %v1919
        %v3173 = vmul.f32 %v3091, %v1919
        %v3174 = vmul.f32 %v3092, %v1776
        %v3175 = vmul.f32 %v3093, %v1776
        %v3176 = vadd.f32 %v3172, %v3174
        %v3177 = vadd.f32 %v3173, %v3175
        %v3178 = vmul.f32 %v3094, %v1647
        %v3179 = vmul.f32 %v3095, %v1647
        %v3180 = vadd.f32 %v3176, %v3178
        %v3181 = vadd.f32 %v3177, %v3179
        %v3182 = vmul.f32 %v3096, %v1653
        %v3183 = vmul.f32 %v3097, %v1653
        %v3184 = vadd.f32 %v3180, %v3182
        %v3185 = vadd.f32 %v3181, %v3183
        %v3186 = vrot.slane %v3184, 2
        %v3187 = vrot.slane %v3185, 2
        %v3188 = vsel %vm1668, %v3186, %v3187
        %v3189 = vsel %vm1668, %v3187, %v3186
        %v3190 = vadd.f32 %v3170, %v3188
        %v3191 = vadd.f32 %v3171, %v3189
        %s3192 = scalar_lea.vmem %s376, 192 [#allocation5]
        %3193 = vst [vmem:[%s3192] sm:$0xff] %v3190
        %3194 = vst [vmem:[%s3192 + $0x8] sm:$0x3f] %v3191
        %v3195 = vld [vmem:[#allocation2 + $0xb0] sm:$0xff]
        %v3196 = vld [vmem:[#allocation2 + $0xb8] sm:$0xff]
        %v3197 = vld [vmem:[#allocation2 + $0xc0] sm:$0xff]
        %v3198 = vld [vmem:[#allocation2 + $0xc8] sm:$0xff]
        %v3199 = vld [vmem:[#allocation2 + $0xd0] sm:$0xff]
        %v3200 = vld [vmem:[#allocation2 + $0xd8] sm:$0xff]
        %v3201 = vmul.f32 %v3195, %v1813
        %v3202 = vmul.f32 %v3196, %v1813
        %v3203 = vmul.f32 %v3197, %v1686
        %v3204 = vmul.f32 %v3198, %v1686
        %v3205 = vadd.f32 %v3201, %v3203
        %v3206 = vadd.f32 %v3202, %v3204
        %v3207 = vmul.f32 %v3199, %v1538
        %v3208 = vmul.f32 %v3200, %v1538
        %v3209 = vadd.f32 %v3205, %v3207
        %v3210 = vadd.f32 %v3206, %v3208
        %v3211 = vrot.slane %v3209, 6
        %v3212 = vrot.slane %v3210, 6
        %v3213 = vsel %vm1559, %v3211, %v3212
        %v3214 = vsel %vm1559, %v3212, %v3211
        %v3215 = vmul.f32 %v3195, %v1839
        %v3216 = vmul.f32 %v3196, %v1839
        %v3217 = vmul.f32 %v3197, %v1708
        %v3218 = vmul.f32 %v3198, %v1708
        %v3219 = vadd.f32 %v3215, %v3217
        %v3220 = vadd.f32 %v3216, %v3218
        %v3221 = vmul.f32 %v3199, %v1565
        %v3222 = vmul.f32 %v3200, %v1565
        %v3223 = vadd.f32 %v3219, %v3221
        %v3224 = vadd.f32 %v3220, %v3222
        %v3225 = vrot.slane %v3223, 7
        %v3226 = vrot.slane %v3224, 7
        %v3227 = vsel %vm1586, %v3225, %v3226
        %v3228 = vsel %vm1586, %v3226, %v3225
        %v3229 = vadd.f32 %v3214, %v3228
        %v3230 = vadd.f32 %v3213, %v3227
        %v3231 = vmul.f32 %v3195, %v1867
        %v3232 = vmul.f32 %v3196, %v1867
        %v3233 = vmul.f32 %v3197, %v1732
        %v3234 = vmul.f32 %v3198, %v1732
        %v3235 = vadd.f32 %v3231, %v3233
        %v3236 = vadd.f32 %v3232, %v3234
        %v3237 = vmul.f32 %v3199, %v1594
        %v3238 = vmul.f32 %v3200, %v1594
        %v3239 = vadd.f32 %v3235, %v3237
        %v3240 = vadd.f32 %v3236, %v3238
        %v3241 = vadd.f32 %v3229, %v3239
        %v3242 = vadd.f32 %v3230, %v3240
        %v3243 = vmul.f32 %v3195, %v1891
        %v3244 = vmul.f32 %v3196, %v1891
        %v3245 = vmul.f32 %v3197, %v1752
        %v3246 = vmul.f32 %v3198, %v1752
        %v3247 = vadd.f32 %v3243, %v3245
        %v3248 = vadd.f32 %v3244, %v3246
        %v3249 = vmul.f32 %v3199, %v1618
        %v3250 = vmul.f32 %v3200, %v1618
        %v3251 = vadd.f32 %v3247, %v3249
        %v3252 = vadd.f32 %v3248, %v3250
        %v3253 = vrot.slane %v3251, 1
        %v3254 = vrot.slane %v3252, 1
        %v3255 = vsel %vm1639, %v3253, %v3254
        %v3256 = vsel %vm1639, %v3254, %v3253
        %v3257 = vadd.f32 %v3241, %v3255
        %v3258 = vadd.f32 %v3242, %v3256
        %v3259 = vmul.f32 %v3195, %v1919
        %v3260 = vmul.f32 %v3196, %v1919
        %v3261 = vmul.f32 %v3197, %v1776
        %v3262 = vmul.f32 %v3198, %v1776
        %v3263 = vadd.f32 %v3259, %v3261
        %v3264 = vadd.f32 %v3260, %v3262
        %v3265 = vmul.f32 %v3199, %v1647
        %v3266 = vmul.f32 %v3200, %v1647
        %v3267 = vadd.f32 %v3263, %v3265
        %v3268 = vadd.f32 %v3264, %v3266
        %v3269 = vrot.slane %v3267, 2
        %v3270 = vrot.slane %v3268, 2
        %v3271 = vsel %vm1668, %v3269, %v3270
        %v3272 = vsel %vm1668, %v3270, %v3269
        %v3273 = vadd.f32 %v3257, %v3271
        %v3274 = vadd.f32 %v3258, %v3272
        %s3275 = scalar_lea.vmem %s376, 208 [#allocation5]
        %3276 = vst [vmem:[%s3275] sm:$0xff] %v3273
        %3277 = vst [vmem:[%s3275 + $0x8] sm:$0x3f] %v3274
        %s3278 = sand.u32 %s149, 1
        %s3279 = sand.u32 %s149, 1
        %s3280 = smul.addr %s3279, 224
        %s3281 = scalar_lea.vmem [#allocation5], %s3280
        // Predicated region
        $region117: #{forward_pallas.1} parent=107 // pred_check
          %p3282 = pneg %p159
        $region118: #{forward_pallas.1} parent=107 // pred_check_branch
          %3284 = sbr.rel (%p3282) target = $region120
        $region119: #{forward_pallas.1} parent=107 // pred_region
          %s3285 = smul.addr %s16, 8
          %s3286 = scalar_lea.vmem %s5, %s3285
          // Predicated region
          $region121: #{forward_pallas.1} parent=119 // pred_check
            _
          $region122: #{forward_pallas.1} parent=119 // pred_check_branch
            %3288 = sbr.rel (0) target = $region124
          $region123: #{forward_pallas.1} parent=119 // pred_region
            // Predicated region
            $region125: #{forward_pallas.1} parent=123 // pred_check
              _
            $region126: #{forward_pallas.1} parent=123 // pred_check_branch
              %3290 = sbr.rel (0) target = $region128
            $region127: #{forward_pallas.1} parent=123 // pred_region
              // Predicated region
              $region140: #{forward_pallas.1} parent=127 // pred_check
                _
              $region141: #{forward_pallas.1} parent=127 // pred_check_branch
                %3359 = sbr.rel (0) target = $region143
              $region142: #{forward_pallas.1} parent=127 // pred_region
                loop: start=0, step=1, limit=1
                $region144: #{forward_pallas.1} parent=142 // loop_pre_header
                  _
                $region145: #{forward_pallas.1} parent=142 // loop_header
                  %s3361 = sphi 0, %s3365
                  %p3362 = scmp.ge.s32.totalorder %s3361, 1
                  %s3366 = sphi %s3281, %s3281
                  %s3367 = sphi %s3286, %s3286
                $region146: #{forward_pallas.1} parent=142 // loop_header_branch
                  %3364 = sbr.rel (%p3362) target = $region150
                $region147: #{forward_pallas.1} parent=142 // loop_body
                  %v3368 = vld [vmem:[%s3366] sm:$0xff]
                  %3369 = vst [vmem:[%s3367] sm:$0xff] %v3368
                  %v3370 = vld [vmem:[%s3366 + $0x8] sm:$0xff]
                  %3371 = vst [vmem:[%s3367 + $0x20] sm:$0xff] %v3370
                  %v3372 = vld [vmem:[%s3366 + $0x10] sm:$0xff]
                  %3373 = vst [vmem:[%s3367 + $0x40] sm:$0xff] %v3372
                  %v3374 = vld [vmem:[%s3366 + $0x18] sm:$0xff]
                  %3375 = vst [vmem:[%s3367 + $0x60] sm:$0xff] %v3374
                  %v3376 = vld [vmem:[%s3366 + $0x20] sm:$0xff]
                  %3377 = vst [vmem:[%s3367 + $0x80] sm:$0xff] %v3376
                  %v3378 = vld [vmem:[%s3366 + $0x28] sm:$0xff]
                  %3379 = vst [vmem:[%s3367 + $0xa0] sm:$0xff] %v3378
                  %v3380 = vld [vmem:[%s3366 + $0x30] sm:$0xff]
                  %3381 = vst [vmem:[%s3367 + $0xc0] sm:$0xff] %v3380
                  %v3382 = vld [vmem:[%s3366 + $0x38] sm:$0xff]
                  %3383 = vst [vmem:[%s3367 + $0xe0] sm:$0xff] %v3382
                  %v3384 = vld [vmem:[%s3366 + $0x40] sm:$0xff]
                  %3385 = vst [vmem:[%s3367 + $0x100] sm:$0xff] %v3384
                  %v3386 = vld [vmem:[%s3366 + $0x48] sm:$0xff]
                  %3387 = vst [vmem:[%s3367 + $0x120] sm:$0xff] %v3386
                  %v3388 = vld [vmem:[%s3366 + $0x50] sm:$0xff]
                  %3389 = vst [vmem:[%s3367 + $0x140] sm:$0xff] %v3388
                  %v3390 = vld [vmem:[%s3366 + $0x58] sm:$0xff]
                  %3391 = vst [vmem:[%s3367 + $0x160] sm:$0xff] %v3390
                  %v3392 = vld [vmem:[%s3366 + $0x60] sm:$0xff]
                  %3393 = vst [vmem:[%s3367 + $0x180] sm:$0xff] %v3392
                  %v3394 = vld [vmem:[%s3366 + $0x68] sm:$0xff]
                  %3395 = vst [vmem:[%s3367 + $0x1a0] sm:$0xff] %v3394
                  %v3396 = vld [vmem:[%s3366 + $0x70] sm:$0xff]
                  %3397 = vst [vmem:[%s3367 + $0x1c0] sm:$0xff] %v3396
                  %v3398 = vld [vmem:[%s3366 + $0x78] sm:$0xff]
                  %3399 = vst [vmem:[%s3367 + $0x1e0] sm:$0xff] %v3398
                  %v3400 = vld [vmem:[%s3366 + $0x80] sm:$0xff]
                  %3401 = vst [vmem:[%s3367 + $0x200] sm:$0xff] %v3400
                  %v3402 = vld [vmem:[%s3366 + $0x88] sm:$0xff]
                  %3403 = vst [vmem:[%s3367 + $0x220] sm:$0xff] %v3402
                  %v3404 = vld [vmem:[%s3366 + $0x90] sm:$0xff]
                  %3405 = vst [vmem:[%s3367 + $0x240] sm:$0xff] %v3404
                  %v3406 = vld [vmem:[%s3366 + $0x98] sm:$0xff]
                  %3407 = vst [vmem:[%s3367 + $0x260] sm:$0xff] %v3406
                  %v3408 = vld [vmem:[%s3366 + $0xa0] sm:$0xff]
                  %3409 = vst [vmem:[%s3367 + $0x280] sm:$0xff] %v3408
                  %v3410 = vld [vmem:[%s3366 + $0xa8] sm:$0xff]
                  %3411 = vst [vmem:[%s3367 + $0x2a0] sm:$0xff] %v3410
                  %v3412 = vld [vmem:[%s3366 + $0xb0] sm:$0xff]
                  %3413 = vst [vmem:[%s3367 + $0x2c0] sm:$0xff] %v3412
                  %v3414 = vld [vmem:[%s3366 + $0xb8] sm:$0xff]
                  %3415 = vst [vmem:[%s3367 + $0x2e0] sm:$0xff] %v3414
                  %v3416 = vld [vmem:[%s3366 + $0xc0] sm:$0xff]
                  %3417 = vst [vmem:[%s3367 + $0x300] sm:$0xff] %v3416
                  %v3418 = vld [vmem:[%s3366 + $0xc8] sm:$0xff]
                  %3419 = vst [vmem:[%s3367 + $0x320] sm:$0xff] %v3418
                  %v3420 = vld [vmem:[%s3366 + $0xd0] sm:$0xff]
                  %3421 = vst [vmem:[%s3367 + $0x340] sm:$0xff] %v3420
                  %v3422 = vld [vmem:[%s3366 + $0xd8] sm:$0xff]
                  %3423 = vst [vmem:[%s3367 + $0x360] sm:$0xff] %v3422
                $region148: #{forward_pallas.1} parent=142 // loop_footer
                  %s3365 = sadd.s32 1, %s3361
                $region149: #{forward_pallas.1} parent=142 // loop_footer_branch
                  %3360 = sbr.rel target = $region145
                $region150: #{forward_pallas.1} parent=142 // loop_exit
                  _
              $region143: #{forward_pallas.1} parent=127 // pred_fallthru
                _
              // Predicated region
              $region151: #{forward_pallas.1} parent=127 // pred_check
                _
              $region152: #{forward_pallas.1} parent=127 // pred_check_branch
                %3425 = sbr.rel target = $region154
              $region153: #{forward_pallas.1} parent=127 // pred_region
                _
              $region154: #{forward_pallas.1} parent=127 // pred_fallthru
                _
            $region128: #{forward_pallas.1} parent=123 // pred_fallthru
              _
            // Predicated region
            $region129: #{forward_pallas.1} parent=123 // pred_check
              _
            $region130: #{forward_pallas.1} parent=123 // pred_check_branch
              %3292 = sbr.rel target = $region132
            $region131: #{forward_pallas.1} parent=123 // pred_region
              loop: start=0, step=1, limit=1
              $region133: #{forward_pallas.1} parent=131 // loop_pre_header
                _
              $region134: #{forward_pallas.1} parent=131 // loop_header
                %s3295 = sphi 0, %s3299
                %p3296 = scmp.ge.s32.totalorder %s3295, 1
                %s3300 = sphi %s3281, %s3281
                %s3301 = sphi %s3286, %s3286
              $region135: #{forward_pallas.1} parent=131 // loop_header_branch
                %3298 = sbr.rel (%p3296) target = $region139
              $region136: #{forward_pallas.1} parent=131 // loop_body
                %v3302 = vld [vmem:[%s3300] sm:$0xff]
                %3303 = vst [vmem:[%s3301] sm:$0xff] %v3302
                %v3304 = vld [vmem:[%s3300 + $0x8] sm:$0xff]
                %3305 = vst [vmem:[%s3301 + $0x20] sm:$0xff] %v3304
                %v3306 = vld [vmem:[%s3300 + $0x10] sm:$0xff]
                %3307 = vst [vmem:[%s3301 + $0x40] sm:$0xff] %v3306
                %v3308 = vld [vmem:[%s3300 + $0x18] sm:$0xff]
                %3309 = vst [vmem:[%s3301 + $0x60] sm:$0xff] %v3308
                %v3310 = vld [vmem:[%s3300 + $0x20] sm:$0xff]
                %3311 = vst [vmem:[%s3301 + $0x80] sm:$0xff] %v3310
                %v3312 = vld [vmem:[%s3300 + $0x28] sm:$0xff]
                %3313 = vst [vmem:[%s3301 + $0xa0] sm:$0xff] %v3312
                %v3314 = vld [vmem:[%s3300 + $0x30] sm:$0xff]
                %3315 = vst [vmem:[%s3301 + $0xc0] sm:$0xff] %v3314
                %v3316 = vld [vmem:[%s3300 + $0x38] sm:$0xff]
                %3317 = vst [vmem:[%s3301 + $0xe0] sm:$0xff] %v3316
                %v3318 = vld [vmem:[%s3300 + $0x40] sm:$0xff]
                %3319 = vst [vmem:[%s3301 + $0x100] sm:$0xff] %v3318
                %v3320 = vld [vmem:[%s3300 + $0x48] sm:$0xff]
                %3321 = vst [vmem:[%s3301 + $0x120] sm:$0xff] %v3320
                %v3322 = vld [vmem:[%s3300 + $0x50] sm:$0xff]
                %3323 = vst [vmem:[%s3301 + $0x140] sm:$0xff] %v3322
                %v3324 = vld [vmem:[%s3300 + $0x58] sm:$0xff]
                %3325 = vst [vmem:[%s3301 + $0x160] sm:$0xff] %v3324
                %v3326 = vld [vmem:[%s3300 + $0x60] sm:$0xff]
                %3327 = vst [vmem:[%s3301 + $0x180] sm:$0xff] %v3326
                %v3328 = vld [vmem:[%s3300 + $0x68] sm:$0xff]
                %3329 = vst [vmem:[%s3301 + $0x1a0] sm:$0xff] %v3328
                %v3330 = vld [vmem:[%s3300 + $0x70] sm:$0xff]
                %3331 = vst [vmem:[%s3301 + $0x1c0] sm:$0xff] %v3330
                %v3332 = vld [vmem:[%s3300 + $0x78] sm:$0xff]
                %3333 = vst [vmem:[%s3301 + $0x1e0] sm:$0xff] %v3332
                %v3334 = vld [vmem:[%s3300 + $0x80] sm:$0xff]
                %3335 = vst [vmem:[%s3301 + $0x200] sm:$0xff] %v3334
                %v3336 = vld [vmem:[%s3300 + $0x88] sm:$0xff]
                %3337 = vst [vmem:[%s3301 + $0x220] sm:$0xff] %v3336
                %v3338 = vld [vmem:[%s3300 + $0x90] sm:$0xff]
                %3339 = vst [vmem:[%s3301 + $0x240] sm:$0xff] %v3338
                %v3340 = vld [vmem:[%s3300 + $0x98] sm:$0xff]
                %3341 = vst [vmem:[%s3301 + $0x260] sm:$0xff] %v3340
                %v3342 = vld [vmem:[%s3300 + $0xa0] sm:$0xff]
                %3343 = vst [vmem:[%s3301 + $0x280] sm:$0xff] %v3342
                %v3344 = vld [vmem:[%s3300 + $0xa8] sm:$0xff]
                %3345 = vst [vmem:[%s3301 + $0x2a0] sm:$0xff] %v3344
                %v3346 = vld [vmem:[%s3300 + $0xb0] sm:$0xff]
                %3347 = vst [vmem:[%s3301 + $0x2c0] sm:$0xff] %v3346
                %v3348 = vld [vmem:[%s3300 + $0xb8] sm:$0xff]
                %3349 = vst [vmem:[%s3301 + $0x2e0] sm:$0xff] %v3348
                %v3350 = vld [vmem:[%s3300 + $0xc0] sm:$0xff]
                %3351 = vst [vmem:[%s3301 + $0x300] sm:$0xff] %v3350
                %v3352 = vld [vmem:[%s3300 + $0xc8] sm:$0xff]
                %3353 = vst [vmem:[%s3301 + $0x320] sm:$0xff] %v3352
                %v3354 = vld [vmem:[%s3300 + $0xd0] sm:$0xff]
                %3355 = vst [vmem:[%s3301 + $0x340] sm:$0xff] %v3354
                %v3356 = vld [vmem:[%s3300 + $0xd8] sm:$0xff]
                %3357 = vst [vmem:[%s3301 + $0x360] sm:$0xff] %v3356
              $region137: #{forward_pallas.1} parent=131 // loop_footer
                %s3299 = sadd.s32 1, %s3295
              $region138: #{forward_pallas.1} parent=131 // loop_footer_branch
                %3294 = sbr.rel target = $region134
              $region139: #{forward_pallas.1} parent=131 // loop_exit
                _
            $region132: #{forward_pallas.1} parent=123 // pred_fallthru
              _
          $region124: #{forward_pallas.1} parent=119 // pred_fallthru
            _
          %3426 = vnop
        $region120: #{forward_pallas.1} parent=107 // pred_fallthru
          _
      $region108: #{forward_pallas.1} parent=5 // pred_fallthru
        _
      %p3427 = scmp.le.s32.totalorder 2, %s11
      // Predicated region
      $region155: #{forward_pallas.1} parent=5 // pred_check
        %p3428 = pneg %p3427
      $region156: #{forward_pallas.1} parent=5 // pred_check_branch
        %3430 = sbr.rel (%p3428) target = $region158
      $region157: #{forward_pallas.1} parent=5 // pred_region
        %s3431 = ssub.s32 %s11, 2
        // Predicated region
        $region159: #{forward_pallas.1} parent=157 // pred_check
          %p3432 = pneg %p165
        $region160: #{forward_pallas.1} parent=157 // pred_check_branch
          %3434 = sbr.rel (%p3432) target = $region162
        $region161: #{forward_pallas.1} parent=157 // pred_region
          %s3435 = sand.u32 %s150, 1
          %s3436 = sand.u32 %s150, 1
          %s3437 = smul.addr %s3436, 224
          %s3438 = scalar_lea.vmem [#allocation5], %s3437
        $region162: #{forward_pallas.1} parent=157 // pred_fallthru
          _
      $region158: #{forward_pallas.1} parent=5 // pred_fallthru
        _
    $region6: #{forward_pallas.1} parent=1 // loop_footer
      %s15 = sadd.s32 1, %s11
    $region7: #{forward_pallas.1} parent=1 // loop_footer_branch
      %10 = sbr.rel target = $region3
    $region8: #{forward_pallas.1} parent=1 // loop_exit
      _

</llo_original>
